<compile_context>
chip_gen: v7x
topology: tpu7x:2x2x1
jax: 0.10.0
libtpu: 0.0.40
codegen_flags: <defaults>
</compile_context>

<pallas_src>
import jax
import jax.numpy as jnp
from jax import lax
from jax.experimental import pallas as pl
from jax.experimental.pallas import tpu as pltpu

NORM_EPS = 1e-5


def _round_up(a, b):
    return (a + b - 1) // b * b


# ---------------------------------------------------------------------------
# Fast path: fully fused single kernel (conv + BN batch stats + scale + ReLU).
# ---------------------------------------------------------------------------
def _conv_bn_relu_fused(x, weight, gamma, beta, padding):
    N, C, H, W = x.shape
    O, _, k, _ = weight.shape
    HP, WP = H + 2 * padding, W + 2 * padding    # padded input spatial dims
    OH, OW = HP - k + 1, WP - k + 1              # stride-1 output spatial dims
    LW = OH * WP                                 # "wide" flattened output length
    CP = _round_up(C, 8)                         # dense sublane contraction dim
    LPAD = _round_up(HP * WP + (k - 1), 128)     # flat length so all taps stay in bounds

    # Input: zero-pad spatially, flatten (HP, WP) (free reshape), pad the tail.
    xp = jnp.pad(x.astype(jnp.float32),
                 ((0, 0), (0, 0), (padding, padding), (padding, padding)))
    x_flat = jnp.pad(xp.reshape(N, C, HP * WP),
                     ((0, 0), (0, CP - C), (0, LPAD - HP * WP)))
    # Per-tap weights: (k*k, O, CP), tap index t = i*k + j.
    w_taps = jnp.pad(jnp.transpose(weight.astype(jnp.float32), (2, 3, 0, 1)),
                     ((0, 0), (0, 0), (0, 0), (0, CP - C))).reshape(k * k, O, CP)
    g2 = gamma.astype(jnp.float32).reshape(O, 1)
    b2 = beta.astype(jnp.float32).reshape(O, 1)
    # Valid-column mask over the wide axis (pad columns excluded from BN stats).
    maskf = (jnp.arange(LW, dtype=jnp.int32) % WP < OW).astype(
        jnp.float32).reshape(1, LW)

    inv_m = 1.0 / float(N * OH * OW)

    def kernel(x_ref, w_ref, g_ref, b_ref, m_ref, out_ref):
        maskv = m_ref[...]                                   # (1, LW)
        # Pass 1: conv = k*k accumulated lane-shifted matmuls; store y,
        # accumulate masked per-channel sums (in-kernel im2col fold).
        ssum = jnp.zeros((O, 1), jnp.float32)
        for n in range(N):
            acc = jnp.zeros((O, LW), jnp.float32)
            for i in range(k):
                for j in range(k):
                    off = i * WP + j
                    acc = acc + jnp.dot(w_ref[i * k + j],
                                        x_ref[n, :, off:off + LW],
                                        preferred_element_type=jnp.float32)
            out_ref[n] = acc
            ssum = ssum + jnp.sum(acc * maskv, axis=1, keepdims=True)
        mean = ssum * inv_m                                  # (O, 1)
        # Pass 2: centered sum of squares (cancellation-safe biased variance).
        ssq = jnp.zeros((O, 1), jnp.float32)
        for n in range(N):
            d = (out_ref[n] - mean) * maskv
            ssq = ssq + jnp.sum(d * d, axis=1, keepdims=True)
        inv_std = lax.rsqrt(ssq * inv_m + NORM_EPS)
        scale = g_ref[...] * inv_std                         # (O, 1)
        shift = b_ref[...] - mean * scale
        # Pass 3: normalize + ReLU in place; only then the single HBM writeback.
        for n in range(N):
            out_ref[n] = jnp.maximum(out_ref[n] * scale + shift, 0.0)

    out_wide = pl.pallas_call(
        kernel,
        out_shape=jax.ShapeDtypeStruct((N, O, LW), jnp.float32),
        compiler_params=pltpu.CompilerParams(vmem_limit_bytes=32 * 1024 * 1024),
    )(x_flat, w_taps, g2, b2, maskf)

    # (N, O, OH*WP) -> (N, O, OH, WP) is a free reshape; drop the pad columns.
    return out_wide.reshape(N, O, OH, WP)[:, :, :, :OW]


# ---------------------------------------------------------------------------
# Fallback: two-phase batch-gridded path (stride != 1 or footprint too large
# for a single VMEM-resident invocation).
# ---------------------------------------------------------------------------
def _conv_stats_kernel(p_ref, w_ref, y_ref, stat_ref):
    # p_ref: (KKCp, OHOW) bf16, w_ref: (O, KKCp) bf16,
    # y_ref: (O, OHOW) bf16, stat_ref: (2, O) f32 lane-dense (row0=sum, row1=sumsq).
    y = jnp.dot(w_ref[...], p_ref[...], preferred_element_type=jnp.float32)
    y_ref[...] = y.astype(y_ref.dtype)
    s = jnp.sum(y, axis=1).reshape(1, -1)
    q = jnp.sum(y * y, axis=1).reshape(1, -1)
    stat_ref[...] = jnp.concatenate([s, q], axis=0)


def _bn_relu_kernel(y_ref, scale_ref, shift_ref, o_ref):
    y = y_ref[...].astype(jnp.float32)
    o_ref[...] = jnp.maximum(
        y * scale_ref[...] + shift_ref[...], 0.0).astype(o_ref.dtype)


def _conv_bn_relu_tiled(x, weight, gamma, beta, stride, padding):
    # TODO(synk): fold the im2col and an OH*OW lane-tile grid axis into this
    # path too (as in the fused kernel) for very large shapes; it still
    # materializes the k*k*C patch matrix in HBM.
    N, C, H, W = x.shape
    O, _, k, _ = weight.shape
    OH = (H + 2 * padding - k) // stride + 1
    OW = (W + 2 * padding - k) // stride + 1
    KKC = k * k * C
    KKCp = _round_up(KKC, 16)   # dense bf16 sublane layout on the contraction dim
    OHOW = OH * OW

    xp = jnp.pad(x, ((0, 0), (0, 0), (padding, padding), (padding, padding)))
    cols = []
    for i in range(k):
        for j in range(k):
            cols.append(xp[:, :, i:i + stride * OH:stride, j:j + stride * OW:stride])
    patches_t = jnp.stack(cols, axis=1).reshape(N, KKC, OHOW).astype(jnp.bfloat16)
    patches_t = jnp.pad(patches_t, ((0, 0), (0, KKCp - KKC), (0, 0)))
    w2 = weight.transpose(0, 2, 3, 1).reshape(O, KKC).astype(jnp.bfloat16)
    w2 = jnp.pad(w2, ((0, 0), (0, KKCp - KKC)))

    parallel = pltpu.CompilerParams(dimension_semantics=("parallel",))

    # Phase 1: conv (bf16 operands, f32 accumulate) + per-batch BN partials.
    # y intermediate is bf16 (half the HBM traffic); stats come from the f32
    # MXU result before the cast, and are emitted as one lane-dense (2, O) tile.
    y, stats = pl.pallas_call(
        _conv_stats_kernel,
        out_shape=(jax.ShapeDtypeStruct((N, O, OHOW), jnp.bfloat16),
                   jax.ShapeDtypeStruct((N, 2, O), jnp.float32)),
        grid=(N,),
        in_specs=[pl.BlockSpec((None, KKCp, OHOW), lambda n: (n, 0, 0)),
                  pl.BlockSpec((O, KKCp), lambda n: (0, 0))],
        out_specs=(pl.BlockSpec((None, O, OHOW), lambda n: (n, 0, 0)),
                   pl.BlockSpec((None, 2, O), lambda n: (n, 0, 0))),
        compiler_params=parallel,
    )(patches_t, w2)

    # Tiny (N, 2, O) -> per-channel scale/shift fold in plain JAX.
    m_total = jnp.float32(N * OHOW)
    ssum = jnp.sum(stats[:, 0, :], axis=0)
    ssq = jnp.sum(stats[:, 1, :], axis=0)
    mean = ssum / m_total
    var = jnp.maximum(ssq / m_total - mean * mean, 0.0)  # biased (training-mode BN)
    inv_std = lax.rsqrt(var + NORM_EPS)
    g32 = gamma.astype(jnp.float32)
    scale = (g32 * inv_std).reshape(O, 1)
    shift = (beta.astype(jnp.float32) - mean * g32 * inv_std).reshape(O, 1)

    # Phase 2: normalize + ReLU (lane-dense NCHW-native output).
    out_flat = pl.pallas_call(
        _bn_relu_kernel,
        out_shape=jax.ShapeDtypeStruct((N, O, OHOW), jnp.float32),
        grid=(N,),
        in_specs=[pl.BlockSpec((None, O, OHOW), lambda n: (n, 0, 0)),
                  pl.BlockSpec((O, 1), lambda n: (0, 0)),
                  pl.BlockSpec((O, 1), lambda n: (0, 0))],
        out_specs=pl.BlockSpec((None, O, OHOW), lambda n: (n, 0, 0)),
        compiler_params=parallel,
    )(y, scale, shift)

    return out_flat.reshape(N, O, OH, OW)


def conv_bn_relu(x, weight, gamma, beta, *, stride=1, padding=1, groups=1):
    """Forward of ConvBNReLU: Conv2d(bias=False) -> BatchNorm2d (training-mode
    batch stats, eps=1e-5) -> ReLU.  x is NCHW; weight is (O, C, k, k)."""
    # TODO(synk): grouped conv (groups > 1) not implemented; module default groups=1.
    assert groups == 1
    # TODO(synk): BatchNorm running_mean/running_var updates (training-time side
    # effects) are not reproduced; only the forward output with batch stats is.
    N, C, H, W = x.shape
    O, Cw, k, k2 = weight.shape
    assert Cw == C and k == k2

    if stride == 1:
        HP, WP = H + 2 * padding, W + 2 * padding
        OH, OW = HP - k + 1, WP - k + 1
        LW = OH * WP
        CP = _round_up(C, 8)
        LPAD = _round_up(HP * WP + (k - 1), 128)
        # f32 footprint of the fused single-invocation kernel (inputs + resident
        # output + working set).  Kept well under the 16 MiB scoped-VMEM floor
        # (v5e default; v6e/v7x default 32 MiB) so the fast path is safe on
        # every TPU generation.  Cap the unroll factor too.
        fused_bytes = 4 * (N * CP * LPAD + k * k * O * CP + N * O * LW
                           + LW + 2 * O + 4 * O * LW)
        if fused_bytes <= 10 * 1024 * 1024 and N * k * k <= 256:
            return _conv_bn_relu_fused(x, weight, gamma, beta, padding)
    return _conv_bn_relu_tiled(x, weight, gamma, beta, stride, padding)


if __name__ == "__main__":
    key = jax.random.PRNGKey(0)
    kx, kw = jax.random.split(key)

    # Module config: in_channels=4, out_channels=8, kernel_size=3, stride=1.
    N, C, H, W = 2, 4, 16, 16
    O, k = 8, 3

    x = jax.random.normal(kx, (N, C, H, W), dtype=jnp.float32)
    # Conv2d weight (bias=False); deterministic init.
    weight = 0.1 * jax.random.normal(kw, (O, C, k, k), dtype=jnp.float32)
    # BatchNorm2d default affine init: weight=1, bias=0.
    gamma = jnp.ones((O,), dtype=jnp.float32)
    beta = jnp.zeros((O,), dtype=jnp.float32)

    out = conv_bn_relu(x, weight, gamma, beta, stride=1, padding=1, groups=1)
    jax.block_until_ready(out)
    assert out.shape == (N, O, H, W), out.shape

    # Reference: XLA conv + training-mode BatchNorm (biased var) + ReLU.
    y_ref = lax.conv_general_dilated(
        x, weight, window_strides=(1, 1), padding=((1, 1), (1, 1)),
        dimension_numbers=("NCHW", "OIHW", "NCHW"),
        precision=lax.Precision.HIGHEST)
    mu = jnp.mean(y_ref, axis=(0, 2, 3), keepdims=True)
    var = jnp.var(y_ref, axis=(0, 2, 3), keepdims=True)
    ref = jnp.maximum((y_ref - mu) * lax.rsqrt(var + NORM_EPS)
                      * gamma.reshape(1, O, 1, 1) + beta.reshape(1, O, 1, 1), 0.0)
    err = float(jnp.max(jnp.abs(out - ref)))
    assert err < 2e-2, f"max abs error {err}"
    print("KERNEL_OK")
</pallas_src>

<mosaic_0001>
module attributes {stable_mosaic.version = 11 : i64} {
  func.func @kernel(%arg0: memref<2x8x384xf32, #tpu.memory_space<vmem>>, %arg1: memref<9x8x8xf32, #tpu.memory_space<vmem>>, %arg2: memref<8x1xf32, #tpu.memory_space<vmem>>, %arg3: memref<8x1xf32, #tpu.memory_space<vmem>>, %arg4: memref<1x288xf32, #tpu.memory_space<vmem>>, %arg5: memref<2x8x288xf32, #tpu.memory_space<vmem>>) attributes {dimension_semantics = [], scalar_prefetch = 0 : i64, scratch_operands = 0 : i64, tpu.core_type = #tpu.core_type<tc>} {
    %c0 = arith.constant 0 : index
    %c0_0 = arith.constant 0 : index
    %0 = vector.load %arg4[%c0, %c0_0] : memref<1x288xf32, #tpu.memory_space<vmem>>, vector<1x288xf32>
    %cst = arith.constant 0.000000e+00 : f32
    %1 = vector.broadcast %cst : f32 to vector<8x1xf32>
    %cst_1 = arith.constant 0.000000e+00 : f32
    %2 = vector.broadcast %cst_1 : f32 to vector<8x288xf32>
    %c0_2 = arith.constant 0 : index
    %c0_3 = arith.constant 0 : index
    %c0_4 = arith.constant 0 : index
    %3 = vector.load %arg1[%c0_2, %c0_3, %c0_4] : memref<9x8x8xf32, #tpu.memory_space<vmem>>, vector<1x8x8xf32>
    %4 = vector.shape_cast %3 : vector<1x8x8xf32> to vector<8x8xf32>
    %c0_5 = arith.constant 0 : index
    %c0_6 = arith.constant 0 : index
    %c0_7 = arith.constant 0 : index
    %5 = vector.load %arg0[%c0_5, %c0_6, %c0_7] : memref<2x8x384xf32, #tpu.memory_space<vmem>>, vector<1x8x288xf32>
    %6 = vector.shape_cast %5 : vector<1x8x288xf32> to vector<8x288xf32>
    %cst_8 = arith.constant dense<0.000000e+00> : vector<8x288xf32>
    %7 = tpu.matmul %4, %6, %cst_8 {dimension_numbers = #tpu.dot_dimension_numbers<[1], [0], [0], [1], [0, 0, 1, 1], [], []>} : vector<8x8xf32>, vector<8x288xf32>, vector<8x288xf32> -> vector<8x288xf32>
    %8 = arith.addf %2, %7 : vector<8x288xf32>
    %c1 = arith.constant 1 : index
    %c0_9 = arith.constant 0 : index
    %c0_10 = arith.constant 0 : index
    %9 = vector.load %arg1[%c1, %c0_9, %c0_10] : memref<9x8x8xf32, #tpu.memory_space<vmem>>, vector<1x8x8xf32>
    %10 = vector.shape_cast %9 : vector<1x8x8xf32> to vector<8x8xf32>
    %c0_11 = arith.constant 0 : index
    %c0_12 = arith.constant 0 : index
    %c1_13 = arith.constant 1 : index
    %11 = vector.load %arg0[%c0_11, %c0_12, %c1_13] : memref<2x8x384xf32, #tpu.memory_space<vmem>>, vector<1x8x288xf32>
    %12 = vector.shape_cast %11 : vector<1x8x288xf32> to vector<8x288xf32>
    %cst_14 = arith.constant dense<0.000000e+00> : vector<8x288xf32>
    %13 = tpu.matmul %10, %12, %cst_14 {dimension_numbers = #tpu.dot_dimension_numbers<[1], [0], [0], [1], [0, 0, 1, 1], [], []>} : vector<8x8xf32>, vector<8x288xf32>, vector<8x288xf32> -> vector<8x288xf32>
    %14 = arith.addf %8, %13 : vector<8x288xf32>
    %c2 = arith.constant 2 : index
    %c0_15 = arith.constant 0 : index
    %c0_16 = arith.constant 0 : index
    %15 = vector.load %arg1[%c2, %c0_15, %c0_16] : memref<9x8x8xf32, #tpu.memory_space<vmem>>, vector<1x8x8xf32>
    %16 = vector.shape_cast %15 : vector<1x8x8xf32> to vector<8x8xf32>
    %c0_17 = arith.constant 0 : index
    %c0_18 = arith.constant 0 : index
    %c2_19 = arith.constant 2 : index
    %17 = vector.load %arg0[%c0_17, %c0_18, %c2_19] : memref<2x8x384xf32, #tpu.memory_space<vmem>>, vector<1x8x288xf32>
    %18 = vector.shape_cast %17 : vector<1x8x288xf32> to vector<8x288xf32>
    %cst_20 = arith.constant dense<0.000000e+00> : vector<8x288xf32>
    %19 = tpu.matmul %16, %18, %cst_20 {dimension_numbers = #tpu.dot_dimension_numbers<[1], [0], [0], [1], [0, 0, 1, 1], [], []>} : vector<8x8xf32>, vector<8x288xf32>, vector<8x288xf32> -> vector<8x288xf32>
    %20 = arith.addf %14, %19 : vector<8x288xf32>
    %c3 = arith.constant 3 : index
    %c0_21 = arith.constant 0 : index
    %c0_22 = arith.constant 0 : index
    %21 = vector.load %arg1[%c3, %c0_21, %c0_22] : memref<9x8x8xf32, #tpu.memory_space<vmem>>, vector<1x8x8xf32>
    %22 = vector.shape_cast %21 : vector<1x8x8xf32> to vector<8x8xf32>
    %c0_23 = arith.constant 0 : index
    %c0_24 = arith.constant 0 : index
    %c18 = arith.constant 18 : index
    %23 = vector.load %arg0[%c0_23, %c0_24, %c18] : memref<2x8x384xf32, #tpu.memory_space<vmem>>, vector<1x8x288xf32>
    %24 = vector.shape_cast %23 : vector<1x8x288xf32> to vector<8x288xf32>
    %cst_25 = arith.constant dense<0.000000e+00> : vector<8x288xf32>
    %25 = tpu.matmul %22, %24, %cst_25 {dimension_numbers = #tpu.dot_dimension_numbers<[1], [0], [0], [1], [0, 0, 1, 1], [], []>} : vector<8x8xf32>, vector<8x288xf32>, vector<8x288xf32> -> vector<8x288xf32>
    %26 = arith.addf %20, %25 : vector<8x288xf32>
    %c4 = arith.constant 4 : index
    %c0_26 = arith.constant 0 : index
    %c0_27 = arith.constant 0 : index
    %27 = vector.load %arg1[%c4, %c0_26, %c0_27] : memref<9x8x8xf32, #tpu.memory_space<vmem>>, vector<1x8x8xf32>
    %28 = vector.shape_cast %27 : vector<1x8x8xf32> to vector<8x8xf32>
    %c0_28 = arith.constant 0 : index
    %c0_29 = arith.constant 0 : index
    %c19 = arith.constant 19 : index
    %29 = vector.load %arg0[%c0_28, %c0_29, %c19] : memref<2x8x384xf32, #tpu.memory_space<vmem>>, vector<1x8x288xf32>
    %30 = vector.shape_cast %29 : vector<1x8x288xf32> to vector<8x288xf32>
    %cst_30 = arith.constant dense<0.000000e+00> : vector<8x288xf32>
    %31 = tpu.matmul %28, %30, %cst_30 {dimension_numbers = #tpu.dot_dimension_numbers<[1], [0], [0], [1], [0, 0, 1, 1], [], []>} : vector<8x8xf32>, vector<8x288xf32>, vector<8x288xf32> -> vector<8x288xf32>
    %32 = arith.addf %26, %31 : vector<8x288xf32>
    %c5 = arith.constant 5 : index
    %c0_31 = arith.constant 0 : index
    %c0_32 = arith.constant 0 : index
    %33 = vector.load %arg1[%c5, %c0_31, %c0_32] : memref<9x8x8xf32, #tpu.memory_space<vmem>>, vector<1x8x8xf32>
    %34 = vector.shape_cast %33 : vector<1x8x8xf32> to vector<8x8xf32>
    %c0_33 = arith.constant 0 : index
    %c0_34 = arith.constant 0 : index
    %c20 = arith.constant 20 : index
    %35 = vector.load %arg0[%c0_33, %c0_34, %c20] : memref<2x8x384xf32, #tpu.memory_space<vmem>>, vector<1x8x288xf32>
    %36 = vector.shape_cast %35 : vector<1x8x288xf32> to vector<8x288xf32>
    %cst_35 = arith.constant dense<0.000000e+00> : vector<8x288xf32>
    %37 = tpu.matmul %34, %36, %cst_35 {dimension_numbers = #tpu.dot_dimension_numbers<[1], [0], [0], [1], [0, 0, 1, 1], [], []>} : vector<8x8xf32>, vector<8x288xf32>, vector<8x288xf32> -> vector<8x288xf32>
    %38 = arith.addf %32, %37 : vector<8x288xf32>
    %c6 = arith.constant 6 : index
    %c0_36 = arith.constant 0 : index
    %c0_37 = arith.constant 0 : index
    %39 = vector.load %arg1[%c6, %c0_36, %c0_37] : memref<9x8x8xf32, #tpu.memory_space<vmem>>, vector<1x8x8xf32>
    %40 = vector.shape_cast %39 : vector<1x8x8xf32> to vector<8x8xf32>
    %c0_38 = arith.constant 0 : index
    %c0_39 = arith.constant 0 : index
    %c36 = arith.constant 36 : index
    %41 = vector.load %arg0[%c0_38, %c0_39, %c36] : memref<2x8x384xf32, #tpu.memory_space<vmem>>, vector<1x8x288xf32>
    %42 = vector.shape_cast %41 : vector<1x8x288xf32> to vector<8x288xf32>
    %cst_40 = arith.constant dense<0.000000e+00> : vector<8x288xf32>
    %43 = tpu.matmul %40, %42, %cst_40 {dimension_numbers = #tpu.dot_dimension_numbers<[1], [0], [0], [1], [0, 0, 1, 1], [], []>} : vector<8x8xf32>, vector<8x288xf32>, vector<8x288xf32> -> vector<8x288xf32>
    %44 = arith.addf %38, %43 : vector<8x288xf32>
    %c7 = arith.constant 7 : index
    %c0_41 = arith.constant 0 : index
    %c0_42 = arith.constant 0 : index
    %45 = vector.load %arg1[%c7, %c0_41, %c0_42] : memref<9x8x8xf32, #tpu.memory_space<vmem>>, vector<1x8x8xf32>
    %46 = vector.shape_cast %45 : vector<1x8x8xf32> to vector<8x8xf32>
    %c0_43 = arith.constant 0 : index
    %c0_44 = arith.constant 0 : index
    %c37 = arith.constant 37 : index
    %47 = vector.load %arg0[%c0_43, %c0_44, %c37] : memref<2x8x384xf32, #tpu.memory_space<vmem>>, vector<1x8x288xf32>
    %48 = vector.shape_cast %47 : vector<1x8x288xf32> to vector<8x288xf32>
    %cst_45 = arith.constant dense<0.000000e+00> : vector<8x288xf32>
    %49 = tpu.matmul %46, %48, %cst_45 {dimension_numbers = #tpu.dot_dimension_numbers<[1], [0], [0], [1], [0, 0, 1, 1], [], []>} : vector<8x8xf32>, vector<8x288xf32>, vector<8x288xf32> -> vector<8x288xf32>
    %50 = arith.addf %44, %49 : vector<8x288xf32>
    %c8 = arith.constant 8 : index
    %c0_46 = arith.constant 0 : index
    %c0_47 = arith.constant 0 : index
    %51 = vector.load %arg1[%c8, %c0_46, %c0_47] : memref<9x8x8xf32, #tpu.memory_space<vmem>>, vector<1x8x8xf32>
    %52 = vector.shape_cast %51 : vector<1x8x8xf32> to vector<8x8xf32>
    %c0_48 = arith.constant 0 : index
    %c0_49 = arith.constant 0 : index
    %c38 = arith.constant 38 : index
    %53 = vector.load %arg0[%c0_48, %c0_49, %c38] : memref<2x8x384xf32, #tpu.memory_space<vmem>>, vector<1x8x288xf32>
    %54 = vector.shape_cast %53 : vector<1x8x288xf32> to vector<8x288xf32>
    %cst_50 = arith.constant dense<0.000000e+00> : vector<8x288xf32>
    %55 = tpu.matmul %52, %54, %cst_50 {dimension_numbers = #tpu.dot_dimension_numbers<[1], [0], [0], [1], [0, 0, 1, 1], [], []>} : vector<8x8xf32>, vector<8x288xf32>, vector<8x288xf32> -> vector<8x288xf32>
    %56 = arith.addf %50, %55 : vector<8x288xf32>
    %c0_51 = arith.constant 0 : index
    %c0_52 = arith.constant 0 : index
    %c0_53 = arith.constant 0 : index
    %57 = vector.load %arg5[%c0_51, %c0_52, %c0_53] : memref<2x8x288xf32, #tpu.memory_space<vmem>>, vector<1x8x288xf32>
    %58 = vector.shape_cast %57 : vector<1x8x288xf32> to vector<8x288xf32>
    %59 = vector.shape_cast %56 : vector<8x288xf32> to vector<1x8x288xf32>
    tpu.vector_store %arg5[%c0_51, %c0_52, %c0_53], %59 {strides = array<i32>} : memref<2x8x288xf32, #tpu.memory_space<vmem>>, vector<1x8x288xf32>,
    %60 = vector.broadcast %0 : vector<1x288xf32> to vector<8x288xf32>
    %61 = arith.mulf %56, %60 : vector<8x288xf32>
    %cst_54 = arith.constant dense<0.000000e+00> : vector<8xf32>
    %62 = vector.multi_reduction <add>, %61, %cst_54 [1] : vector<8x288xf32> to vector<8xf32>
    %63 = vector.shape_cast %62 : vector<8xf32> to vector<8x1xf32>
    %64 = arith.addf %1, %63 : vector<8x1xf32>
    %cst_55 = arith.constant 0.000000e+00 : f32
    %65 = vector.broadcast %cst_55 : f32 to vector<8x288xf32>
    %c0_56 = arith.constant 0 : index
    %c0_57 = arith.constant 0 : index
    %c0_58 = arith.constant 0 : index
    %66 = vector.load %arg1[%c0_56, %c0_57, %c0_58] : memref<9x8x8xf32, #tpu.memory_space<vmem>>, vector<1x8x8xf32>
    %67 = vector.shape_cast %66 : vector<1x8x8xf32> to vector<8x8xf32>
    %c1_59 = arith.constant 1 : index
    %c0_60 = arith.constant 0 : index
    %c0_61 = arith.constant 0 : index
    %68 = vector.load %arg0[%c1_59, %c0_60, %c0_61] : memref<2x8x384xf32, #tpu.memory_space<vmem>>, vector<1x8x288xf32>
    %69 = vector.shape_cast %68 : vector<1x8x288xf32> to vector<8x288xf32>
    %cst_62 = arith.constant dense<0.000000e+00> : vector<8x288xf32>
    %70 = tpu.matmul %67, %69, %cst_62 {dimension_numbers = #tpu.dot_dimension_numbers<[1], [0], [0], [1], [0, 0, 1, 1], [], []>} : vector<8x8xf32>, vector<8x288xf32>, vector<8x288xf32> -> vector<8x288xf32>
    %71 = arith.addf %65, %70 : vector<8x288xf32>
    %c1_63 = arith.constant 1 : index
    %c0_64 = arith.constant 0 : index
    %c0_65 = arith.constant 0 : index
    %72 = vector.load %arg1[%c1_63, %c0_64, %c0_65] : memref<9x8x8xf32, #tpu.memory_space<vmem>>, vector<1x8x8xf32>
    %73 = vector.shape_cast %72 : vector<1x8x8xf32> to vector<8x8xf32>
    %c1_66 = arith.constant 1 : index
    %c0_67 = arith.constant 0 : index
    %c1_68 = arith.constant 1 : index
    %74 = vector.load %arg0[%c1_66, %c0_67, %c1_68] : memref<2x8x384xf32, #tpu.memory_space<vmem>>, vector<1x8x288xf32>
    %75 = vector.shape_cast %74 : vector<1x8x288xf32> to vector<8x288xf32>
    %cst_69 = arith.constant dense<0.000000e+00> : vector<8x288xf32>
    %76 = tpu.matmul %73, %75, %cst_69 {dimension_numbers = #tpu.dot_dimension_numbers<[1], [0], [0], [1], [0, 0, 1, 1], [], []>} : vector<8x8xf32>, vector<8x288xf32>, vector<8x288xf32> -> vector<8x288xf32>
    %77 = arith.addf %71, %76 : vector<8x288xf32>
    %c2_70 = arith.constant 2 : index
    %c0_71 = arith.constant 0 : index
    %c0_72 = arith.constant 0 : index
    %78 = vector.load %arg1[%c2_70, %c0_71, %c0_72] : memref<9x8x8xf32, #tpu.memory_space<vmem>>, vector<1x8x8xf32>
    %79 = vector.shape_cast %78 : vector<1x8x8xf32> to vector<8x8xf32>
    %c1_73 = arith.constant 1 : index
    %c0_74 = arith.constant 0 : index
    %c2_75 = arith.constant 2 : index
    %80 = vector.load %arg0[%c1_73, %c0_74, %c2_75] : memref<2x8x384xf32, #tpu.memory_space<vmem>>, vector<1x8x288xf32>
    %81 = vector.shape_cast %80 : vector<1x8x288xf32> to vector<8x288xf32>
    %cst_76 = arith.constant dense<0.000000e+00> : vector<8x288xf32>
    %82 = tpu.matmul %79, %81, %cst_76 {dimension_numbers = #tpu.dot_dimension_numbers<[1], [0], [0], [1], [0, 0, 1, 1], [], []>} : vector<8x8xf32>, vector<8x288xf32>, vector<8x288xf32> -> vector<8x288xf32>
    %83 = arith.addf %77, %82 : vector<8x288xf32>
    %c3_77 = arith.constant 3 : index
    %c0_78 = arith.constant 0 : index
    %c0_79 = arith.constant 0 : index
    %84 = vector.load %arg1[%c3_77, %c0_78, %c0_79] : memref<9x8x8xf32, #tpu.memory_space<vmem>>, vector<1x8x8xf32>
    %85 = vector.shape_cast %84 : vector<1x8x8xf32> to vector<8x8xf32>
    %c1_80 = arith.constant 1 : index
    %c0_81 = arith.constant 0 : index
    %c18_82 = arith.constant 18 : index
    %86 = vector.load %arg0[%c1_80, %c0_81, %c18_82] : memref<2x8x384xf32, #tpu.memory_space<vmem>>, vector<1x8x288xf32>
    %87 = vector.shape_cast %86 : vector<1x8x288xf32> to vector<8x288xf32>
    %cst_83 = arith.constant dense<0.000000e+00> : vector<8x288xf32>
    %88 = tpu.matmul %85, %87, %cst_83 {dimension_numbers = #tpu.dot_dimension_numbers<[1], [0], [0], [1], [0, 0, 1, 1], [], []>} : vector<8x8xf32>, vector<8x288xf32>, vector<8x288xf32> -> vector<8x288xf32>
    %89 = arith.addf %83, %88 : vector<8x288xf32>
    %c4_84 = arith.constant 4 : index
    %c0_85 = arith.constant 0 : index
    %c0_86 = arith.constant 0 : index
    %90 = vector.load %arg1[%c4_84, %c0_85, %c0_86] : memref<9x8x8xf32, #tpu.memory_space<vmem>>, vector<1x8x8xf32>
    %91 = vector.shape_cast %90 : vector<1x8x8xf32> to vector<8x8xf32>
    %c1_87 = arith.constant 1 : index
    %c0_88 = arith.constant 0 : index
    %c19_89 = arith.constant 19 : index
    %92 = vector.load %arg0[%c1_87, %c0_88, %c19_89] : memref<2x8x384xf32, #tpu.memory_space<vmem>>, vector<1x8x288xf32>
    %93 = vector.shape_cast %92 : vector<1x8x288xf32> to vector<8x288xf32>
    %cst_90 = arith.constant dense<0.000000e+00> : vector<8x288xf32>
    %94 = tpu.matmul %91, %93, %cst_90 {dimension_numbers = #tpu.dot_dimension_numbers<[1], [0], [0], [1], [0, 0, 1, 1], [], []>} : vector<8x8xf32>, vector<8x288xf32>, vector<8x288xf32> -> vector<8x288xf32>
    %95 = arith.addf %89, %94 : vector<8x288xf32>
    %c5_91 = arith.constant 5 : index
    %c0_92 = arith.constant 0 : index
    %c0_93 = arith.constant 0 : index
    %96 = vector.load %arg1[%c5_91, %c0_92, %c0_93] : memref<9x8x8xf32, #tpu.memory_space<vmem>>, vector<1x8x8xf32>
    %97 = vector.shape_cast %96 : vector<1x8x8xf32> to vector<8x8xf32>
    %c1_94 = arith.constant 1 : index
    %c0_95 = arith.constant 0 : index
    %c20_96 = arith.constant 20 : index
    %98 = vector.load %arg0[%c1_94, %c0_95, %c20_96] : memref<2x8x384xf32, #tpu.memory_space<vmem>>, vector<1x8x288xf32>
    %99 = vector.shape_cast %98 : vector<1x8x288xf32> to vector<8x288xf32>
    %cst_97 = arith.constant dense<0.000000e+00> : vector<8x288xf32>
    %100 = tpu.matmul %97, %99, %cst_97 {dimension_numbers = #tpu.dot_dimension_numbers<[1], [0], [0], [1], [0, 0, 1, 1], [], []>} : vector<8x8xf32>, vector<8x288xf32>, vector<8x288xf32> -> vector<8x288xf32>
    %101 = arith.addf %95, %100 : vector<8x288xf32>
    %c6_98 = arith.constant 6 : index
    %c0_99 = arith.constant 0 : index
    %c0_100 = arith.constant 0 : index
    %102 = vector.load %arg1[%c6_98, %c0_99, %c0_100] : memref<9x8x8xf32, #tpu.memory_space<vmem>>, vector<1x8x8xf32>
    %103 = vector.shape_cast %102 : vector<1x8x8xf32> to vector<8x8xf32>
    %c1_101 = arith.constant 1 : index
    %c0_102 = arith.constant 0 : index
    %c36_103 = arith.constant 36 : index
    %104 = vector.load %arg0[%c1_101, %c0_102, %c36_103] : memref<2x8x384xf32, #tpu.memory_space<vmem>>, vector<1x8x288xf32>
    %105 = vector.shape_cast %104 : vector<1x8x288xf32> to vector<8x288xf32>
    %cst_104 = arith.constant dense<0.000000e+00> : vector<8x288xf32>
    %106 = tpu.matmul %103, %105, %cst_104 {dimension_numbers = #tpu.dot_dimension_numbers<[1], [0], [0], [1], [0, 0, 1, 1], [], []>} : vector<8x8xf32>, vector<8x288xf32>, vector<8x288xf32> -> vector<8x288xf32>
    %107 = arith.addf %101, %106 : vector<8x288xf32>
    %c7_105 = arith.constant 7 : index
    %c0_106 = arith.constant 0 : index
    %c0_107 = arith.constant 0 : index
    %108 = vector.load %arg1[%c7_105, %c0_106, %c0_107] : memref<9x8x8xf32, #tpu.memory_space<vmem>>, vector<1x8x8xf32>
    %109 = vector.shape_cast %108 : vector<1x8x8xf32> to vector<8x8xf32>
    %c1_108 = arith.constant 1 : index
    %c0_109 = arith.constant 0 : index
    %c37_110 = arith.constant 37 : index
    %110 = vector.load %arg0[%c1_108, %c0_109, %c37_110] : memref<2x8x384xf32, #tpu.memory_space<vmem>>, vector<1x8x288xf32>
    %111 = vector.shape_cast %110 : vector<1x8x288xf32> to vector<8x288xf32>
    %cst_111 = arith.constant dense<0.000000e+00> : vector<8x288xf32>
    %112 = tpu.matmul %109, %111, %cst_111 {dimension_numbers = #tpu.dot_dimension_numbers<[1], [0], [0], [1], [0, 0, 1, 1], [], []>} : vector<8x8xf32>, vector<8x288xf32>, vector<8x288xf32> -> vector<8x288xf32>
    %113 = arith.addf %107, %112 : vector<8x288xf32>
    %c8_112 = arith.constant 8 : index
    %c0_113 = arith.constant 0 : index
    %c0_114 = arith.constant 0 : index
    %114 = vector.load %arg1[%c8_112, %c0_113, %c0_114] : memref<9x8x8xf32, #tpu.memory_space<vmem>>, vector<1x8x8xf32>
    %115 = vector.shape_cast %114 : vector<1x8x8xf32> to vector<8x8xf32>
    %c1_115 = arith.constant 1 : index
    %c0_116 = arith.constant 0 : index
    %c38_117 = arith.constant 38 : index
    %116 = vector.load %arg0[%c1_115, %c0_116, %c38_117] : memref<2x8x384xf32, #tpu.memory_space<vmem>>, vector<1x8x288xf32>
    %117 = vector.shape_cast %116 : vector<1x8x288xf32> to vector<8x288xf32>
    %cst_118 = arith.constant dense<0.000000e+00> : vector<8x288xf32>
    %118 = tpu.matmul %115, %117, %cst_118 {dimension_numbers = #tpu.dot_dimension_numbers<[1], [0], [0], [1], [0, 0, 1, 1], [], []>} : vector<8x8xf32>, vector<8x288xf32>, vector<8x288xf32> -> vector<8x288xf32>
    %119 = arith.addf %113, %118 : vector<8x288xf32>
    %c1_119 = arith.constant 1 : index
    %c0_120 = arith.constant 0 : index
    %c0_121 = arith.constant 0 : index
    %120 = vector.load %arg5[%c1_119, %c0_120, %c0_121] : memref<2x8x288xf32, #tpu.memory_space<vmem>>, vector<1x8x288xf32>
    %121 = vector.shape_cast %120 : vector<1x8x288xf32> to vector<8x288xf32>
    %122 = vector.shape_cast %119 : vector<8x288xf32> to vector<1x8x288xf32>
    tpu.vector_store %arg5[%c1_119, %c0_120, %c0_121], %122 {strides = array<i32>} : memref<2x8x288xf32, #tpu.memory_space<vmem>>, vector<1x8x288xf32>,
    %123 = vector.broadcast %0 : vector<1x288xf32> to vector<8x288xf32>
    %124 = arith.mulf %119, %123 : vector<8x288xf32>
    %cst_122 = arith.constant dense<0.000000e+00> : vector<8xf32>
    %125 = vector.multi_reduction <add>, %124, %cst_122 [1] : vector<8x288xf32> to vector<8xf32>
    %126 = vector.shape_cast %125 : vector<8xf32> to vector<8x1xf32>
    %127 = arith.addf %64, %126 : vector<8x1xf32>
    %cst_123 = arith.constant 0.001953125 : f32
    %128 = vector.broadcast %cst_123 : f32 to vector<8x1xf32>
    %129 = arith.mulf %127, %128 : vector<8x1xf32>
    %cst_124 = arith.constant 0.000000e+00 : f32
    %130 = vector.broadcast %cst_124 : f32 to vector<8x1xf32>
    %c0_125 = arith.constant 0 : index
    %c0_126 = arith.constant 0 : index
    %c0_127 = arith.constant 0 : index
    %131 = vector.load %arg5[%c0_125, %c0_126, %c0_127] : memref<2x8x288xf32, #tpu.memory_space<vmem>>, vector<1x8x288xf32>
    %132 = vector.shape_cast %131 : vector<1x8x288xf32> to vector<8x288xf32>
    %133 = vector.broadcast %129 : vector<8x1xf32> to vector<8x288xf32>
    %134 = arith.subf %132, %133 : vector<8x288xf32>
    %135 = vector.broadcast %0 : vector<1x288xf32> to vector<8x288xf32>
    %136 = arith.mulf %134, %135 : vector<8x288xf32>
    %137 = arith.mulf %136, %136 : vector<8x288xf32>
    %cst_128 = arith.constant dense<0.000000e+00> : vector<8xf32>
    %138 = vector.multi_reduction <add>, %137, %cst_128 [1] : vector<8x288xf32> to vector<8xf32>
    %139 = vector.shape_cast %138 : vector<8xf32> to vector<8x1xf32>
    %140 = arith.addf %130, %139 : vector<8x1xf32>
    %c1_129 = arith.constant 1 : index
    %c0_130 = arith.constant 0 : index
    %c0_131 = arith.constant 0 : index
    %141 = vector.load %arg5[%c1_129, %c0_130, %c0_131] : memref<2x8x288xf32, #tpu.memory_space<vmem>>, vector<1x8x288xf32>
    %142 = vector.shape_cast %141 : vector<1x8x288xf32> to vector<8x288xf32>
    %143 = vector.broadcast %129 : vector<8x1xf32> to vector<8x288xf32>
    %144 = arith.subf %142, %143 : vector<8x288xf32>
    %145 = vector.broadcast %0 : vector<1x288xf32> to vector<8x288xf32>
    %146 = arith.mulf %144, %145 : vector<8x288xf32>
    %147 = arith.mulf %146, %146 : vector<8x288xf32>
    %cst_132 = arith.constant dense<0.000000e+00> : vector<8xf32>
    %148 = vector.multi_reduction <add>, %147, %cst_132 [1] : vector<8x288xf32> to vector<8xf32>
    %149 = vector.shape_cast %148 : vector<8xf32> to vector<8x1xf32>
    %150 = arith.addf %140, %149 : vector<8x1xf32>
    %cst_133 = arith.constant 0.001953125 : f32
    %151 = vector.broadcast %cst_133 : f32 to vector<8x1xf32>
    %152 = arith.mulf %150, %151 : vector<8x1xf32>
    %cst_134 = arith.constant 9.99999974E-6 : f32
    %153 = vector.broadcast %cst_134 : f32 to vector<8x1xf32>
    %154 = arith.addf %152, %153 : vector<8x1xf32>
    %155 = math.rsqrt %154 : vector<8x1xf32>
    %c0_135 = arith.constant 0 : index
    %c0_136 = arith.constant 0 : index
    %156 = vector.load %arg2[%c0_135, %c0_136] : memref<8x1xf32, #tpu.memory_space<vmem>>, vector<8x1xf32>
    %157 = arith.mulf %156, %155 : vector<8x1xf32>
    %c0_137 = arith.constant 0 : index
    %c0_138 = arith.constant 0 : index
    %158 = vector.load %arg3[%c0_137, %c0_138] : memref<8x1xf32, #tpu.memory_space<vmem>>, vector<8x1xf32>
    %159 = arith.mulf %129, %157 : vector<8x1xf32>
    %160 = arith.subf %158, %159 : vector<8x1xf32>
    %c0_139 = arith.constant 0 : index
    %c0_140 = arith.constant 0 : index
    %c0_141 = arith.constant 0 : index
    %161 = vector.load %arg5[%c0_139, %c0_140, %c0_141] : memref<2x8x288xf32, #tpu.memory_space<vmem>>, vector<1x8x288xf32>
    %162 = vector.shape_cast %161 : vector<1x8x288xf32> to vector<8x288xf32>
    %163 = vector.broadcast %157 : vector<8x1xf32> to vector<8x288xf32>
    %164 = arith.mulf %162, %163 : vector<8x288xf32>
    %165 = vector.broadcast %160 : vector<8x1xf32> to vector<8x288xf32>
    %166 = arith.addf %164, %165 : vector<8x288xf32>
    %cst_142 = arith.constant 0.000000e+00 : f32
    %167 = vector.broadcast %cst_142 : f32 to vector<8x288xf32>
    %168 = arith.maximumf %166, %167 : vector<8x288xf32>
    %c0_143 = arith.constant 0 : index
    %c0_144 = arith.constant 0 : index
    %c0_145 = arith.constant 0 : index
    %169 = vector.load %arg5[%c0_143, %c0_144, %c0_145] : memref<2x8x288xf32, #tpu.memory_space<vmem>>, vector<1x8x288xf32>
    %170 = vector.shape_cast %169 : vector<1x8x288xf32> to vector<8x288xf32>
    %171 = vector.shape_cast %168 : vector<8x288xf32> to vector<1x8x288xf32>
    tpu.vector_store %arg5[%c0_143, %c0_144, %c0_145], %171 {strides = array<i32>} : memref<2x8x288xf32, #tpu.memory_space<vmem>>, vector<1x8x288xf32>,
    %c1_146 = arith.constant 1 : index
    %c0_147 = arith.constant 0 : index
    %c0_148 = arith.constant 0 : index
    %172 = vector.load %arg5[%c1_146, %c0_147, %c0_148] : memref<2x8x288xf32, #tpu.memory_space<vmem>>, vector<1x8x288xf32>
    %173 = vector.shape_cast %172 : vector<1x8x288xf32> to vector<8x288xf32>
    %174 = vector.broadcast %157 : vector<8x1xf32> to vector<8x288xf32>
    %175 = arith.mulf %173, %174 : vector<8x288xf32>
    %176 = vector.broadcast %160 : vector<8x1xf32> to vector<8x288xf32>
    %177 = arith.addf %175, %176 : vector<8x288xf32>
    %cst_149 = arith.constant 0.000000e+00 : f32
    %178 = vector.broadcast %cst_149 : f32 to vector<8x288xf32>
    %179 = arith.maximumf %177, %178 : vector<8x288xf32>
    %c1_150 = arith.constant 1 : index
    %c0_151 = arith.constant 0 : index
    %c0_152 = arith.constant 0 : index
    %180 = vector.load %arg5[%c1_150, %c0_151, %c0_152] : memref<2x8x288xf32, #tpu.memory_space<vmem>>, vector<1x8x288xf32>
    %181 = vector.shape_cast %180 : vector<1x8x288xf32> to vector<8x288xf32>
    %182 = vector.shape_cast %179 : vector<8x288xf32> to vector<1x8x288xf32>
    tpu.vector_store %arg5[%c1_150, %c0_151, %c0_152], %182 {strides = array<i32>} : memref<2x8x288xf32, #tpu.memory_space<vmem>>, vector<1x8x288xf32>,
    return
  }
}

</mosaic_0001>

<llo_original>
// kernel: tpu_custom_call.1
$region0: #{tpu_custom_call.1}
  #allocation0 [shape = 'u32[]', space=smem, size = 0x4, offset = 0x4, fixed_abs, tag = 'smem constant byte address 0x4 - core index']
  #allocation1 [shape = 'u32[144,128]{1,0:T(1,128)}', space=vmem, size = 0x12000, scoped, tag = 'internal scratch']
  %s0 = inlined_call_operand.vmem [shape: f32[2,8,384], index: 0, kind: input, shape index: {}]
  %s1 = inlined_call_operand.vmem [shape: f32[9,8,8], index: 1, kind: input, shape index: {}]
  %s2 = inlined_call_operand.vmem [shape: f32[8,1], index: 2, kind: input, shape index: {}]
  %s3 = inlined_call_operand.vmem [shape: f32[8,1], index: 3, kind: input, shape index: {}]
  %s4 = inlined_call_operand.vmem [shape: f32[1,288], index: 4, kind: input, shape index: {}]
  %s5 = inlined_call_operand.hbm [shape: f32[2,8,288], index: 5, kind: output, shape index: {}]
  %s6 = sld [smem:[#allocation0]]
  $region30: #{tpu_custom_call.1} parent=0
    _
  %s8 = ssub.s32 1, %s6
  %s9 = scalar_select 0, %s8, %s6
  $region1: #{tpu_custom_call.1} parent=0
    #allocation2 [shape = 'u8[24576]{0}', space=vmem, size = 0x6000, scoped, tag = 'output window, operand 0, single buffered']
    #allocation3 [shape = 's32[1]{0}', space=sflag, size = 0x4, scoped, tag = 'scoped memory for tpu_custom_call.1']
    %10 = vsyncpa [#allocation3], 0
    // Predicated region
    $region2: #{tpu_custom_call.1} parent=1 // pred_check
      _
    $region3: #{tpu_custom_call.1} parent=1 // pred_check_branch
      %12 = sbr.rel (0) target = $region5
    $region4: #{tpu_custom_call.1} parent=1 // pred_region
      _
    $region5: #{tpu_custom_call.1} parent=1 // pred_fallthru
      _
    // Predicated region
    $region6: #{tpu_custom_call.1} parent=1 // pred_check
      _
    $region7: #{tpu_custom_call.1} parent=1 // pred_check_branch
      %14 = sbr.rel (0) target = $region9
    $region8: #{tpu_custom_call.1} parent=1 // pred_region
      _
    $region9: #{tpu_custom_call.1} parent=1 // pred_fallthru
      _
    // Predicated region
    $region10: #{tpu_custom_call.1} parent=1 // pred_check
      _
    $region11: #{tpu_custom_call.1} parent=1 // pred_check_branch
      %16 = sbr.rel (0) target = $region13
    $region12: #{tpu_custom_call.1} parent=1 // pred_region
      _
    $region13: #{tpu_custom_call.1} parent=1 // pred_fallthru
      _
    // Predicated region
    $region14: #{tpu_custom_call.1} parent=1 // pred_check
      _
    $region15: #{tpu_custom_call.1} parent=1 // pred_check_branch
      %18 = sbr.rel (0) target = $region17
    $region16: #{tpu_custom_call.1} parent=1 // pred_region
      _
    $region17: #{tpu_custom_call.1} parent=1 // pred_fallthru
      _
    // Predicated region
    $region18: #{tpu_custom_call.1} parent=1 // pred_check
      _
    $region19: #{tpu_custom_call.1} parent=1 // pred_check_branch
      %20 = sbr.rel (0) target = $region21
    $region20: #{tpu_custom_call.1} parent=1 // pred_region
      _
    $region21: #{tpu_custom_call.1} parent=1 // pred_fallthru
      _
    %v21 = vld [vmem:[%s4] sm:$0x7]
    %v22 = vld [vmem:[%s1] sm:$0xff]
    %v23 = vld [vmem:[%s0] sm:$0xff]
    %v24 = vld [vmem:[%s0 + $0x8] sm:$0xff]
    %v25 = vld [vmem:[%s0 + $0x10] sm:$0xff]
    %s26 = scalar_lea.vmem %s1, 8
    %v27 = vld [vmem:[%s26] sm:$0xff]
    %31 = vrot.lane.b32.xlu0 %v23, 127
    %v32 = vpop.permute.xlu0 %31
    %33 = vrot.lane.b32.xlu0 %v24, 127
    %v34 = vpop.permute.xlu0 %33
    %35 = vrot.lane.b32.xlu0 %v25, 127
    %v36 = vpop.permute.xlu0 %35
    %vm37 = vcmask 1039360
    %v38 = vsel %vm37, %v32, %v34
    %v39 = vsel %vm37, %v34, %v36
    %vm43 = vcmask 64512
    %v45 = vsel %vm43, %v27, 0
    %47 = vmatprep.subr.mxu0 %v39
    %48 = vmatpush1.msra.mxu0 %v38
    %49 = vmatprep.subr.mxu0 0.0
    %50 = vmatpush1.msra.mxu0 0.0
    %51 = vmatprep.subr.mxu0 0.0
    %52 = vmatpush1.msra.mxu0 0.0
    %53 = vmatprep.subr.mxu0 0.0
    %54 = vmatpush1.msra.mxu0 0.0
    %55 = vmatprep.subr.mxu0 0.0
    %56 = vmatpush1.msra.mxu0 0.0
    %57 = vmatprep.subr.mxu0 0.0
    %58 = vmatpush1.msra.mxu0 0.0
    %59 = vmatprep.subr.mxu0 0.0
    %60 = vmatpush1.msra.mxu0 0.0
    %61 = vmatprep.subr.mxu0 0.0
    %62 = vmatpush1.msra.mxu0 0.0
    %63 = vmatprep.subr.mxu0 0.0
    %64 = vmatpush1.msra.mxu0 0.0
    %65 = vmatprep.subr.mxu0 0.0
    %66 = vmatpush1.msra.mxu0 0.0
    %67 = vmatprep.subr.mxu0 0.0
    %68 = vmatpush1.msra.mxu0 0.0
    %69 = vmatprep.subr.mxu0 0.0
    %70 = vmatpush1.msra.mxu0 0.0
    %71 = vmatprep.subr.mxu0 0.0
    %72 = vmatpush1.msra.mxu0 0.0
    %73 = vmatprep.subr.mxu0 0.0
    %74 = vmatpush1.msra.mxu0 0.0
    %75 = vmatprep.subr.mxu0 0.0
    %76 = vmatpush1.msra.mxu0 0.0
    %77 = vmatprep.subr.mxu0 0.0
    %78 = vmatpush1.msra.mxu0 0.0
    %79 = vmatprep.subr.mxu0 0.0
    %80 = vmatpush1.msra.mxu0 0.0
    %81 = vmatprep.subr.mxu0 0.0
    %82 = vmatpush1.msra.mxu0 0.0
    %83 = vmatprep.subr.mxu0 0.0
    %84 = vmatpush1.msra.mxu0 0.0
    %85 = vmatprep.subr.mxu0 0.0
    %86 = vmatpush1.msra.mxu0 0.0
    %87 = vmatprep.subr.mxu0 0.0
    %88 = vmatpush1.msra.mxu0 0.0
    %89 = vmatprep.subr.mxu0 0.0
    %90 = vmatpush1.msra.mxu0 0.0
    %91 = vmatprep.subr.mxu0 0.0
    %92 = vmatpush1.msra.mxu0 0.0
    %93 = vmatprep.subr.mxu0 0.0
    %94 = vmatpush1.msra.mxu0 0.0
    %95 = vmatprep.subr.mxu0 0.0
    %96 = vmatpush1.msra.mxu0 0.0
    %97 = vmatprep.subr.mxu0 0.0
    %98 = vmatpush1.msra.mxu0 0.0
    %99 = vmatprep.subr.mxu0 0.0
    %100 = vmatpush1.msra.mxu0 0.0
    %101 = vmatprep.subr.mxu0 0.0
    %102 = vmatpush1.msra.mxu0 0.0
    %103 = vmatprep.subr.mxu0 0.0
    %104 = vmatpush1.msra.mxu0 0.0
    %105 = vmatprep.subr.mxu0 0.0
    %106 = vmatpush1.msra.mxu0 0.0
    %107 = vmatprep.subr.mxu0 0.0
    %108 = vmatpush1.msra.mxu0 0.0
    %109 = vmatprep.subr.mxu0 0.0
    %110 = vmatpush1.msra.mxu0 0.0
    %111 = vmatprep.mubr.f32.mxu0 0.0
    %112 = vmatmul.mubr.f32.gmra.mrb[0].mxu0 %v45
    %v113 = vpop.f32.mrb[0].mxu0
    %v114 = vadd.f32 0.0, %v113
    %v115 = vpop.f32.mrb[0].mxu0
    %v116 = vadd.f32 0.0, %v115
    %117 = vdwg.mxu0
    %118 = vmatprep.subr.mxu0 0.0
    %119 = vmatpush1.msra.mxu0 %v36
    %120 = vmatprep.subr.mxu0 0.0
    %121 = vmatpush1.msra.mxu0 0.0
    %122 = vmatprep.subr.mxu0 0.0
    %123 = vmatpush1.msra.mxu0 0.0
    %124 = vmatprep.subr.mxu0 0.0
    %125 = vmatpush1.msra.mxu0 0.0
    %126 = vmatprep.subr.mxu0 0.0
    %127 = vmatpush1.msra.mxu0 0.0
    %128 = vmatprep.subr.mxu0 0.0
    %129 = vmatpush1.msra.mxu0 0.0
    %130 = vmatprep.subr.mxu0 0.0
    %131 = vmatpush1.msra.mxu0 0.0
    %132 = vmatprep.subr.mxu0 0.0
    %133 = vmatpush1.msra.mxu0 0.0
    %134 = vmatprep.subr.mxu0 0.0
    %135 = vmatpush1.msra.mxu0 0.0
    %136 = vmatprep.subr.mxu0 0.0
    %137 = vmatpush1.msra.mxu0 0.0
    %138 = vmatprep.subr.mxu0 0.0
    %139 = vmatpush1.msra.mxu0 0.0
    %140 = vmatprep.subr.mxu0 0.0
    %141 = vmatpush1.msra.mxu0 0.0
    %142 = vmatprep.subr.mxu0 0.0
    %143 = vmatpush1.msra.mxu0 0.0
    %144 = vmatprep.subr.mxu0 0.0
    %145 = vmatpush1.msra.mxu0 0.0
    %146 = vmatprep.subr.mxu0 0.0
    %147 = vmatpush1.msra.mxu0 0.0
    %148 = vmatprep.subr.mxu0 0.0
    %149 = vmatpush1.msra.mxu0 0.0
    %150 = vmatprep.subr.mxu0 0.0
    %151 = vmatpush1.msra.mxu0 0.0
    %152 = vmatprep.subr.mxu0 0.0
    %153 = vmatpush1.msra.mxu0 0.0
    %154 = vmatprep.subr.mxu0 0.0
    %155 = vmatpush1.msra.mxu0 0.0
    %156 = vmatprep.subr.mxu0 0.0
    %157 = vmatpush1.msra.mxu0 0.0
    %158 = vmatprep.subr.mxu0 0.0
    %159 = vmatpush1.msra.mxu0 0.0
    %160 = vmatprep.subr.mxu0 0.0
    %161 = vmatpush1.msra.mxu0 0.0
    %162 = vmatprep.subr.mxu0 0.0
    %163 = vmatpush1.msra.mxu0 0.0
    %164 = vmatprep.subr.mxu0 0.0
    %165 = vmatpush1.msra.mxu0 0.0
    %166 = vmatprep.subr.mxu0 0.0
    %167 = vmatpush1.msra.mxu0 0.0
    %168 = vmatprep.subr.mxu0 0.0
    %169 = vmatpush1.msra.mxu0 0.0
    %170 = vmatprep.subr.mxu0 0.0
    %171 = vmatpush1.msra.mxu0 0.0
    %172 = vmatprep.subr.mxu0 0.0
    %173 = vmatpush1.msra.mxu0 0.0
    %174 = vmatprep.subr.mxu0 0.0
    %175 = vmatpush1.msra.mxu0 0.0
    %176 = vmatprep.subr.mxu0 0.0
    %177 = vmatpush1.msra.mxu0 0.0
    %178 = vmatprep.subr.mxu0 0.0
    %179 = vmatpush1.msra.mxu0 0.0
    %180 = vmatprep.subr.mxu0 0.0
    %181 = vmatpush1.msra.mxu0 0.0
    %182 = vmatprep.mubr.f32.mxu0 0.0
    %183 = vmatmul.mubr.f32.gmra.mrb[0].mxu0 %v45
    %v184 = vpop.f32.mrb[0].mxu0
    %v185 = vadd.f32 0.0, %v184
    %v186 = vpop.f32.mrb[0].mxu0
    %187 = vdwg.mxu0
    %v189 = vsel %vm43, %v22, 0
    %191 = vmatprep.subr.mxu0 %v24
    %192 = vmatpush1.msra.mxu0 %v23
    %193 = vmatprep.subr.mxu0 0.0
    %194 = vmatpush1.msra.mxu0 0.0
    %195 = vmatprep.subr.mxu0 0.0
    %196 = vmatpush1.msra.mxu0 0.0
    %197 = vmatprep.subr.mxu0 0.0
    %198 = vmatpush1.msra.mxu0 0.0
    %199 = vmatprep.subr.mxu0 0.0
    %200 = vmatpush1.msra.mxu0 0.0
    %201 = vmatprep.subr.mxu0 0.0
    %202 = vmatpush1.msra.mxu0 0.0
    %203 = vmatprep.subr.mxu0 0.0
    %204 = vmatpush1.msra.mxu0 0.0
    %205 = vmatprep.subr.mxu0 0.0
    %206 = vmatpush1.msra.mxu0 0.0
    %207 = vmatprep.subr.mxu0 0.0
    %208 = vmatpush1.msra.mxu0 0.0
    %209 = vmatprep.subr.mxu0 0.0
    %210 = vmatpush1.msra.mxu0 0.0
    %211 = vmatprep.subr.mxu0 0.0
    %212 = vmatpush1.msra.mxu0 0.0
    %213 = vmatprep.subr.mxu0 0.0
    %214 = vmatpush1.msra.mxu0 0.0
    %215 = vmatprep.subr.mxu0 0.0
    %216 = vmatpush1.msra.mxu0 0.0
    %217 = vmatprep.subr.mxu0 0.0
    %218 = vmatpush1.msra.mxu0 0.0
    %219 = vmatprep.subr.mxu0 0.0
    %220 = vmatpush1.msra.mxu0 0.0
    %221 = vmatprep.subr.mxu0 0.0
    %222 = vmatpush1.msra.mxu0 0.0
    %223 = vmatprep.subr.mxu0 0.0
    %224 = vmatpush1.msra.mxu0 0.0
    %225 = vmatprep.subr.mxu0 0.0
    %226 = vmatpush1.msra.mxu0 0.0
    %227 = vmatprep.subr.mxu0 0.0
    %228 = vmatpush1.msra.mxu0 0.0
    %229 = vmatprep.subr.mxu0 0.0
    %230 = vmatpush1.msra.mxu0 0.0
    %231 = vmatprep.subr.mxu0 0.0
    %232 = vmatpush1.msra.mxu0 0.0
    %233 = vmatprep.subr.mxu0 0.0
    %234 = vmatpush1.msra.mxu0 0.0
    %235 = vmatprep.subr.mxu0 0.0
    %236 = vmatpush1.msra.mxu0 0.0
    %237 = vmatprep.subr.mxu0 0.0
    %238 = vmatpush1.msra.mxu0 0.0
    %239 = vmatprep.subr.mxu0 0.0
    %240 = vmatpush1.msra.mxu0 0.0
    %241 = vmatprep.subr.mxu0 0.0
    %242 = vmatpush1.msra.mxu0 0.0
    %243 = vmatprep.subr.mxu0 0.0
    %244 = vmatpush1.msra.mxu0 0.0
    %245 = vmatprep.subr.mxu0 0.0
    %246 = vmatpush1.msra.mxu0 0.0
    %247 = vmatprep.subr.mxu0 0.0
    %248 = vmatpush1.msra.mxu0 0.0
    %249 = vmatprep.subr.mxu0 0.0
    %250 = vmatpush1.msra.mxu0 0.0
    %251 = vmatprep.subr.mxu0 0.0
    %252 = vmatpush1.msra.mxu0 0.0
    %253 = vmatprep.subr.mxu0 0.0
    %254 = vmatpush1.msra.mxu0 0.0
    %255 = vmatprep.mubr.f32.mxu0 0.0
    %256 = vmatmul.mubr.f32.gmra.mrb[0].mxu0 %v189
    %v257 = vpop.f32.mrb[0].mxu0
    %v258 = vadd.f32 %v114, %v257
    %v259 = vpop.f32.mrb[0].mxu0
    %v260 = vadd.f32 %v116, %v259
    %261 = vdwg.mxu0
    %262 = vmatprep.subr.mxu0 0.0
    %263 = vmatpush1.msra.mxu0 %v25
    %264 = vmatprep.subr.mxu0 0.0
    %265 = vmatpush1.msra.mxu0 0.0
    %266 = vmatprep.subr.mxu0 0.0
    %267 = vmatpush1.msra.mxu0 0.0
    %268 = vmatprep.subr.mxu0 0.0
    %269 = vmatpush1.msra.mxu0 0.0
    %270 = vmatprep.subr.mxu0 0.0
    %271 = vmatpush1.msra.mxu0 0.0
    %272 = vmatprep.subr.mxu0 0.0
    %273 = vmatpush1.msra.mxu0 0.0
    %274 = vmatprep.subr.mxu0 0.0
    %275 = vmatpush1.msra.mxu0 0.0
    %276 = vmatprep.subr.mxu0 0.0
    %277 = vmatpush1.msra.mxu0 0.0
    %278 = vmatprep.subr.mxu0 0.0
    %279 = vmatpush1.msra.mxu0 0.0
    %280 = vmatprep.subr.mxu0 0.0
    %281 = vmatpush1.msra.mxu0 0.0
    %282 = vmatprep.subr.mxu0 0.0
    %283 = vmatpush1.msra.mxu0 0.0
    %284 = vmatprep.subr.mxu0 0.0
    %285 = vmatpush1.msra.mxu0 0.0
    %286 = vmatprep.subr.mxu0 0.0
    %287 = vmatpush1.msra.mxu0 0.0
    %288 = vmatprep.subr.mxu0 0.0
    %289 = vmatpush1.msra.mxu0 0.0
    %290 = vmatprep.subr.mxu0 0.0
    %291 = vmatpush1.msra.mxu0 0.0
    %292 = vmatprep.subr.mxu0 0.0
    %293 = vmatpush1.msra.mxu0 0.0
    %294 = vmatprep.subr.mxu0 0.0
    %295 = vmatpush1.msra.mxu0 0.0
    %296 = vmatprep.subr.mxu0 0.0
    %297 = vmatpush1.msra.mxu0 0.0
    %298 = vmatprep.subr.mxu0 0.0
    %299 = vmatpush1.msra.mxu0 0.0
    %300 = vmatprep.subr.mxu0 0.0
    %301 = vmatpush1.msra.mxu0 0.0
    %302 = vmatprep.subr.mxu0 0.0
    %303 = vmatpush1.msra.mxu0 0.0
    %304 = vmatprep.subr.mxu0 0.0
    %305 = vmatpush1.msra.mxu0 0.0
    %306 = vmatprep.subr.mxu0 0.0
    %307 = vmatpush1.msra.mxu0 0.0
    %308 = vmatprep.subr.mxu0 0.0
    %309 = vmatpush1.msra.mxu0 0.0
    %310 = vmatprep.subr.mxu0 0.0
    %311 = vmatpush1.msra.mxu0 0.0
    %312 = vmatprep.subr.mxu0 0.0
    %313 = vmatpush1.msra.mxu0 0.0
    %314 = vmatprep.subr.mxu0 0.0
    %315 = vmatpush1.msra.mxu0 0.0
    %316 = vmatprep.subr.mxu0 0.0
    %317 = vmatpush1.msra.mxu0 0.0
    %318 = vmatprep.subr.mxu0 0.0
    %319 = vmatpush1.msra.mxu0 0.0
    %320 = vmatprep.subr.mxu0 0.0
    %321 = vmatpush1.msra.mxu0 0.0
    %322 = vmatprep.subr.mxu0 0.0
    %323 = vmatpush1.msra.mxu0 0.0
    %324 = vmatprep.subr.mxu0 0.0
    %325 = vmatpush1.msra.mxu0 0.0
    %326 = vmatprep.mubr.f32.mxu0 0.0
    %327 = vmatmul.mubr.f32.gmra.mrb[0].mxu0 %v189
    %v328 = vpop.f32.mrb[0].mxu0
    %v329 = vadd.f32 %v185, %v328
    %v330 = vpop.f32.mrb[0].mxu0
    %331 = vdwg.mxu0
    %s332 = scalar_lea.vmem %s1, 16
    %v333 = vld [vmem:[%s332] sm:$0xff]
    %334 = vrot.lane.b32.xlu0 %v23, 126
    %v335 = vpop.permute.xlu0 %334
    %336 = vrot.lane.b32.xlu0 %v24, 126
    %v337 = vpop.permute.xlu0 %336
    %338 = vrot.lane.b32.xlu0 %v25, 126
    %v339 = vpop.permute.xlu0 %338
    %vm340 = vcmask 1031168
    %v341 = vsel %vm340, %v335, %v337
    %v342 = vsel %vm340, %v337, %v339
    %v347 = vsel %vm43, %v333, 0
    %349 = vmatprep.subr.mxu0 %v342
    %350 = vmatpush1.msra.mxu0 %v341
    %351 = vmatprep.subr.mxu0 0.0
    %352 = vmatpush1.msra.mxu0 0.0
    %353 = vmatprep.subr.mxu0 0.0
    %354 = vmatpush1.msra.mxu0 0.0
    %355 = vmatprep.subr.mxu0 0.0
    %356 = vmatpush1.msra.mxu0 0.0
    %357 = vmatprep.subr.mxu0 0.0
    %358 = vmatpush1.msra.mxu0 0.0
    %359 = vmatprep.subr.mxu0 0.0
    %360 = vmatpush1.msra.mxu0 0.0
    %361 = vmatprep.subr.mxu0 0.0
    %362 = vmatpush1.msra.mxu0 0.0
    %363 = vmatprep.subr.mxu0 0.0
    %364 = vmatpush1.msra.mxu0 0.0
    %365 = vmatprep.subr.mxu0 0.0
    %366 = vmatpush1.msra.mxu0 0.0
    %367 = vmatprep.subr.mxu0 0.0
    %368 = vmatpush1.msra.mxu0 0.0
    %369 = vmatprep.subr.mxu0 0.0
    %370 = vmatpush1.msra.mxu0 0.0
    %371 = vmatprep.subr.mxu0 0.0
    %372 = vmatpush1.msra.mxu0 0.0
    %373 = vmatprep.subr.mxu0 0.0
    %374 = vmatpush1.msra.mxu0 0.0
    %375 = vmatprep.subr.mxu0 0.0
    %376 = vmatpush1.msra.mxu0 0.0
    %377 = vmatprep.subr.mxu0 0.0
    %378 = vmatpush1.msra.mxu0 0.0
    %379 = vmatprep.subr.mxu0 0.0
    %380 = vmatpush1.msra.mxu0 0.0
    %381 = vmatprep.subr.mxu0 0.0
    %382 = vmatpush1.msra.mxu0 0.0
    %383 = vmatprep.subr.mxu0 0.0
    %384 = vmatpush1.msra.mxu0 0.0
    %385 = vmatprep.subr.mxu0 0.0
    %386 = vmatpush1.msra.mxu0 0.0
    %387 = vmatprep.subr.mxu0 0.0
    %388 = vmatpush1.msra.mxu0 0.0
    %389 = vmatprep.subr.mxu0 0.0
    %390 = vmatpush1.msra.mxu0 0.0
    %391 = vmatprep.subr.mxu0 0.0
    %392 = vmatpush1.msra.mxu0 0.0
    %393 = vmatprep.subr.mxu0 0.0
    %394 = vmatpush1.msra.mxu0 0.0
    %395 = vmatprep.subr.mxu0 0.0
    %396 = vmatpush1.msra.mxu0 0.0
    %397 = vmatprep.subr.mxu0 0.0
    %398 = vmatpush1.msra.mxu0 0.0
    %399 = vmatprep.subr.mxu0 0.0
    %400 = vmatpush1.msra.mxu0 0.0
    %401 = vmatprep.subr.mxu0 0.0
    %402 = vmatpush1.msra.mxu0 0.0
    %403 = vmatprep.subr.mxu0 0.0
    %404 = vmatpush1.msra.mxu0 0.0
    %405 = vmatprep.subr.mxu0 0.0
    %406 = vmatpush1.msra.mxu0 0.0
    %407 = vmatprep.subr.mxu0 0.0
    %408 = vmatpush1.msra.mxu0 0.0
    %409 = vmatprep.subr.mxu0 0.0
    %410 = vmatpush1.msra.mxu0 0.0
    %411 = vmatprep.subr.mxu0 0.0
    %412 = vmatpush1.msra.mxu0 0.0
    %413 = vmatprep.mubr.f32.mxu0 0.0
    %414 = vmatmul.mubr.f32.gmra.mrb[0].mxu0 %v347
    %v415 = vpop.f32.mrb[0].mxu0
    %v416 = vadd.f32 0.0, %v415
    %v417 = vpop.f32.mrb[0].mxu0
    %v418 = vadd.f32 0.0, %v417
    %419 = vdwg.mxu0
    %420 = vmatprep.subr.mxu0 0.0
    %421 = vmatpush1.msra.mxu0 %v339
    %422 = vmatprep.subr.mxu0 0.0
    %423 = vmatpush1.msra.mxu0 0.0
    %424 = vmatprep.subr.mxu0 0.0
    %425 = vmatpush1.msra.mxu0 0.0
    %426 = vmatprep.subr.mxu0 0.0
    %427 = vmatpush1.msra.mxu0 0.0
    %428 = vmatprep.subr.mxu0 0.0
    %429 = vmatpush1.msra.mxu0 0.0
    %430 = vmatprep.subr.mxu0 0.0
    %431 = vmatpush1.msra.mxu0 0.0
    %432 = vmatprep.subr.mxu0 0.0
    %433 = vmatpush1.msra.mxu0 0.0
    %434 = vmatprep.subr.mxu0 0.0
    %435 = vmatpush1.msra.mxu0 0.0
    %436 = vmatprep.subr.mxu0 0.0
    %437 = vmatpush1.msra.mxu0 0.0
    %438 = vmatprep.subr.mxu0 0.0
    %439 = vmatpush1.msra.mxu0 0.0
    %440 = vmatprep.subr.mxu0 0.0
    %441 = vmatpush1.msra.mxu0 0.0
    %442 = vmatprep.subr.mxu0 0.0
    %443 = vmatpush1.msra.mxu0 0.0
    %444 = vmatprep.subr.mxu0 0.0
    %445 = vmatpush1.msra.mxu0 0.0
    %446 = vmatprep.subr.mxu0 0.0
    %447 = vmatpush1.msra.mxu0 0.0
    %448 = vmatprep.subr.mxu0 0.0
    %449 = vmatpush1.msra.mxu0 0.0
    %450 = vmatprep.subr.mxu0 0.0
    %451 = vmatpush1.msra.mxu0 0.0
    %452 = vmatprep.subr.mxu0 0.0
    %453 = vmatpush1.msra.mxu0 0.0
    %454 = vmatprep.subr.mxu0 0.0
    %455 = vmatpush1.msra.mxu0 0.0
    %456 = vmatprep.subr.mxu0 0.0
    %457 = vmatpush1.msra.mxu0 0.0
    %458 = vmatprep.subr.mxu0 0.0
    %459 = vmatpush1.msra.mxu0 0.0
    %460 = vmatprep.subr.mxu0 0.0
    %461 = vmatpush1.msra.mxu0 0.0
    %462 = vmatprep.subr.mxu0 0.0
    %463 = vmatpush1.msra.mxu0 0.0
    %464 = vmatprep.subr.mxu0 0.0
    %465 = vmatpush1.msra.mxu0 0.0
    %466 = vmatprep.subr.mxu0 0.0
    %467 = vmatpush1.msra.mxu0 0.0
    %468 = vmatprep.subr.mxu0 0.0
    %469 = vmatpush1.msra.mxu0 0.0
    %470 = vmatprep.subr.mxu0 0.0
    %471 = vmatpush1.msra.mxu0 0.0
    %472 = vmatprep.subr.mxu0 0.0
    %473 = vmatpush1.msra.mxu0 0.0
    %474 = vmatprep.subr.mxu0 0.0
    %475 = vmatpush1.msra.mxu0 0.0
    %476 = vmatprep.subr.mxu0 0.0
    %477 = vmatpush1.msra.mxu0 0.0
    %478 = vmatprep.subr.mxu0 0.0
    %479 = vmatpush1.msra.mxu0 0.0
    %480 = vmatprep.subr.mxu0 0.0
    %481 = vmatpush1.msra.mxu0 0.0
    %482 = vmatprep.subr.mxu0 0.0
    %483 = vmatpush1.msra.mxu0 0.0
    %484 = vmatprep.mubr.f32.mxu0 0.0
    %485 = vmatmul.mubr.f32.gmra.mrb[0].mxu0 %v347
    %v486 = vpop.f32.mrb[0].mxu0
    %v487 = vadd.f32 0.0, %v486
    %v488 = vpop.f32.mrb[0].mxu0
    %489 = vdwg.mxu0
    %v490 = vadd.f32 %v258, %v416
    %v491 = vadd.f32 %v260, %v418
    %v492 = vadd.f32 %v329, %v487
    %s493 = scalar_lea.vmem %s1, 24
    %v494 = vld [vmem:[%s493] sm:$0xff]
    %495 = vrot.lane.b32.xlu0 %v23, 110
    %v496 = vpop.permute.xlu0 %495
    %497 = vrot.lane.b32.xlu0 %v24, 110
    %v498 = vpop.permute.xlu0 %497
    %499 = vrot.lane.b32.xlu0 %v25, 110
    %v500 = vpop.permute.xlu0 %499
    %vm501 = vcmask 900096
    %v502 = vsel %vm501, %v496, %v498
    %v503 = vsel %vm501, %v498, %v500
    %v508 = vsel %vm43, %v494, 0
    %510 = vmatprep.subr.mxu0 %v503
    %511 = vmatpush1.msra.mxu0 %v502
    %512 = vmatprep.subr.mxu0 0.0
    %513 = vmatpush1.msra.mxu0 0.0
    %514 = vmatprep.subr.mxu0 0.0
    %515 = vmatpush1.msra.mxu0 0.0
    %516 = vmatprep.subr.mxu0 0.0
    %517 = vmatpush1.msra.mxu0 0.0
    %518 = vmatprep.subr.mxu0 0.0
    %519 = vmatpush1.msra.mxu0 0.0
    %520 = vmatprep.subr.mxu0 0.0
    %521 = vmatpush1.msra.mxu0 0.0
    %522 = vmatprep.subr.mxu0 0.0
    %523 = vmatpush1.msra.mxu0 0.0
    %524 = vmatprep.subr.mxu0 0.0
    %525 = vmatpush1.msra.mxu0 0.0
    %526 = vmatprep.subr.mxu0 0.0
    %527 = vmatpush1.msra.mxu0 0.0
    %528 = vmatprep.subr.mxu0 0.0
    %529 = vmatpush1.msra.mxu0 0.0
    %530 = vmatprep.subr.mxu0 0.0
    %531 = vmatpush1.msra.mxu0 0.0
    %532 = vmatprep.subr.mxu0 0.0
    %533 = vmatpush1.msra.mxu0 0.0
    %534 = vmatprep.subr.mxu0 0.0
    %535 = vmatpush1.msra.mxu0 0.0
    %536 = vmatprep.subr.mxu0 0.0
    %537 = vmatpush1.msra.mxu0 0.0
    %538 = vmatprep.subr.mxu0 0.0
    %539 = vmatpush1.msra.mxu0 0.0
    %540 = vmatprep.subr.mxu0 0.0
    %541 = vmatpush1.msra.mxu0 0.0
    %542 = vmatprep.subr.mxu0 0.0
    %543 = vmatpush1.msra.mxu0 0.0
    %544 = vmatprep.subr.mxu0 0.0
    %545 = vmatpush1.msra.mxu0 0.0
    %546 = vmatprep.subr.mxu0 0.0
    %547 = vmatpush1.msra.mxu0 0.0
    %548 = vmatprep.subr.mxu0 0.0
    %549 = vmatpush1.msra.mxu0 0.0
    %550 = vmatprep.subr.mxu0 0.0
    %551 = vmatpush1.msra.mxu0 0.0
    %552 = vmatprep.subr.mxu0 0.0
    %553 = vmatpush1.msra.mxu0 0.0
    %554 = vmatprep.subr.mxu0 0.0
    %555 = vmatpush1.msra.mxu0 0.0
    %556 = vmatprep.subr.mxu0 0.0
    %557 = vmatpush1.msra.mxu0 0.0
    %558 = vmatprep.subr.mxu0 0.0
    %559 = vmatpush1.msra.mxu0 0.0
    %560 = vmatprep.subr.mxu0 0.0
    %561 = vmatpush1.msra.mxu0 0.0
    %562 = vmatprep.subr.mxu0 0.0
    %563 = vmatpush1.msra.mxu0 0.0
    %564 = vmatprep.subr.mxu0 0.0
    %565 = vmatpush1.msra.mxu0 0.0
    %566 = vmatprep.subr.mxu0 0.0
    %567 = vmatpush1.msra.mxu0 0.0
    %568 = vmatprep.subr.mxu0 0.0
    %569 = vmatpush1.msra.mxu0 0.0
    %570 = vmatprep.subr.mxu0 0.0
    %571 = vmatpush1.msra.mxu0 0.0
    %572 = vmatprep.subr.mxu0 0.0
    %573 = vmatpush1.msra.mxu0 0.0
    %574 = vmatprep.mubr.f32.mxu0 0.0
    %575 = vmatmul.mubr.f32.gmra.mrb[0].mxu0 %v508
    %v576 = vpop.f32.mrb[0].mxu0
    %v577 = vadd.f32 0.0, %v576
    %v578 = vpop.f32.mrb[0].mxu0
    %v579 = vadd.f32 0.0, %v578
    %580 = vdwg.mxu0
    %581 = vmatprep.subr.mxu0 0.0
    %582 = vmatpush1.msra.mxu0 %v500
    %583 = vmatprep.subr.mxu0 0.0
    %584 = vmatpush1.msra.mxu0 0.0
    %585 = vmatprep.subr.mxu0 0.0
    %586 = vmatpush1.msra.mxu0 0.0
    %587 = vmatprep.subr.mxu0 0.0
    %588 = vmatpush1.msra.mxu0 0.0
    %589 = vmatprep.subr.mxu0 0.0
    %590 = vmatpush1.msra.mxu0 0.0
    %591 = vmatprep.subr.mxu0 0.0
    %592 = vmatpush1.msra.mxu0 0.0
    %593 = vmatprep.subr.mxu0 0.0
    %594 = vmatpush1.msra.mxu0 0.0
    %595 = vmatprep.subr.mxu0 0.0
    %596 = vmatpush1.msra.mxu0 0.0
    %597 = vmatprep.subr.mxu0 0.0
    %598 = vmatpush1.msra.mxu0 0.0
    %599 = vmatprep.subr.mxu0 0.0
    %600 = vmatpush1.msra.mxu0 0.0
    %601 = vmatprep.subr.mxu0 0.0
    %602 = vmatpush1.msra.mxu0 0.0
    %603 = vmatprep.subr.mxu0 0.0
    %604 = vmatpush1.msra.mxu0 0.0
    %605 = vmatprep.subr.mxu0 0.0
    %606 = vmatpush1.msra.mxu0 0.0
    %607 = vmatprep.subr.mxu0 0.0
    %608 = vmatpush1.msra.mxu0 0.0
    %609 = vmatprep.subr.mxu0 0.0
    %610 = vmatpush1.msra.mxu0 0.0
    %611 = vmatprep.subr.mxu0 0.0
    %612 = vmatpush1.msra.mxu0 0.0
    %613 = vmatprep.subr.mxu0 0.0
    %614 = vmatpush1.msra.mxu0 0.0
    %615 = vmatprep.subr.mxu0 0.0
    %616 = vmatpush1.msra.mxu0 0.0
    %617 = vmatprep.subr.mxu0 0.0
    %618 = vmatpush1.msra.mxu0 0.0
    %619 = vmatprep.subr.mxu0 0.0
    %620 = vmatpush1.msra.mxu0 0.0
    %621 = vmatprep.subr.mxu0 0.0
    %622 = vmatpush1.msra.mxu0 0.0
    %623 = vmatprep.subr.mxu0 0.0
    %624 = vmatpush1.msra.mxu0 0.0
    %625 = vmatprep.subr.mxu0 0.0
    %626 = vmatpush1.msra.mxu0 0.0
    %627 = vmatprep.subr.mxu0 0.0
    %628 = vmatpush1.msra.mxu0 0.0
    %629 = vmatprep.subr.mxu0 0.0
    %630 = vmatpush1.msra.mxu0 0.0
    %631 = vmatprep.subr.mxu0 0.0
    %632 = vmatpush1.msra.mxu0 0.0
    %633 = vmatprep.subr.mxu0 0.0
    %634 = vmatpush1.msra.mxu0 0.0
    %635 = vmatprep.subr.mxu0 0.0
    %636 = vmatpush1.msra.mxu0 0.0
    %637 = vmatprep.subr.mxu0 0.0
    %638 = vmatpush1.msra.mxu0 0.0
    %639 = vmatprep.subr.mxu0 0.0
    %640 = vmatpush1.msra.mxu0 0.0
    %641 = vmatprep.subr.mxu0 0.0
    %642 = vmatpush1.msra.mxu0 0.0
    %643 = vmatprep.subr.mxu0 0.0
    %644 = vmatpush1.msra.mxu0 0.0
    %645 = vmatprep.mubr.f32.mxu0 0.0
    %646 = vmatmul.mubr.f32.gmra.mrb[0].mxu0 %v508
    %v647 = vpop.f32.mrb[0].mxu0
    %v648 = vadd.f32 0.0, %v647
    %v649 = vpop.f32.mrb[0].mxu0
    %650 = vdwg.mxu0
    %v651 = vadd.f32 %v490, %v577
    %v652 = vadd.f32 %v491, %v579
    %v653 = vadd.f32 %v492, %v648
    %s654 = scalar_lea.vmem %s1, 32
    %v655 = vld [vmem:[%s654] sm:$0xff]
    %656 = vrot.lane.b32.xlu0 %v23, 109
    %v657 = vpop.permute.xlu0 %656
    %658 = vrot.lane.b32.xlu0 %v24, 109
    %v659 = vpop.permute.xlu0 %658
    %660 = vrot.lane.b32.xlu0 %v25, 109
    %v661 = vpop.permute.xlu0 %660
    %vm662 = vcmask 891904
    %v663 = vsel %vm662, %v657, %v659
    %v664 = vsel %vm662, %v659, %v661
    %v669 = vsel %vm43, %v655, 0
    %671 = vmatprep.subr.mxu0 %v664
    %672 = vmatpush1.msra.mxu0 %v663
    %673 = vmatprep.subr.mxu0 0.0
    %674 = vmatpush1.msra.mxu0 0.0
    %675 = vmatprep.subr.mxu0 0.0
    %676 = vmatpush1.msra.mxu0 0.0
    %677 = vmatprep.subr.mxu0 0.0
    %678 = vmatpush1.msra.mxu0 0.0
    %679 = vmatprep.subr.mxu0 0.0
    %680 = vmatpush1.msra.mxu0 0.0
    %681 = vmatprep.subr.mxu0 0.0
    %682 = vmatpush1.msra.mxu0 0.0
    %683 = vmatprep.subr.mxu0 0.0
    %684 = vmatpush1.msra.mxu0 0.0
    %685 = vmatprep.subr.mxu0 0.0
    %686 = vmatpush1.msra.mxu0 0.0
    %687 = vmatprep.subr.mxu0 0.0
    %688 = vmatpush1.msra.mxu0 0.0
    %689 = vmatprep.subr.mxu0 0.0
    %690 = vmatpush1.msra.mxu0 0.0
    %691 = vmatprep.subr.mxu0 0.0
    %692 = vmatpush1.msra.mxu0 0.0
    %693 = vmatprep.subr.mxu0 0.0
    %694 = vmatpush1.msra.mxu0 0.0
    %695 = vmatprep.subr.mxu0 0.0
    %696 = vmatpush1.msra.mxu0 0.0
    %697 = vmatprep.subr.mxu0 0.0
    %698 = vmatpush1.msra.mxu0 0.0
    %699 = vmatprep.subr.mxu0 0.0
    %700 = vmatpush1.msra.mxu0 0.0
    %701 = vmatprep.subr.mxu0 0.0
    %702 = vmatpush1.msra.mxu0 0.0
    %703 = vmatprep.subr.mxu0 0.0
    %704 = vmatpush1.msra.mxu0 0.0
    %705 = vmatprep.subr.mxu0 0.0
    %706 = vmatpush1.msra.mxu0 0.0
    %707 = vmatprep.subr.mxu0 0.0
    %708 = vmatpush1.msra.mxu0 0.0
    %709 = vmatprep.subr.mxu0 0.0
    %710 = vmatpush1.msra.mxu0 0.0
    %711 = vmatprep.subr.mxu0 0.0
    %712 = vmatpush1.msra.mxu0 0.0
    %713 = vmatprep.subr.mxu0 0.0
    %714 = vmatpush1.msra.mxu0 0.0
    %715 = vmatprep.subr.mxu0 0.0
    %716 = vmatpush1.msra.mxu0 0.0
    %717 = vmatprep.subr.mxu0 0.0
    %718 = vmatpush1.msra.mxu0 0.0
    %719 = vmatprep.subr.mxu0 0.0
    %720 = vmatpush1.msra.mxu0 0.0
    %721 = vmatprep.subr.mxu0 0.0
    %722 = vmatpush1.msra.mxu0 0.0
    %723 = vmatprep.subr.mxu0 0.0
    %724 = vmatpush1.msra.mxu0 0.0
    %725 = vmatprep.subr.mxu0 0.0
    %726 = vmatpush1.msra.mxu0 0.0
    %727 = vmatprep.subr.mxu0 0.0
    %728 = vmatpush1.msra.mxu0 0.0
    %729 = vmatprep.subr.mxu0 0.0
    %730 = vmatpush1.msra.mxu0 0.0
    %731 = vmatprep.subr.mxu0 0.0
    %732 = vmatpush1.msra.mxu0 0.0
    %733 = vmatprep.subr.mxu0 0.0
    %734 = vmatpush1.msra.mxu0 0.0
    %735 = vmatprep.mubr.f32.mxu0 0.0
    %736 = vmatmul.mubr.f32.gmra.mrb[0].mxu0 %v669
    %v737 = vpop.f32.mrb[0].mxu0
    %v738 = vadd.f32 0.0, %v737
    %v739 = vpop.f32.mrb[0].mxu0
    %v740 = vadd.f32 0.0, %v739
    %741 = vdwg.mxu0
    %742 = vmatprep.subr.mxu0 0.0
    %743 = vmatpush1.msra.mxu0 %v661
    %744 = vmatprep.subr.mxu0 0.0
    %745 = vmatpush1.msra.mxu0 0.0
    %746 = vmatprep.subr.mxu0 0.0
    %747 = vmatpush1.msra.mxu0 0.0
    %748 = vmatprep.subr.mxu0 0.0
    %749 = vmatpush1.msra.mxu0 0.0
    %750 = vmatprep.subr.mxu0 0.0
    %751 = vmatpush1.msra.mxu0 0.0
    %752 = vmatprep.subr.mxu0 0.0
    %753 = vmatpush1.msra.mxu0 0.0
    %754 = vmatprep.subr.mxu0 0.0
    %755 = vmatpush1.msra.mxu0 0.0
    %756 = vmatprep.subr.mxu0 0.0
    %757 = vmatpush1.msra.mxu0 0.0
    %758 = vmatprep.subr.mxu0 0.0
    %759 = vmatpush1.msra.mxu0 0.0
    %760 = vmatprep.subr.mxu0 0.0
    %761 = vmatpush1.msra.mxu0 0.0
    %762 = vmatprep.subr.mxu0 0.0
    %763 = vmatpush1.msra.mxu0 0.0
    %764 = vmatprep.subr.mxu0 0.0
    %765 = vmatpush1.msra.mxu0 0.0
    %766 = vmatprep.subr.mxu0 0.0
    %767 = vmatpush1.msra.mxu0 0.0
    %768 = vmatprep.subr.mxu0 0.0
    %769 = vmatpush1.msra.mxu0 0.0
    %770 = vmatprep.subr.mxu0 0.0
    %771 = vmatpush1.msra.mxu0 0.0
    %772 = vmatprep.subr.mxu0 0.0
    %773 = vmatpush1.msra.mxu0 0.0
    %774 = vmatprep.subr.mxu0 0.0
    %775 = vmatpush1.msra.mxu0 0.0
    %776 = vmatprep.subr.mxu0 0.0
    %777 = vmatpush1.msra.mxu0 0.0
    %778 = vmatprep.subr.mxu0 0.0
    %779 = vmatpush1.msra.mxu0 0.0
    %780 = vmatprep.subr.mxu0 0.0
    %781 = vmatpush1.msra.mxu0 0.0
    %782 = vmatprep.subr.mxu0 0.0
    %783 = vmatpush1.msra.mxu0 0.0
    %784 = vmatprep.subr.mxu0 0.0
    %785 = vmatpush1.msra.mxu0 0.0
    %786 = vmatprep.subr.mxu0 0.0
    %787 = vmatpush1.msra.mxu0 0.0
    %788 = vmatprep.subr.mxu0 0.0
    %789 = vmatpush1.msra.mxu0 0.0
    %790 = vmatprep.subr.mxu0 0.0
    %791 = vmatpush1.msra.mxu0 0.0
    %792 = vmatprep.subr.mxu0 0.0
    %793 = vmatpush1.msra.mxu0 0.0
    %794 = vmatprep.subr.mxu0 0.0
    %795 = vmatpush1.msra.mxu0 0.0
    %796 = vmatprep.subr.mxu0 0.0
    %797 = vmatpush1.msra.mxu0 0.0
    %798 = vmatprep.subr.mxu0 0.0
    %799 = vmatpush1.msra.mxu0 0.0
    %800 = vmatprep.subr.mxu0 0.0
    %801 = vmatpush1.msra.mxu0 0.0
    %802 = vmatprep.subr.mxu0 0.0
    %803 = vmatpush1.msra.mxu0 0.0
    %804 = vmatprep.subr.mxu0 0.0
    %805 = vmatpush1.msra.mxu0 0.0
    %806 = vmatprep.mubr.f32.mxu0 0.0
    %807 = vmatmul.mubr.f32.gmra.mrb[0].mxu0 %v669
    %v808 = vpop.f32.mrb[0].mxu0
    %v809 = vadd.f32 0.0, %v808
    %v810 = vpop.f32.mrb[0].mxu0
    %811 = vdwg.mxu0
    %v812 = vadd.f32 %v651, %v738
    %v813 = vadd.f32 %v652, %v740
    %v814 = vadd.f32 %v653, %v809
    %s815 = scalar_lea.vmem %s1, 40
    %v816 = vld [vmem:[%s815] sm:$0xff]
    %817 = vrot.lane.b32.xlu0 %v23, 108
    %v818 = vpop.permute.xlu0 %817
    %819 = vrot.lane.b32.xlu0 %v24, 108
    %v820 = vpop.permute.xlu0 %819
    %821 = vrot.lane.b32.xlu0 %v25, 108
    %v822 = vpop.permute.xlu0 %821
    %vm823 = vcmask 883712
    %v824 = vsel %vm823, %v818, %v820
    %v825 = vsel %vm823, %v820, %v822
    %v830 = vsel %vm43, %v816, 0
    %832 = vmatprep.subr.mxu0 %v825
    %833 = vmatpush1.msra.mxu0 %v824
    %834 = vmatprep.subr.mxu0 0.0
    %835 = vmatpush1.msra.mxu0 0.0
    %836 = vmatprep.subr.mxu0 0.0
    %837 = vmatpush1.msra.mxu0 0.0
    %838 = vmatprep.subr.mxu0 0.0
    %839 = vmatpush1.msra.mxu0 0.0
    %840 = vmatprep.subr.mxu0 0.0
    %841 = vmatpush1.msra.mxu0 0.0
    %842 = vmatprep.subr.mxu0 0.0
    %843 = vmatpush1.msra.mxu0 0.0
    %844 = vmatprep.subr.mxu0 0.0
    %845 = vmatpush1.msra.mxu0 0.0
    %846 = vmatprep.subr.mxu0 0.0
    %847 = vmatpush1.msra.mxu0 0.0
    %848 = vmatprep.subr.mxu0 0.0
    %849 = vmatpush1.msra.mxu0 0.0
    %850 = vmatprep.subr.mxu0 0.0
    %851 = vmatpush1.msra.mxu0 0.0
    %852 = vmatprep.subr.mxu0 0.0
    %853 = vmatpush1.msra.mxu0 0.0
    %854 = vmatprep.subr.mxu0 0.0
    %855 = vmatpush1.msra.mxu0 0.0
    %856 = vmatprep.subr.mxu0 0.0
    %857 = vmatpush1.msra.mxu0 0.0
    %858 = vmatprep.subr.mxu0 0.0
    %859 = vmatpush1.msra.mxu0 0.0
    %860 = vmatprep.subr.mxu0 0.0
    %861 = vmatpush1.msra.mxu0 0.0
    %862 = vmatprep.subr.mxu0 0.0
    %863 = vmatpush1.msra.mxu0 0.0
    %864 = vmatprep.subr.mxu0 0.0
    %865 = vmatpush1.msra.mxu0 0.0
    %866 = vmatprep.subr.mxu0 0.0
    %867 = vmatpush1.msra.mxu0 0.0
    %868 = vmatprep.subr.mxu0 0.0
    %869 = vmatpush1.msra.mxu0 0.0
    %870 = vmatprep.subr.mxu0 0.0
    %871 = vmatpush1.msra.mxu0 0.0
    %872 = vmatprep.subr.mxu0 0.0
    %873 = vmatpush1.msra.mxu0 0.0
    %874 = vmatprep.subr.mxu0 0.0
    %875 = vmatpush1.msra.mxu0 0.0
    %876 = vmatprep.subr.mxu0 0.0
    %877 = vmatpush1.msra.mxu0 0.0
    %878 = vmatprep.subr.mxu0 0.0
    %879 = vmatpush1.msra.mxu0 0.0
    %880 = vmatprep.subr.mxu0 0.0
    %881 = vmatpush1.msra.mxu0 0.0
    %882 = vmatprep.subr.mxu0 0.0
    %883 = vmatpush1.msra.mxu0 0.0
    %884 = vmatprep.subr.mxu0 0.0
    %885 = vmatpush1.msra.mxu0 0.0
    %886 = vmatprep.subr.mxu0 0.0
    %887 = vmatpush1.msra.mxu0 0.0
    %888 = vmatprep.subr.mxu0 0.0
    %889 = vmatpush1.msra.mxu0 0.0
    %890 = vmatprep.subr.mxu0 0.0
    %891 = vmatpush1.msra.mxu0 0.0
    %892 = vmatprep.subr.mxu0 0.0
    %893 = vmatpush1.msra.mxu0 0.0
    %894 = vmatprep.subr.mxu0 0.0
    %895 = vmatpush1.msra.mxu0 0.0
    %896 = vmatprep.mubr.f32.mxu0 0.0
    %897 = vmatmul.mubr.f32.gmra.mrb[0].mxu0 %v830
    %v898 = vpop.f32.mrb[0].mxu0
    %v899 = vadd.f32 0.0, %v898
    %v900 = vpop.f32.mrb[0].mxu0
    %v901 = vadd.f32 0.0, %v900
    %902 = vdwg.mxu0
    %903 = vmatprep.subr.mxu0 0.0
    %904 = vmatpush1.msra.mxu0 %v822
    %905 = vmatprep.subr.mxu0 0.0
    %906 = vmatpush1.msra.mxu0 0.0
    %907 = vmatprep.subr.mxu0 0.0
    %908 = vmatpush1.msra.mxu0 0.0
    %909 = vmatprep.subr.mxu0 0.0
    %910 = vmatpush1.msra.mxu0 0.0
    %911 = vmatprep.subr.mxu0 0.0
    %912 = vmatpush1.msra.mxu0 0.0
    %913 = vmatprep.subr.mxu0 0.0
    %914 = vmatpush1.msra.mxu0 0.0
    %915 = vmatprep.subr.mxu0 0.0
    %916 = vmatpush1.msra.mxu0 0.0
    %917 = vmatprep.subr.mxu0 0.0
    %918 = vmatpush1.msra.mxu0 0.0
    %919 = vmatprep.subr.mxu0 0.0
    %920 = vmatpush1.msra.mxu0 0.0
    %921 = vmatprep.subr.mxu0 0.0
    %922 = vmatpush1.msra.mxu0 0.0
    %923 = vmatprep.subr.mxu0 0.0
    %924 = vmatpush1.msra.mxu0 0.0
    %925 = vmatprep.subr.mxu0 0.0
    %926 = vmatpush1.msra.mxu0 0.0
    %927 = vmatprep.subr.mxu0 0.0
    %928 = vmatpush1.msra.mxu0 0.0
    %929 = vmatprep.subr.mxu0 0.0
    %930 = vmatpush1.msra.mxu0 0.0
    %931 = vmatprep.subr.mxu0 0.0
    %932 = vmatpush1.msra.mxu0 0.0
    %933 = vmatprep.subr.mxu0 0.0
    %934 = vmatpush1.msra.mxu0 0.0
    %935 = vmatprep.subr.mxu0 0.0
    %936 = vmatpush1.msra.mxu0 0.0
    %937 = vmatprep.subr.mxu0 0.0
    %938 = vmatpush1.msra.mxu0 0.0
    %939 = vmatprep.subr.mxu0 0.0
    %940 = vmatpush1.msra.mxu0 0.0
    %941 = vmatprep.subr.mxu0 0.0
    %942 = vmatpush1.msra.mxu0 0.0
    %943 = vmatprep.subr.mxu0 0.0
    %944 = vmatpush1.msra.mxu0 0.0
    %945 = vmatprep.subr.mxu0 0.0
    %946 = vmatpush1.msra.mxu0 0.0
    %947 = vmatprep.subr.mxu0 0.0
    %948 = vmatpush1.msra.mxu0 0.0
    %949 = vmatprep.subr.mxu0 0.0
    %950 = vmatpush1.msra.mxu0 0.0
    %951 = vmatprep.subr.mxu0 0.0
    %952 = vmatpush1.msra.mxu0 0.0
    %953 = vmatprep.subr.mxu0 0.0
    %954 = vmatpush1.msra.mxu0 0.0
    %955 = vmatprep.subr.mxu0 0.0
    %956 = vmatpush1.msra.mxu0 0.0
    %957 = vmatprep.subr.mxu0 0.0
    %958 = vmatpush1.msra.mxu0 0.0
    %959 = vmatprep.subr.mxu0 0.0
    %960 = vmatpush1.msra.mxu0 0.0
    %961 = vmatprep.subr.mxu0 0.0
    %962 = vmatpush1.msra.mxu0 0.0
    %963 = vmatprep.subr.mxu0 0.0
    %964 = vmatpush1.msra.mxu0 0.0
    %965 = vmatprep.subr.mxu0 0.0
    %966 = vmatpush1.msra.mxu0 0.0
    %967 = vmatprep.mubr.f32.mxu0 0.0
    %968 = vmatmul.mubr.f32.gmra.mrb[0].mxu0 %v830
    %v969 = vpop.f32.mrb[0].mxu0
    %v970 = vadd.f32 0.0, %v969
    %v971 = vpop.f32.mrb[0].mxu0
    %972 = vdwg.mxu0
    %v973 = vadd.f32 %v812, %v899
    %v974 = vadd.f32 %v813, %v901
    %v975 = vadd.f32 %v814, %v970
    %s976 = scalar_lea.vmem %s1, 48
    %v977 = vld [vmem:[%s976] sm:$0xff]
    %978 = vrot.lane.b32.xlu0 %v23, 92
    %v979 = vpop.permute.xlu0 %978
    %980 = vrot.lane.b32.xlu0 %v24, 92
    %v981 = vpop.permute.xlu0 %980
    %982 = vrot.lane.b32.xlu0 %v25, 92
    %v983 = vpop.permute.xlu0 %982
    %vm984 = vcmask 752640
    %v985 = vsel %vm984, %v979, %v981
    %v986 = vsel %vm984, %v981, %v983
    %v991 = vsel %vm43, %v977, 0
    %993 = vmatprep.subr.mxu0 %v986
    %994 = vmatpush1.msra.mxu0 %v985
    %995 = vmatprep.subr.mxu0 0.0
    %996 = vmatpush1.msra.mxu0 0.0
    %997 = vmatprep.subr.mxu0 0.0
    %998 = vmatpush1.msra.mxu0 0.0
    %999 = vmatprep.subr.mxu0 0.0
    %1000 = vmatpush1.msra.mxu0 0.0
    %1001 = vmatprep.subr.mxu0 0.0
    %1002 = vmatpush1.msra.mxu0 0.0
    %1003 = vmatprep.subr.mxu0 0.0
    %1004 = vmatpush1.msra.mxu0 0.0
    %1005 = vmatprep.subr.mxu0 0.0
    %1006 = vmatpush1.msra.mxu0 0.0
    %1007 = vmatprep.subr.mxu0 0.0
    %1008 = vmatpush1.msra.mxu0 0.0
    %1009 = vmatprep.subr.mxu0 0.0
    %1010 = vmatpush1.msra.mxu0 0.0
    %1011 = vmatprep.subr.mxu0 0.0
    %1012 = vmatpush1.msra.mxu0 0.0
    %1013 = vmatprep.subr.mxu0 0.0
    %1014 = vmatpush1.msra.mxu0 0.0
    %1015 = vmatprep.subr.mxu0 0.0
    %1016 = vmatpush1.msra.mxu0 0.0
    %1017 = vmatprep.subr.mxu0 0.0
    %1018 = vmatpush1.msra.mxu0 0.0
    %1019 = vmatprep.subr.mxu0 0.0
    %1020 = vmatpush1.msra.mxu0 0.0
    %1021 = vmatprep.subr.mxu0 0.0
    %1022 = vmatpush1.msra.mxu0 0.0
    %1023 = vmatprep.subr.mxu0 0.0
    %1024 = vmatpush1.msra.mxu0 0.0
    %1025 = vmatprep.subr.mxu0 0.0
    %1026 = vmatpush1.msra.mxu0 0.0
    %1027 = vmatprep.subr.mxu0 0.0
    %1028 = vmatpush1.msra.mxu0 0.0
    %1029 = vmatprep.subr.mxu0 0.0
    %1030 = vmatpush1.msra.mxu0 0.0
    %1031 = vmatprep.subr.mxu0 0.0
    %1032 = vmatpush1.msra.mxu0 0.0
    %1033 = vmatprep.subr.mxu0 0.0
    %1034 = vmatpush1.msra.mxu0 0.0
    %1035 = vmatprep.subr.mxu0 0.0
    %1036 = vmatpush1.msra.mxu0 0.0
    %1037 = vmatprep.subr.mxu0 0.0
    %1038 = vmatpush1.msra.mxu0 0.0
    %1039 = vmatprep.subr.mxu0 0.0
    %1040 = vmatpush1.msra.mxu0 0.0
    %1041 = vmatprep.subr.mxu0 0.0
    %1042 = vmatpush1.msra.mxu0 0.0
    %1043 = vmatprep.subr.mxu0 0.0
    %1044 = vmatpush1.msra.mxu0 0.0
    %1045 = vmatprep.subr.mxu0 0.0
    %1046 = vmatpush1.msra.mxu0 0.0
    %1047 = vmatprep.subr.mxu0 0.0
    %1048 = vmatpush1.msra.mxu0 0.0
    %1049 = vmatprep.subr.mxu0 0.0
    %1050 = vmatpush1.msra.mxu0 0.0
    %1051 = vmatprep.subr.mxu0 0.0
    %1052 = vmatpush1.msra.mxu0 0.0
    %1053 = vmatprep.subr.mxu0 0.0
    %1054 = vmatpush1.msra.mxu0 0.0
    %1055 = vmatprep.subr.mxu0 0.0
    %1056 = vmatpush1.msra.mxu0 0.0
    %1057 = vmatprep.mubr.f32.mxu0 0.0
    %1058 = vmatmul.mubr.f32.gmra.mrb[0].mxu0 %v991
    %v1059 = vpop.f32.mrb[0].mxu0
    %v1060 = vadd.f32 0.0, %v1059
    %v1061 = vpop.f32.mrb[0].mxu0
    %v1062 = vadd.f32 0.0, %v1061
    %1063 = vdwg.mxu0
    %1064 = vmatprep.subr.mxu0 0.0
    %1065 = vmatpush1.msra.mxu0 %v983
    %1066 = vmatprep.subr.mxu0 0.0
    %1067 = vmatpush1.msra.mxu0 0.0
    %1068 = vmatprep.subr.mxu0 0.0
    %1069 = vmatpush1.msra.mxu0 0.0
    %1070 = vmatprep.subr.mxu0 0.0
    %1071 = vmatpush1.msra.mxu0 0.0
    %1072 = vmatprep.subr.mxu0 0.0
    %1073 = vmatpush1.msra.mxu0 0.0
    %1074 = vmatprep.subr.mxu0 0.0
    %1075 = vmatpush1.msra.mxu0 0.0
    %1076 = vmatprep.subr.mxu0 0.0
    %1077 = vmatpush1.msra.mxu0 0.0
    %1078 = vmatprep.subr.mxu0 0.0
    %1079 = vmatpush1.msra.mxu0 0.0
    %1080 = vmatprep.subr.mxu0 0.0
    %1081 = vmatpush1.msra.mxu0 0.0
    %1082 = vmatprep.subr.mxu0 0.0
    %1083 = vmatpush1.msra.mxu0 0.0
    %1084 = vmatprep.subr.mxu0 0.0
    %1085 = vmatpush1.msra.mxu0 0.0
    %1086 = vmatprep.subr.mxu0 0.0
    %1087 = vmatpush1.msra.mxu0 0.0
    %1088 = vmatprep.subr.mxu0 0.0
    %1089 = vmatpush1.msra.mxu0 0.0
    %1090 = vmatprep.subr.mxu0 0.0
    %1091 = vmatpush1.msra.mxu0 0.0
    %1092 = vmatprep.subr.mxu0 0.0
    %1093 = vmatpush1.msra.mxu0 0.0
    %1094 = vmatprep.subr.mxu0 0.0
    %1095 = vmatpush1.msra.mxu0 0.0
    %1096 = vmatprep.subr.mxu0 0.0
    %1097 = vmatpush1.msra.mxu0 0.0
    %1098 = vmatprep.subr.mxu0 0.0
    %1099 = vmatpush1.msra.mxu0 0.0
    %1100 = vmatprep.subr.mxu0 0.0
    %1101 = vmatpush1.msra.mxu0 0.0
    %1102 = vmatprep.subr.mxu0 0.0
    %1103 = vmatpush1.msra.mxu0 0.0
    %1104 = vmatprep.subr.mxu0 0.0
    %1105 = vmatpush1.msra.mxu0 0.0
    %1106 = vmatprep.subr.mxu0 0.0
    %1107 = vmatpush1.msra.mxu0 0.0
    %1108 = vmatprep.subr.mxu0 0.0
    %1109 = vmatpush1.msra.mxu0 0.0
    %1110 = vmatprep.subr.mxu0 0.0
    %1111 = vmatpush1.msra.mxu0 0.0
    %1112 = vmatprep.subr.mxu0 0.0
    %1113 = vmatpush1.msra.mxu0 0.0
    %1114 = vmatprep.subr.mxu0 0.0
    %1115 = vmatpush1.msra.mxu0 0.0
    %1116 = vmatprep.subr.mxu0 0.0
    %1117 = vmatpush1.msra.mxu0 0.0
    %1118 = vmatprep.subr.mxu0 0.0
    %1119 = vmatpush1.msra.mxu0 0.0
    %1120 = vmatprep.subr.mxu0 0.0
    %1121 = vmatpush1.msra.mxu0 0.0
    %1122 = vmatprep.subr.mxu0 0.0
    %1123 = vmatpush1.msra.mxu0 0.0
    %1124 = vmatprep.subr.mxu0 0.0
    %1125 = vmatpush1.msra.mxu0 0.0
    %1126 = vmatprep.subr.mxu0 0.0
    %1127 = vmatpush1.msra.mxu0 0.0
    %1128 = vmatprep.mubr.f32.mxu0 0.0
    %1129 = vmatmul.mubr.f32.gmra.mrb[0].mxu0 %v991
    %v1130 = vpop.f32.mrb[0].mxu0
    %v1131 = vadd.f32 0.0, %v1130
    %v1132 = vpop.f32.mrb[0].mxu0
    %1133 = vdwg.mxu0
    %v1134 = vadd.f32 %v973, %v1060
    %v1135 = vadd.f32 %v974, %v1062
    %v1136 = vadd.f32 %v975, %v1131
    %s1137 = scalar_lea.vmem %s1, 56
    %v1138 = vld [vmem:[%s1137] sm:$0xff]
    %1139 = vrot.lane.b32.xlu0 %v23, 91
    %v1140 = vpop.permute.xlu0 %1139
    %1141 = vrot.lane.b32.xlu0 %v24, 91
    %v1142 = vpop.permute.xlu0 %1141
    %1143 = vrot.lane.b32.xlu0 %v25, 91
    %v1144 = vpop.permute.xlu0 %1143
    %vm1145 = vcmask 744448
    %v1146 = vsel %vm1145, %v1140, %v1142
    %v1147 = vsel %vm1145, %v1142, %v1144
    %v1152 = vsel %vm43, %v1138, 0
    %1154 = vmatprep.subr.mxu0 %v1147
    %1155 = vmatpush1.msra.mxu0 %v1146
    %1156 = vmatprep.subr.mxu0 0.0
    %1157 = vmatpush1.msra.mxu0 0.0
    %1158 = vmatprep.subr.mxu0 0.0
    %1159 = vmatpush1.msra.mxu0 0.0
    %1160 = vmatprep.subr.mxu0 0.0
    %1161 = vmatpush1.msra.mxu0 0.0
    %1162 = vmatprep.subr.mxu0 0.0
    %1163 = vmatpush1.msra.mxu0 0.0
    %1164 = vmatprep.subr.mxu0 0.0
    %1165 = vmatpush1.msra.mxu0 0.0
    %1166 = vmatprep.subr.mxu0 0.0
    %1167 = vmatpush1.msra.mxu0 0.0
    %1168 = vmatprep.subr.mxu0 0.0
    %1169 = vmatpush1.msra.mxu0 0.0
    %1170 = vmatprep.subr.mxu0 0.0
    %1171 = vmatpush1.msra.mxu0 0.0
    %1172 = vmatprep.subr.mxu0 0.0
    %1173 = vmatpush1.msra.mxu0 0.0
    %1174 = vmatprep.subr.mxu0 0.0
    %1175 = vmatpush1.msra.mxu0 0.0
    %1176 = vmatprep.subr.mxu0 0.0
    %1177 = vmatpush1.msra.mxu0 0.0
    %1178 = vmatprep.subr.mxu0 0.0
    %1179 = vmatpush1.msra.mxu0 0.0
    %1180 = vmatprep.subr.mxu0 0.0
    %1181 = vmatpush1.msra.mxu0 0.0
    %1182 = vmatprep.subr.mxu0 0.0
    %1183 = vmatpush1.msra.mxu0 0.0
    %1184 = vmatprep.subr.mxu0 0.0
    %1185 = vmatpush1.msra.mxu0 0.0
    %1186 = vmatprep.subr.mxu0 0.0
    %1187 = vmatpush1.msra.mxu0 0.0
    %1188 = vmatprep.subr.mxu0 0.0
    %1189 = vmatpush1.msra.mxu0 0.0
    %1190 = vmatprep.subr.mxu0 0.0
    %1191 = vmatpush1.msra.mxu0 0.0
    %1192 = vmatprep.subr.mxu0 0.0
    %1193 = vmatpush1.msra.mxu0 0.0
    %1194 = vmatprep.subr.mxu0 0.0
    %1195 = vmatpush1.msra.mxu0 0.0
    %1196 = vmatprep.subr.mxu0 0.0
    %1197 = vmatpush1.msra.mxu0 0.0
    %1198 = vmatprep.subr.mxu0 0.0
    %1199 = vmatpush1.msra.mxu0 0.0
    %1200 = vmatprep.subr.mxu0 0.0
    %1201 = vmatpush1.msra.mxu0 0.0
    %1202 = vmatprep.subr.mxu0 0.0
    %1203 = vmatpush1.msra.mxu0 0.0
    %1204 = vmatprep.subr.mxu0 0.0
    %1205 = vmatpush1.msra.mxu0 0.0
    %1206 = vmatprep.subr.mxu0 0.0
    %1207 = vmatpush1.msra.mxu0 0.0
    %1208 = vmatprep.subr.mxu0 0.0
    %1209 = vmatpush1.msra.mxu0 0.0
    %1210 = vmatprep.subr.mxu0 0.0
    %1211 = vmatpush1.msra.mxu0 0.0
    %1212 = vmatprep.subr.mxu0 0.0
    %1213 = vmatpush1.msra.mxu0 0.0
    %1214 = vmatprep.subr.mxu0 0.0
    %1215 = vmatpush1.msra.mxu0 0.0
    %1216 = vmatprep.subr.mxu0 0.0
    %1217 = vmatpush1.msra.mxu0 0.0
    %1218 = vmatprep.mubr.f32.mxu0 0.0
    %1219 = vmatmul.mubr.f32.gmra.mrb[0].mxu0 %v1152
    %v1220 = vpop.f32.mrb[0].mxu0
    %v1221 = vadd.f32 0.0, %v1220
    %v1222 = vpop.f32.mrb[0].mxu0
    %v1223 = vadd.f32 0.0, %v1222
    %1224 = vdwg.mxu0
    %1225 = vmatprep.subr.mxu0 0.0
    %1226 = vmatpush1.msra.mxu0 %v1144
    %1227 = vmatprep.subr.mxu0 0.0
    %1228 = vmatpush1.msra.mxu0 0.0
    %1229 = vmatprep.subr.mxu0 0.0
    %1230 = vmatpush1.msra.mxu0 0.0
    %1231 = vmatprep.subr.mxu0 0.0
    %1232 = vmatpush1.msra.mxu0 0.0
    %1233 = vmatprep.subr.mxu0 0.0
    %1234 = vmatpush1.msra.mxu0 0.0
    %1235 = vmatprep.subr.mxu0 0.0
    %1236 = vmatpush1.msra.mxu0 0.0
    %1237 = vmatprep.subr.mxu0 0.0
    %1238 = vmatpush1.msra.mxu0 0.0
    %1239 = vmatprep.subr.mxu0 0.0
    %1240 = vmatpush1.msra.mxu0 0.0
    %1241 = vmatprep.subr.mxu0 0.0
    %1242 = vmatpush1.msra.mxu0 0.0
    %1243 = vmatprep.subr.mxu0 0.0
    %1244 = vmatpush1.msra.mxu0 0.0
    %1245 = vmatprep.subr.mxu0 0.0
    %1246 = vmatpush1.msra.mxu0 0.0
    %1247 = vmatprep.subr.mxu0 0.0
    %1248 = vmatpush1.msra.mxu0 0.0
    %1249 = vmatprep.subr.mxu0 0.0
    %1250 = vmatpush1.msra.mxu0 0.0
    %1251 = vmatprep.subr.mxu0 0.0
    %1252 = vmatpush1.msra.mxu0 0.0
    %1253 = vmatprep.subr.mxu0 0.0
    %1254 = vmatpush1.msra.mxu0 0.0
    %1255 = vmatprep.subr.mxu0 0.0
    %1256 = vmatpush1.msra.mxu0 0.0
    %1257 = vmatprep.subr.mxu0 0.0
    %1258 = vmatpush1.msra.mxu0 0.0
    %1259 = vmatprep.subr.mxu0 0.0
    %1260 = vmatpush1.msra.mxu0 0.0
    %1261 = vmatprep.subr.mxu0 0.0
    %1262 = vmatpush1.msra.mxu0 0.0
    %1263 = vmatprep.subr.mxu0 0.0
    %1264 = vmatpush1.msra.mxu0 0.0
    %1265 = vmatprep.subr.mxu0 0.0
    %1266 = vmatpush1.msra.mxu0 0.0
    %1267 = vmatprep.subr.mxu0 0.0
    %1268 = vmatpush1.msra.mxu0 0.0
    %1269 = vmatprep.subr.mxu0 0.0
    %1270 = vmatpush1.msra.mxu0 0.0
    %1271 = vmatprep.subr.mxu0 0.0
    %1272 = vmatpush1.msra.mxu0 0.0
    %1273 = vmatprep.subr.mxu0 0.0
    %1274 = vmatpush1.msra.mxu0 0.0
    %1275 = vmatprep.subr.mxu0 0.0
    %1276 = vmatpush1.msra.mxu0 0.0
    %1277 = vmatprep.subr.mxu0 0.0
    %1278 = vmatpush1.msra.mxu0 0.0
    %1279 = vmatprep.subr.mxu0 0.0
    %1280 = vmatpush1.msra.mxu0 0.0
    %1281 = vmatprep.subr.mxu0 0.0
    %1282 = vmatpush1.msra.mxu0 0.0
    %1283 = vmatprep.subr.mxu0 0.0
    %1284 = vmatpush1.msra.mxu0 0.0
    %1285 = vmatprep.subr.mxu0 0.0
    %1286 = vmatpush1.msra.mxu0 0.0
    %1287 = vmatprep.subr.mxu0 0.0
    %1288 = vmatpush1.msra.mxu0 0.0
    %1289 = vmatprep.mubr.f32.mxu0 0.0
    %1290 = vmatmul.mubr.f32.gmra.mrb[0].mxu0 %v1152
    %v1291 = vpop.f32.mrb[0].mxu0
    %v1292 = vadd.f32 0.0, %v1291
    %v1293 = vpop.f32.mrb[0].mxu0
    %1294 = vdwg.mxu0
    %v1295 = vadd.f32 %v1134, %v1221
    %v1296 = vadd.f32 %v1135, %v1223
    %v1297 = vadd.f32 %v1136, %v1292
    %s1298 = scalar_lea.vmem %s1, 64
    %v1299 = vld [vmem:[%s1298] sm:$0xff]
    %1300 = vrot.lane.b32.xlu0 %v23, 90
    %v1301 = vpop.permute.xlu0 %1300
    %1302 = vrot.lane.b32.xlu0 %v24, 90
    %v1303 = vpop.permute.xlu0 %1302
    %1304 = vrot.lane.b32.xlu0 %v25, 90
    %v1305 = vpop.permute.xlu0 %1304
    %vm1306 = vcmask 736256
    %v1307 = vsel %vm1306, %v1301, %v1303
    %v1308 = vsel %vm1306, %v1303, %v1305
    %v1313 = vsel %vm43, %v1299, 0
    %1315 = vmatprep.subr.mxu0 %v1308
    %1316 = vmatpush1.msra.mxu0 %v1307
    %1317 = vmatprep.subr.mxu0 0.0
    %1318 = vmatpush1.msra.mxu0 0.0
    %1319 = vmatprep.subr.mxu0 0.0
    %1320 = vmatpush1.msra.mxu0 0.0
    %1321 = vmatprep.subr.mxu0 0.0
    %1322 = vmatpush1.msra.mxu0 0.0
    %1323 = vmatprep.subr.mxu0 0.0
    %1324 = vmatpush1.msra.mxu0 0.0
    %1325 = vmatprep.subr.mxu0 0.0
    %1326 = vmatpush1.msra.mxu0 0.0
    %1327 = vmatprep.subr.mxu0 0.0
    %1328 = vmatpush1.msra.mxu0 0.0
    %1329 = vmatprep.subr.mxu0 0.0
    %1330 = vmatpush1.msra.mxu0 0.0
    %1331 = vmatprep.subr.mxu0 0.0
    %1332 = vmatpush1.msra.mxu0 0.0
    %1333 = vmatprep.subr.mxu0 0.0
    %1334 = vmatpush1.msra.mxu0 0.0
    %1335 = vmatprep.subr.mxu0 0.0
    %1336 = vmatpush1.msra.mxu0 0.0
    %1337 = vmatprep.subr.mxu0 0.0
    %1338 = vmatpush1.msra.mxu0 0.0
    %1339 = vmatprep.subr.mxu0 0.0
    %1340 = vmatpush1.msra.mxu0 0.0
    %1341 = vmatprep.subr.mxu0 0.0
    %1342 = vmatpush1.msra.mxu0 0.0
    %1343 = vmatprep.subr.mxu0 0.0
    %1344 = vmatpush1.msra.mxu0 0.0
    %1345 = vmatprep.subr.mxu0 0.0
    %1346 = vmatpush1.msra.mxu0 0.0
    %1347 = vmatprep.subr.mxu0 0.0
    %1348 = vmatpush1.msra.mxu0 0.0
    %1349 = vmatprep.subr.mxu0 0.0
    %1350 = vmatpush1.msra.mxu0 0.0
    %1351 = vmatprep.subr.mxu0 0.0
    %1352 = vmatpush1.msra.mxu0 0.0
    %1353 = vmatprep.subr.mxu0 0.0
    %1354 = vmatpush1.msra.mxu0 0.0
    %1355 = vmatprep.subr.mxu0 0.0
    %1356 = vmatpush1.msra.mxu0 0.0
    %1357 = vmatprep.subr.mxu0 0.0
    %1358 = vmatpush1.msra.mxu0 0.0
    %1359 = vmatprep.subr.mxu0 0.0
    %1360 = vmatpush1.msra.mxu0 0.0
    %1361 = vmatprep.subr.mxu0 0.0
    %1362 = vmatpush1.msra.mxu0 0.0
    %1363 = vmatprep.subr.mxu0 0.0
    %1364 = vmatpush1.msra.mxu0 0.0
    %1365 = vmatprep.subr.mxu0 0.0
    %1366 = vmatpush1.msra.mxu0 0.0
    %1367 = vmatprep.subr.mxu0 0.0
    %1368 = vmatpush1.msra.mxu0 0.0
    %1369 = vmatprep.subr.mxu0 0.0
    %1370 = vmatpush1.msra.mxu0 0.0
    %1371 = vmatprep.subr.mxu0 0.0
    %1372 = vmatpush1.msra.mxu0 0.0
    %1373 = vmatprep.subr.mxu0 0.0
    %1374 = vmatpush1.msra.mxu0 0.0
    %1375 = vmatprep.subr.mxu0 0.0
    %1376 = vmatpush1.msra.mxu0 0.0
    %1377 = vmatprep.subr.mxu0 0.0
    %1378 = vmatpush1.msra.mxu0 0.0
    %1379 = vmatprep.mubr.f32.mxu0 0.0
    %1380 = vmatmul.mubr.f32.gmra.mrb[0].mxu0 %v1313
    %v1381 = vpop.f32.mrb[0].mxu0
    %v1382 = vadd.f32 0.0, %v1381
    %v1383 = vpop.f32.mrb[0].mxu0
    %v1384 = vadd.f32 0.0, %v1383
    %1385 = vdwg.mxu0
    %1386 = vmatprep.subr.mxu0 0.0
    %1387 = vmatpush1.msra.mxu0 %v1305
    %1388 = vmatprep.subr.mxu0 0.0
    %1389 = vmatpush1.msra.mxu0 0.0
    %1390 = vmatprep.subr.mxu0 0.0
    %1391 = vmatpush1.msra.mxu0 0.0
    %1392 = vmatprep.subr.mxu0 0.0
    %1393 = vmatpush1.msra.mxu0 0.0
    %1394 = vmatprep.subr.mxu0 0.0
    %1395 = vmatpush1.msra.mxu0 0.0
    %1396 = vmatprep.subr.mxu0 0.0
    %1397 = vmatpush1.msra.mxu0 0.0
    %1398 = vmatprep.subr.mxu0 0.0
    %1399 = vmatpush1.msra.mxu0 0.0
    %1400 = vmatprep.subr.mxu0 0.0
    %1401 = vmatpush1.msra.mxu0 0.0
    %1402 = vmatprep.subr.mxu0 0.0
    %1403 = vmatpush1.msra.mxu0 0.0
    %1404 = vmatprep.subr.mxu0 0.0
    %1405 = vmatpush1.msra.mxu0 0.0
    %1406 = vmatprep.subr.mxu0 0.0
    %1407 = vmatpush1.msra.mxu0 0.0
    %1408 = vmatprep.subr.mxu0 0.0
    %1409 = vmatpush1.msra.mxu0 0.0
    %1410 = vmatprep.subr.mxu0 0.0
    %1411 = vmatpush1.msra.mxu0 0.0
    %1412 = vmatprep.subr.mxu0 0.0
    %1413 = vmatpush1.msra.mxu0 0.0
    %1414 = vmatprep.subr.mxu0 0.0
    %1415 = vmatpush1.msra.mxu0 0.0
    %1416 = vmatprep.subr.mxu0 0.0
    %1417 = vmatpush1.msra.mxu0 0.0
    %1418 = vmatprep.subr.mxu0 0.0
    %1419 = vmatpush1.msra.mxu0 0.0
    %1420 = vmatprep.subr.mxu0 0.0
    %1421 = vmatpush1.msra.mxu0 0.0
    %1422 = vmatprep.subr.mxu0 0.0
    %1423 = vmatpush1.msra.mxu0 0.0
    %1424 = vmatprep.subr.mxu0 0.0
    %1425 = vmatpush1.msra.mxu0 0.0
    %1426 = vmatprep.subr.mxu0 0.0
    %1427 = vmatpush1.msra.mxu0 0.0
    %1428 = vmatprep.subr.mxu0 0.0
    %1429 = vmatpush1.msra.mxu0 0.0
    %1430 = vmatprep.subr.mxu0 0.0
    %1431 = vmatpush1.msra.mxu0 0.0
    %1432 = vmatprep.subr.mxu0 0.0
    %1433 = vmatpush1.msra.mxu0 0.0
    %1434 = vmatprep.subr.mxu0 0.0
    %1435 = vmatpush1.msra.mxu0 0.0
    %1436 = vmatprep.subr.mxu0 0.0
    %1437 = vmatpush1.msra.mxu0 0.0
    %1438 = vmatprep.subr.mxu0 0.0
    %1439 = vmatpush1.msra.mxu0 0.0
    %1440 = vmatprep.subr.mxu0 0.0
    %1441 = vmatpush1.msra.mxu0 0.0
    %1442 = vmatprep.subr.mxu0 0.0
    %1443 = vmatpush1.msra.mxu0 0.0
    %1444 = vmatprep.subr.mxu0 0.0
    %1445 = vmatpush1.msra.mxu0 0.0
    %1446 = vmatprep.subr.mxu0 0.0
    %1447 = vmatpush1.msra.mxu0 0.0
    %1448 = vmatprep.subr.mxu0 0.0
    %1449 = vmatpush1.msra.mxu0 0.0
    %1450 = vmatprep.mubr.f32.mxu0 0.0
    %1451 = vmatmul.mubr.f32.gmra.mrb[0].mxu0 %v1313
    %v1452 = vpop.f32.mrb[0].mxu0
    %v1453 = vadd.f32 0.0, %v1452
    %v1454 = vpop.f32.mrb[0].mxu0
    %1455 = vdwg.mxu0
    %v1456 = vadd.f32 %v1295, %v1382
    %v1457 = vadd.f32 %v1296, %v1384
    %v1458 = vadd.f32 %v1297, %v1453
    %1459 = vst [vmem:[#allocation2] sm:$0xff] %v1456
    %1460 = vst [vmem:[#allocation2 + $0x8] sm:$0xff] %v1457
    %vm1461 = vcmask 261120
    %1462 = vst.msk [vmem:[#allocation2 + $0x10] sm:$0xff] %vm1461, %v1458
    %v1464 = vlaneseq
    %v1465 = vshrl.u32 %v1464, 7
    %v1466 = vsub.s32 0, %v1465
    %v1467 = vrot.slane %v21, %v1466
    %v1468 = vlaneseq
    %v1469 = vshrl.u32 %v1468, 7
    %v1470 = vsub.s32 1, %v1469
    %v1471 = vrot.slane %v21, %v1470
    %v1472 = vlaneseq
    %v1473 = vshrl.u32 %v1472, 7
    %v1474 = vsub.s32 2, %v1473
    %v1475 = vrot.slane %v21, %v1474
    %v1479 = vmul.f32 %v1456, %v1467
    %v1480 = vmul.f32 %v1457, %v1471
    %v1481 = vmul.f32 %v1458, %v1475
    %v1482 = vadd.f32 %v1479, %v1480
    %v1483 = vsel %vm1461, %v1481, 0.0
    %v1484 = vadd.f32 %v1482, %v1483
    %1485 = vadd.xlane.f32.xlu0 %v1484
    %v1486 = vpop.xlane.xlu0 %1485
    %v1487 = vadd.f32 %v1486, 0.0
    %v1488 = vld [vmem:[%s1] sm:$0xff]
    %s1489 = scalar_lea.vmem %s0, 24
    %v1490 = vld [vmem:[%s1489] sm:$0xff]
    %v1491 = vld [vmem:[%s1489 + $0x8] sm:$0xff]
    %v1492 = vld [vmem:[%s1489 + $0x10] sm:$0xff]
    %v1493 = vld [vmem:[%s26] sm:$0xff]
    %1497 = vrot.lane.b32.xlu0 %v1490, 127
    %v1498 = vpop.permute.xlu0 %1497
    %1499 = vrot.lane.b32.xlu0 %v1491, 127
    %v1500 = vpop.permute.xlu0 %1499
    %1501 = vrot.lane.b32.xlu0 %v1492, 127
    %v1502 = vpop.permute.xlu0 %1501
    %v1503 = vsel %vm37, %v1498, %v1500
    %v1504 = vsel %vm37, %v1500, %v1502
    %v1509 = vsel %vm43, %v1493, 0
    %1511 = vmatprep.subr.mxu0 %v1504
    %1512 = vmatpush1.msra.mxu0 %v1503
    %1513 = vmatprep.subr.mxu0 0.0
    %1514 = vmatpush1.msra.mxu0 0.0
    %1515 = vmatprep.subr.mxu0 0.0
    %1516 = vmatpush1.msra.mxu0 0.0
    %1517 = vmatprep.subr.mxu0 0.0
    %1518 = vmatpush1.msra.mxu0 0.0
    %1519 = vmatprep.subr.mxu0 0.0
    %1520 = vmatpush1.msra.mxu0 0.0
    %1521 = vmatprep.subr.mxu0 0.0
    %1522 = vmatpush1.msra.mxu0 0.0
    %1523 = vmatprep.subr.mxu0 0.0
    %1524 = vmatpush1.msra.mxu0 0.0
    %1525 = vmatprep.subr.mxu0 0.0
    %1526 = vmatpush1.msra.mxu0 0.0
    %1527 = vmatprep.subr.mxu0 0.0
    %1528 = vmatpush1.msra.mxu0 0.0
    %1529 = vmatprep.subr.mxu0 0.0
    %1530 = vmatpush1.msra.mxu0 0.0
    %1531 = vmatprep.subr.mxu0 0.0
    %1532 = vmatpush1.msra.mxu0 0.0
    %1533 = vmatprep.subr.mxu0 0.0
    %1534 = vmatpush1.msra.mxu0 0.0
    %1535 = vmatprep.subr.mxu0 0.0
    %1536 = vmatpush1.msra.mxu0 0.0
    %1537 = vmatprep.subr.mxu0 0.0
    %1538 = vmatpush1.msra.mxu0 0.0
    %1539 = vmatprep.subr.mxu0 0.0
    %1540 = vmatpush1.msra.mxu0 0.0
    %1541 = vmatprep.subr.mxu0 0.0
    %1542 = vmatpush1.msra.mxu0 0.0
    %1543 = vmatprep.subr.mxu0 0.0
    %1544 = vmatpush1.msra.mxu0 0.0
    %1545 = vmatprep.subr.mxu0 0.0
    %1546 = vmatpush1.msra.mxu0 0.0
    %1547 = vmatprep.subr.mxu0 0.0
    %1548 = vmatpush1.msra.mxu0 0.0
    %1549 = vmatprep.subr.mxu0 0.0
    %1550 = vmatpush1.msra.mxu0 0.0
    %1551 = vmatprep.subr.mxu0 0.0
    %1552 = vmatpush1.msra.mxu0 0.0
    %1553 = vmatprep.subr.mxu0 0.0
    %1554 = vmatpush1.msra.mxu0 0.0
    %1555 = vmatprep.subr.mxu0 0.0
    %1556 = vmatpush1.msra.mxu0 0.0
    %1557 = vmatprep.subr.mxu0 0.0
    %1558 = vmatpush1.msra.mxu0 0.0
    %1559 = vmatprep.subr.mxu0 0.0
    %1560 = vmatpush1.msra.mxu0 0.0
    %1561 = vmatprep.subr.mxu0 0.0
    %1562 = vmatpush1.msra.mxu0 0.0
    %1563 = vmatprep.subr.mxu0 0.0
    %1564 = vmatpush1.msra.mxu0 0.0
    %1565 = vmatprep.subr.mxu0 0.0
    %1566 = vmatpush1.msra.mxu0 0.0
    %1567 = vmatprep.subr.mxu0 0.0
    %1568 = vmatpush1.msra.mxu0 0.0
    %1569 = vmatprep.subr.mxu0 0.0
    %1570 = vmatpush1.msra.mxu0 0.0
    %1571 = vmatprep.subr.mxu0 0.0
    %1572 = vmatpush1.msra.mxu0 0.0
    %1573 = vmatprep.subr.mxu0 0.0
    %1574 = vmatpush1.msra.mxu0 0.0
    %1575 = vmatprep.mubr.f32.mxu0 0.0
    %1576 = vmatmul.mubr.f32.gmra.mrb[0].mxu0 %v1509
    %v1577 = vpop.f32.mrb[0].mxu0
    %v1578 = vadd.f32 0.0, %v1577
    %v1579 = vpop.f32.mrb[0].mxu0
    %v1580 = vadd.f32 0.0, %v1579
    %1581 = vdwg.mxu0
    %1582 = vmatprep.subr.mxu0 0.0
    %1583 = vmatpush1.msra.mxu0 %v1502
    %1584 = vmatprep.subr.mxu0 0.0
    %1585 = vmatpush1.msra.mxu0 0.0
    %1586 = vmatprep.subr.mxu0 0.0
    %1587 = vmatpush1.msra.mxu0 0.0
    %1588 = vmatprep.subr.mxu0 0.0
    %1589 = vmatpush1.msra.mxu0 0.0
    %1590 = vmatprep.subr.mxu0 0.0
    %1591 = vmatpush1.msra.mxu0 0.0
    %1592 = vmatprep.subr.mxu0 0.0
    %1593 = vmatpush1.msra.mxu0 0.0
    %1594 = vmatprep.subr.mxu0 0.0
    %1595 = vmatpush1.msra.mxu0 0.0
    %1596 = vmatprep.subr.mxu0 0.0
    %1597 = vmatpush1.msra.mxu0 0.0
    %1598 = vmatprep.subr.mxu0 0.0
    %1599 = vmatpush1.msra.mxu0 0.0
    %1600 = vmatprep.subr.mxu0 0.0
    %1601 = vmatpush1.msra.mxu0 0.0
    %1602 = vmatprep.subr.mxu0 0.0
    %1603 = vmatpush1.msra.mxu0 0.0
    %1604 = vmatprep.subr.mxu0 0.0
    %1605 = vmatpush1.msra.mxu0 0.0
    %1606 = vmatprep.subr.mxu0 0.0
    %1607 = vmatpush1.msra.mxu0 0.0
    %1608 = vmatprep.subr.mxu0 0.0
    %1609 = vmatpush1.msra.mxu0 0.0
    %1610 = vmatprep.subr.mxu0 0.0
    %1611 = vmatpush1.msra.mxu0 0.0
    %1612 = vmatprep.subr.mxu0 0.0
    %1613 = vmatpush1.msra.mxu0 0.0
    %1614 = vmatprep.subr.mxu0 0.0
    %1615 = vmatpush1.msra.mxu0 0.0
    %1616 = vmatprep.subr.mxu0 0.0
    %1617 = vmatpush1.msra.mxu0 0.0
    %1618 = vmatprep.subr.mxu0 0.0
    %1619 = vmatpush1.msra.mxu0 0.0
    %1620 = vmatprep.subr.mxu0 0.0
    %1621 = vmatpush1.msra.mxu0 0.0
    %1622 = vmatprep.subr.mxu0 0.0
    %1623 = vmatpush1.msra.mxu0 0.0
    %1624 = vmatprep.subr.mxu0 0.0
    %1625 = vmatpush1.msra.mxu0 0.0
    %1626 = vmatprep.subr.mxu0 0.0
    %1627 = vmatpush1.msra.mxu0 0.0
    %1628 = vmatprep.subr.mxu0 0.0
    %1629 = vmatpush1.msra.mxu0 0.0
    %1630 = vmatprep.subr.mxu0 0.0
    %1631 = vmatpush1.msra.mxu0 0.0
    %1632 = vmatprep.subr.mxu0 0.0
    %1633 = vmatpush1.msra.mxu0 0.0
    %1634 = vmatprep.subr.mxu0 0.0
    %1635 = vmatpush1.msra.mxu0 0.0
    %1636 = vmatprep.subr.mxu0 0.0
    %1637 = vmatpush1.msra.mxu0 0.0
    %1638 = vmatprep.subr.mxu0 0.0
    %1639 = vmatpush1.msra.mxu0 0.0
    %1640 = vmatprep.subr.mxu0 0.0
    %1641 = vmatpush1.msra.mxu0 0.0
    %1642 = vmatprep.subr.mxu0 0.0
    %1643 = vmatpush1.msra.mxu0 0.0
    %1644 = vmatprep.subr.mxu0 0.0
    %1645 = vmatpush1.msra.mxu0 0.0
    %1646 = vmatprep.mubr.f32.mxu0 0.0
    %1647 = vmatmul.mubr.f32.gmra.mrb[0].mxu0 %v1509
    %v1648 = vpop.f32.mrb[0].mxu0
    %v1649 = vadd.f32 0.0, %v1648
    %v1650 = vpop.f32.mrb[0].mxu0
    %1651 = vdwg.mxu0
    %v1653 = vsel %vm43, %v1488, 0
    %1655 = vmatprep.subr.mxu0 %v1491
    %1656 = vmatpush1.msra.mxu0 %v1490
    %1657 = vmatprep.subr.mxu0 0.0
    %1658 = vmatpush1.msra.mxu0 0.0
    %1659 = vmatprep.subr.mxu0 0.0
    %1660 = vmatpush1.msra.mxu0 0.0
    %1661 = vmatprep.subr.mxu0 0.0
    %1662 = vmatpush1.msra.mxu0 0.0
    %1663 = vmatprep.subr.mxu0 0.0
    %1664 = vmatpush1.msra.mxu0 0.0
    %1665 = vmatprep.subr.mxu0 0.0
    %1666 = vmatpush1.msra.mxu0 0.0
    %1667 = vmatprep.subr.mxu0 0.0
    %1668 = vmatpush1.msra.mxu0 0.0
    %1669 = vmatprep.subr.mxu0 0.0
    %1670 = vmatpush1.msra.mxu0 0.0
    %1671 = vmatprep.subr.mxu0 0.0
    %1672 = vmatpush1.msra.mxu0 0.0
    %1673 = vmatprep.subr.mxu0 0.0
    %1674 = vmatpush1.msra.mxu0 0.0
    %1675 = vmatprep.subr.mxu0 0.0
    %1676 = vmatpush1.msra.mxu0 0.0
    %1677 = vmatprep.subr.mxu0 0.0
    %1678 = vmatpush1.msra.mxu0 0.0
    %1679 = vmatprep.subr.mxu0 0.0
    %1680 = vmatpush1.msra.mxu0 0.0
    %1681 = vmatprep.subr.mxu0 0.0
    %1682 = vmatpush1.msra.mxu0 0.0
    %1683 = vmatprep.subr.mxu0 0.0
    %1684 = vmatpush1.msra.mxu0 0.0
    %1685 = vmatprep.subr.mxu0 0.0
    %1686 = vmatpush1.msra.mxu0 0.0
    %1687 = vmatprep.subr.mxu0 0.0
    %1688 = vmatpush1.msra.mxu0 0.0
    %1689 = vmatprep.subr.mxu0 0.0
    %1690 = vmatpush1.msra.mxu0 0.0
    %1691 = vmatprep.subr.mxu0 0.0
    %1692 = vmatpush1.msra.mxu0 0.0
    %1693 = vmatprep.subr.mxu0 0.0
    %1694 = vmatpush1.msra.mxu0 0.0
    %1695 = vmatprep.subr.mxu0 0.0
    %1696 = vmatpush1.msra.mxu0 0.0
    %1697 = vmatprep.subr.mxu0 0.0
    %1698 = vmatpush1.msra.mxu0 0.0
    %1699 = vmatprep.subr.mxu0 0.0
    %1700 = vmatpush1.msra.mxu0 0.0
    %1701 = vmatprep.subr.mxu0 0.0
    %1702 = vmatpush1.msra.mxu0 0.0
    %1703 = vmatprep.subr.mxu0 0.0
    %1704 = vmatpush1.msra.mxu0 0.0
    %1705 = vmatprep.subr.mxu0 0.0
    %1706 = vmatpush1.msra.mxu0 0.0
    %1707 = vmatprep.subr.mxu0 0.0
    %1708 = vmatpush1.msra.mxu0 0.0
    %1709 = vmatprep.subr.mxu0 0.0
    %1710 = vmatpush1.msra.mxu0 0.0
    %1711 = vmatprep.subr.mxu0 0.0
    %1712 = vmatpush1.msra.mxu0 0.0
    %1713 = vmatprep.subr.mxu0 0.0
    %1714 = vmatpush1.msra.mxu0 0.0
    %1715 = vmatprep.subr.mxu0 0.0
    %1716 = vmatpush1.msra.mxu0 0.0
    %1717 = vmatprep.subr.mxu0 0.0
    %1718 = vmatpush1.msra.mxu0 0.0
    %1719 = vmatprep.mubr.f32.mxu0 0.0
    %1720 = vmatmul.mubr.f32.gmra.mrb[0].mxu0 %v1653
    %v1721 = vpop.f32.mrb[0].mxu0
    %v1722 = vadd.f32 %v1578, %v1721
    %v1723 = vpop.f32.mrb[0].mxu0
    %v1724 = vadd.f32 %v1580, %v1723
    %1725 = vdwg.mxu0
    %1726 = vmatprep.subr.mxu0 0.0
    %1727 = vmatpush1.msra.mxu0 %v1492
    %1728 = vmatprep.subr.mxu0 0.0
    %1729 = vmatpush1.msra.mxu0 0.0
    %1730 = vmatprep.subr.mxu0 0.0
    %1731 = vmatpush1.msra.mxu0 0.0
    %1732 = vmatprep.subr.mxu0 0.0
    %1733 = vmatpush1.msra.mxu0 0.0
    %1734 = vmatprep.subr.mxu0 0.0
    %1735 = vmatpush1.msra.mxu0 0.0
    %1736 = vmatprep.subr.mxu0 0.0
    %1737 = vmatpush1.msra.mxu0 0.0
    %1738 = vmatprep.subr.mxu0 0.0
    %1739 = vmatpush1.msra.mxu0 0.0
    %1740 = vmatprep.subr.mxu0 0.0
    %1741 = vmatpush1.msra.mxu0 0.0
    %1742 = vmatprep.subr.mxu0 0.0
    %1743 = vmatpush1.msra.mxu0 0.0
    %1744 = vmatprep.subr.mxu0 0.0
    %1745 = vmatpush1.msra.mxu0 0.0
    %1746 = vmatprep.subr.mxu0 0.0
    %1747 = vmatpush1.msra.mxu0 0.0
    %1748 = vmatprep.subr.mxu0 0.0
    %1749 = vmatpush1.msra.mxu0 0.0
    %1750 = vmatprep.subr.mxu0 0.0
    %1751 = vmatpush1.msra.mxu0 0.0
    %1752 = vmatprep.subr.mxu0 0.0
    %1753 = vmatpush1.msra.mxu0 0.0
    %1754 = vmatprep.subr.mxu0 0.0
    %1755 = vmatpush1.msra.mxu0 0.0
    %1756 = vmatprep.subr.mxu0 0.0
    %1757 = vmatpush1.msra.mxu0 0.0
    %1758 = vmatprep.subr.mxu0 0.0
    %1759 = vmatpush1.msra.mxu0 0.0
    %1760 = vmatprep.subr.mxu0 0.0
    %1761 = vmatpush1.msra.mxu0 0.0
    %1762 = vmatprep.subr.mxu0 0.0
    %1763 = vmatpush1.msra.mxu0 0.0
    %1764 = vmatprep.subr.mxu0 0.0
    %1765 = vmatpush1.msra.mxu0 0.0
    %1766 = vmatprep.subr.mxu0 0.0
    %1767 = vmatpush1.msra.mxu0 0.0
    %1768 = vmatprep.subr.mxu0 0.0
    %1769 = vmatpush1.msra.mxu0 0.0
    %1770 = vmatprep.subr.mxu0 0.0
    %1771 = vmatpush1.msra.mxu0 0.0
    %1772 = vmatprep.subr.mxu0 0.0
    %1773 = vmatpush1.msra.mxu0 0.0
    %1774 = vmatprep.subr.mxu0 0.0
    %1775 = vmatpush1.msra.mxu0 0.0
    %1776 = vmatprep.subr.mxu0 0.0
    %1777 = vmatpush1.msra.mxu0 0.0
    %1778 = vmatprep.subr.mxu0 0.0
    %1779 = vmatpush1.msra.mxu0 0.0
    %1780 = vmatprep.subr.mxu0 0.0
    %1781 = vmatpush1.msra.mxu0 0.0
    %1782 = vmatprep.subr.mxu0 0.0
    %1783 = vmatpush1.msra.mxu0 0.0
    %1784 = vmatprep.subr.mxu0 0.0
    %1785 = vmatpush1.msra.mxu0 0.0
    %1786 = vmatprep.subr.mxu0 0.0
    %1787 = vmatpush1.msra.mxu0 0.0
    %1788 = vmatprep.subr.mxu0 0.0
    %1789 = vmatpush1.msra.mxu0 0.0
    %1790 = vmatprep.mubr.f32.mxu0 0.0
    %1791 = vmatmul.mubr.f32.gmra.mrb[0].mxu0 %v1653
    %v1792 = vpop.f32.mrb[0].mxu0
    %v1793 = vadd.f32 %v1649, %v1792
    %v1794 = vpop.f32.mrb[0].mxu0
    %1795 = vdwg.mxu0
    %v1796 = vld [vmem:[%s332] sm:$0xff]
    %1797 = vrot.lane.b32.xlu0 %v1490, 126
    %v1798 = vpop.permute.xlu0 %1797
    %1799 = vrot.lane.b32.xlu0 %v1491, 126
    %v1800 = vpop.permute.xlu0 %1799
    %1801 = vrot.lane.b32.xlu0 %v1492, 126
    %v1802 = vpop.permute.xlu0 %1801
    %v1803 = vsel %vm340, %v1798, %v1800
    %v1804 = vsel %vm340, %v1800, %v1802
    %v1809 = vsel %vm43, %v1796, 0
    %1811 = vmatprep.subr.mxu0 %v1804
    %1812 = vmatpush1.msra.mxu0 %v1803
    %1813 = vmatprep.subr.mxu0 0.0
    %1814 = vmatpush1.msra.mxu0 0.0
    %1815 = vmatprep.subr.mxu0 0.0
    %1816 = vmatpush1.msra.mxu0 0.0
    %1817 = vmatprep.subr.mxu0 0.0
    %1818 = vmatpush1.msra.mxu0 0.0
    %1819 = vmatprep.subr.mxu0 0.0
    %1820 = vmatpush1.msra.mxu0 0.0
    %1821 = vmatprep.subr.mxu0 0.0
    %1822 = vmatpush1.msra.mxu0 0.0
    %1823 = vmatprep.subr.mxu0 0.0
    %1824 = vmatpush1.msra.mxu0 0.0
    %1825 = vmatprep.subr.mxu0 0.0
    %1826 = vmatpush1.msra.mxu0 0.0
    %1827 = vmatprep.subr.mxu0 0.0
    %1828 = vmatpush1.msra.mxu0 0.0
    %1829 = vmatprep.subr.mxu0 0.0
    %1830 = vmatpush1.msra.mxu0 0.0
    %1831 = vmatprep.subr.mxu0 0.0
    %1832 = vmatpush1.msra.mxu0 0.0
    %1833 = vmatprep.subr.mxu0 0.0
    %1834 = vmatpush1.msra.mxu0 0.0
    %1835 = vmatprep.subr.mxu0 0.0
    %1836 = vmatpush1.msra.mxu0 0.0
    %1837 = vmatprep.subr.mxu0 0.0
    %1838 = vmatpush1.msra.mxu0 0.0
    %1839 = vmatprep.subr.mxu0 0.0
    %1840 = vmatpush1.msra.mxu0 0.0
    %1841 = vmatprep.subr.mxu0 0.0
    %1842 = vmatpush1.msra.mxu0 0.0
    %1843 = vmatprep.subr.mxu0 0.0
    %1844 = vmatpush1.msra.mxu0 0.0
    %1845 = vmatprep.subr.mxu0 0.0
    %1846 = vmatpush1.msra.mxu0 0.0
    %1847 = vmatprep.subr.mxu0 0.0
    %1848 = vmatpush1.msra.mxu0 0.0
    %1849 = vmatprep.subr.mxu0 0.0
    %1850 = vmatpush1.msra.mxu0 0.0
    %1851 = vmatprep.subr.mxu0 0.0
    %1852 = vmatpush1.msra.mxu0 0.0
    %1853 = vmatprep.subr.mxu0 0.0
    %1854 = vmatpush1.msra.mxu0 0.0
    %1855 = vmatprep.subr.mxu0 0.0
    %1856 = vmatpush1.msra.mxu0 0.0
    %1857 = vmatprep.subr.mxu0 0.0
    %1858 = vmatpush1.msra.mxu0 0.0
    %1859 = vmatprep.subr.mxu0 0.0
    %1860 = vmatpush1.msra.mxu0 0.0
    %1861 = vmatprep.subr.mxu0 0.0
    %1862 = vmatpush1.msra.mxu0 0.0
    %1863 = vmatprep.subr.mxu0 0.0
    %1864 = vmatpush1.msra.mxu0 0.0
    %1865 = vmatprep.subr.mxu0 0.0
    %1866 = vmatpush1.msra.mxu0 0.0
    %1867 = vmatprep.subr.mxu0 0.0
    %1868 = vmatpush1.msra.mxu0 0.0
    %1869 = vmatprep.subr.mxu0 0.0
    %1870 = vmatpush1.msra.mxu0 0.0
    %1871 = vmatprep.subr.mxu0 0.0
    %1872 = vmatpush1.msra.mxu0 0.0
    %1873 = vmatprep.subr.mxu0 0.0
    %1874 = vmatpush1.msra.mxu0 0.0
    %1875 = vmatprep.mubr.f32.mxu0 0.0
    %1876 = vmatmul.mubr.f32.gmra.mrb[0].mxu0 %v1809
    %v1877 = vpop.f32.mrb[0].mxu0
    %v1878 = vadd.f32 0.0, %v1877
    %v1879 = vpop.f32.mrb[0].mxu0
    %v1880 = vadd.f32 0.0, %v1879
    %1881 = vdwg.mxu0
    %1882 = vmatprep.subr.mxu0 0.0
    %1883 = vmatpush1.msra.mxu0 %v1802
    %1884 = vmatprep.subr.mxu0 0.0
    %1885 = vmatpush1.msra.mxu0 0.0
    %1886 = vmatprep.subr.mxu0 0.0
    %1887 = vmatpush1.msra.mxu0 0.0
    %1888 = vmatprep.subr.mxu0 0.0
    %1889 = vmatpush1.msra.mxu0 0.0
    %1890 = vmatprep.subr.mxu0 0.0
    %1891 = vmatpush1.msra.mxu0 0.0
    %1892 = vmatprep.subr.mxu0 0.0
    %1893 = vmatpush1.msra.mxu0 0.0
    %1894 = vmatprep.subr.mxu0 0.0
    %1895 = vmatpush1.msra.mxu0 0.0
    %1896 = vmatprep.subr.mxu0 0.0
    %1897 = vmatpush1.msra.mxu0 0.0
    %1898 = vmatprep.subr.mxu0 0.0
    %1899 = vmatpush1.msra.mxu0 0.0
    %1900 = vmatprep.subr.mxu0 0.0
    %1901 = vmatpush1.msra.mxu0 0.0
    %1902 = vmatprep.subr.mxu0 0.0
    %1903 = vmatpush1.msra.mxu0 0.0
    %1904 = vmatprep.subr.mxu0 0.0
    %1905 = vmatpush1.msra.mxu0 0.0
    %1906 = vmatprep.subr.mxu0 0.0
    %1907 = vmatpush1.msra.mxu0 0.0
    %1908 = vmatprep.subr.mxu0 0.0
    %1909 = vmatpush1.msra.mxu0 0.0
    %1910 = vmatprep.subr.mxu0 0.0
    %1911 = vmatpush1.msra.mxu0 0.0
    %1912 = vmatprep.subr.mxu0 0.0
    %1913 = vmatpush1.msra.mxu0 0.0
    %1914 = vmatprep.subr.mxu0 0.0
    %1915 = vmatpush1.msra.mxu0 0.0
    %1916 = vmatprep.subr.mxu0 0.0
    %1917 = vmatpush1.msra.mxu0 0.0
    %1918 = vmatprep.subr.mxu0 0.0
    %1919 = vmatpush1.msra.mxu0 0.0
    %1920 = vmatprep.subr.mxu0 0.0
    %1921 = vmatpush1.msra.mxu0 0.0
    %1922 = vmatprep.subr.mxu0 0.0
    %1923 = vmatpush1.msra.mxu0 0.0
    %1924 = vmatprep.subr.mxu0 0.0
    %1925 = vmatpush1.msra.mxu0 0.0
    %1926 = vmatprep.subr.mxu0 0.0
    %1927 = vmatpush1.msra.mxu0 0.0
    %1928 = vmatprep.subr.mxu0 0.0
    %1929 = vmatpush1.msra.mxu0 0.0
    %1930 = vmatprep.subr.mxu0 0.0
    %1931 = vmatpush1.msra.mxu0 0.0
    %1932 = vmatprep.subr.mxu0 0.0
    %1933 = vmatpush1.msra.mxu0 0.0
    %1934 = vmatprep.subr.mxu0 0.0
    %1935 = vmatpush1.msra.mxu0 0.0
    %1936 = vmatprep.subr.mxu0 0.0
    %1937 = vmatpush1.msra.mxu0 0.0
    %1938 = vmatprep.subr.mxu0 0.0
    %1939 = vmatpush1.msra.mxu0 0.0
    %1940 = vmatprep.subr.mxu0 0.0
    %1941 = vmatpush1.msra.mxu0 0.0
    %1942 = vmatprep.subr.mxu0 0.0
    %1943 = vmatpush1.msra.mxu0 0.0
    %1944 = vmatprep.subr.mxu0 0.0
    %1945 = vmatpush1.msra.mxu0 0.0
    %1946 = vmatprep.mubr.f32.mxu0 0.0
    %1947 = vmatmul.mubr.f32.gmra.mrb[0].mxu0 %v1809
    %v1948 = vpop.f32.mrb[0].mxu0
    %v1949 = vadd.f32 0.0, %v1948
    %v1950 = vpop.f32.mrb[0].mxu0
    %1951 = vdwg.mxu0
    %v1952 = vadd.f32 %v1722, %v1878
    %v1953 = vadd.f32 %v1724, %v1880
    %v1954 = vadd.f32 %v1793, %v1949
    %v1955 = vld [vmem:[%s493] sm:$0xff]
    %1956 = vrot.lane.b32.xlu0 %v1490, 110
    %v1957 = vpop.permute.xlu0 %1956
    %1958 = vrot.lane.b32.xlu0 %v1491, 110
    %v1959 = vpop.permute.xlu0 %1958
    %1960 = vrot.lane.b32.xlu0 %v1492, 110
    %v1961 = vpop.permute.xlu0 %1960
    %v1962 = vsel %vm501, %v1957, %v1959
    %v1963 = vsel %vm501, %v1959, %v1961
    %v1968 = vsel %vm43, %v1955, 0
    %1970 = vmatprep.subr.mxu0 %v1963
    %1971 = vmatpush1.msra.mxu0 %v1962
    %1972 = vmatprep.subr.mxu0 0.0
    %1973 = vmatpush1.msra.mxu0 0.0
    %1974 = vmatprep.subr.mxu0 0.0
    %1975 = vmatpush1.msra.mxu0 0.0
    %1976 = vmatprep.subr.mxu0 0.0
    %1977 = vmatpush1.msra.mxu0 0.0
    %1978 = vmatprep.subr.mxu0 0.0
    %1979 = vmatpush1.msra.mxu0 0.0
    %1980 = vmatprep.subr.mxu0 0.0
    %1981 = vmatpush1.msra.mxu0 0.0
    %1982 = vmatprep.subr.mxu0 0.0
    %1983 = vmatpush1.msra.mxu0 0.0
    %1984 = vmatprep.subr.mxu0 0.0
    %1985 = vmatpush1.msra.mxu0 0.0
    %1986 = vmatprep.subr.mxu0 0.0
    %1987 = vmatpush1.msra.mxu0 0.0
    %1988 = vmatprep.subr.mxu0 0.0
    %1989 = vmatpush1.msra.mxu0 0.0
    %1990 = vmatprep.subr.mxu0 0.0
    %1991 = vmatpush1.msra.mxu0 0.0
    %1992 = vmatprep.subr.mxu0 0.0
    %1993 = vmatpush1.msra.mxu0 0.0
    %1994 = vmatprep.subr.mxu0 0.0
    %1995 = vmatpush1.msra.mxu0 0.0
    %1996 = vmatprep.subr.mxu0 0.0
    %1997 = vmatpush1.msra.mxu0 0.0
    %1998 = vmatprep.subr.mxu0 0.0
    %1999 = vmatpush1.msra.mxu0 0.0
    %2000 = vmatprep.subr.mxu0 0.0
    %2001 = vmatpush1.msra.mxu0 0.0
    %2002 = vmatprep.subr.mxu0 0.0
    %2003 = vmatpush1.msra.mxu0 0.0
    %2004 = vmatprep.subr.mxu0 0.0
    %2005 = vmatpush1.msra.mxu0 0.0
    %2006 = vmatprep.subr.mxu0 0.0
    %2007 = vmatpush1.msra.mxu0 0.0
    %2008 = vmatprep.subr.mxu0 0.0
    %2009 = vmatpush1.msra.mxu0 0.0
    %2010 = vmatprep.subr.mxu0 0.0
    %2011 = vmatpush1.msra.mxu0 0.0
    %2012 = vmatprep.subr.mxu0 0.0
    %2013 = vmatpush1.msra.mxu0 0.0
    %2014 = vmatprep.subr.mxu0 0.0
    %2015 = vmatpush1.msra.mxu0 0.0
    %2016 = vmatprep.subr.mxu0 0.0
    %2017 = vmatpush1.msra.mxu0 0.0
    %2018 = vmatprep.subr.mxu0 0.0
    %2019 = vmatpush1.msra.mxu0 0.0
    %2020 = vmatprep.subr.mxu0 0.0
    %2021 = vmatpush1.msra.mxu0 0.0
    %2022 = vmatprep.subr.mxu0 0.0
    %2023 = vmatpush1.msra.mxu0 0.0
    %2024 = vmatprep.subr.mxu0 0.0
    %2025 = vmatpush1.msra.mxu0 0.0
    %2026 = vmatprep.subr.mxu0 0.0
    %2027 = vmatpush1.msra.mxu0 0.0
    %2028 = vmatprep.subr.mxu0 0.0
    %2029 = vmatpush1.msra.mxu0 0.0
    %2030 = vmatprep.subr.mxu0 0.0
    %2031 = vmatpush1.msra.mxu0 0.0
    %2032 = vmatprep.subr.mxu0 0.0
    %2033 = vmatpush1.msra.mxu0 0.0
    %2034 = vmatprep.mubr.f32.mxu0 0.0
    %2035 = vmatmul.mubr.f32.gmra.mrb[0].mxu0 %v1968
    %v2036 = vpop.f32.mrb[0].mxu0
    %v2037 = vadd.f32 0.0, %v2036
    %v2038 = vpop.f32.mrb[0].mxu0
    %v2039 = vadd.f32 0.0, %v2038
    %2040 = vdwg.mxu0
    %2041 = vmatprep.subr.mxu0 0.0
    %2042 = vmatpush1.msra.mxu0 %v1961
    %2043 = vmatprep.subr.mxu0 0.0
    %2044 = vmatpush1.msra.mxu0 0.0
    %2045 = vmatprep.subr.mxu0 0.0
    %2046 = vmatpush1.msra.mxu0 0.0
    %2047 = vmatprep.subr.mxu0 0.0
    %2048 = vmatpush1.msra.mxu0 0.0
    %2049 = vmatprep.subr.mxu0 0.0
    %2050 = vmatpush1.msra.mxu0 0.0
    %2051 = vmatprep.subr.mxu0 0.0
    %2052 = vmatpush1.msra.mxu0 0.0
    %2053 = vmatprep.subr.mxu0 0.0
    %2054 = vmatpush1.msra.mxu0 0.0
    %2055 = vmatprep.subr.mxu0 0.0
    %2056 = vmatpush1.msra.mxu0 0.0
    %2057 = vmatprep.subr.mxu0 0.0
    %2058 = vmatpush1.msra.mxu0 0.0
    %2059 = vmatprep.subr.mxu0 0.0
    %2060 = vmatpush1.msra.mxu0 0.0
    %2061 = vmatprep.subr.mxu0 0.0
    %2062 = vmatpush1.msra.mxu0 0.0
    %2063 = vmatprep.subr.mxu0 0.0
    %2064 = vmatpush1.msra.mxu0 0.0
    %2065 = vmatprep.subr.mxu0 0.0
    %2066 = vmatpush1.msra.mxu0 0.0
    %2067 = vmatprep.subr.mxu0 0.0
    %2068 = vmatpush1.msra.mxu0 0.0
    %2069 = vmatprep.subr.mxu0 0.0
    %2070 = vmatpush1.msra.mxu0 0.0
    %2071 = vmatprep.subr.mxu0 0.0
    %2072 = vmatpush1.msra.mxu0 0.0
    %2073 = vmatprep.subr.mxu0 0.0
    %2074 = vmatpush1.msra.mxu0 0.0
    %2075 = vmatprep.subr.mxu0 0.0
    %2076 = vmatpush1.msra.mxu0 0.0
    %2077 = vmatprep.subr.mxu0 0.0
    %2078 = vmatpush1.msra.mxu0 0.0
    %2079 = vmatprep.subr.mxu0 0.0
    %2080 = vmatpush1.msra.mxu0 0.0
    %2081 = vmatprep.subr.mxu0 0.0
    %2082 = vmatpush1.msra.mxu0 0.0
    %2083 = vmatprep.subr.mxu0 0.0
    %2084 = vmatpush1.msra.mxu0 0.0
    %2085 = vmatprep.subr.mxu0 0.0
    %2086 = vmatpush1.msra.mxu0 0.0
    %2087 = vmatprep.subr.mxu0 0.0
    %2088 = vmatpush1.msra.mxu0 0.0
    %2089 = vmatprep.subr.mxu0 0.0
    %2090 = vmatpush1.msra.mxu0 0.0
    %2091 = vmatprep.subr.mxu0 0.0
    %2092 = vmatpush1.msra.mxu0 0.0
    %2093 = vmatprep.subr.mxu0 0.0
    %2094 = vmatpush1.msra.mxu0 0.0
    %2095 = vmatprep.subr.mxu0 0.0
    %2096 = vmatpush1.msra.mxu0 0.0
    %2097 = vmatprep.subr.mxu0 0.0
    %2098 = vmatpush1.msra.mxu0 0.0
    %2099 = vmatprep.subr.mxu0 0.0
    %2100 = vmatpush1.msra.mxu0 0.0
    %2101 = vmatprep.subr.mxu0 0.0
    %2102 = vmatpush1.msra.mxu0 0.0
    %2103 = vmatprep.subr.mxu0 0.0
    %2104 = vmatpush1.msra.mxu0 0.0
    %2105 = vmatprep.mubr.f32.mxu0 0.0
    %2106 = vmatmul.mubr.f32.gmra.mrb[0].mxu0 %v1968
    %v2107 = vpop.f32.mrb[0].mxu0
    %v2108 = vadd.f32 0.0, %v2107
    %v2109 = vpop.f32.mrb[0].mxu0
    %2110 = vdwg.mxu0
    %v2111 = vadd.f32 %v1952, %v2037
    %v2112 = vadd.f32 %v1953, %v2039
    %v2113 = vadd.f32 %v1954, %v2108
    %v2114 = vld [vmem:[%s654] sm:$0xff]
    %2115 = vrot.lane.b32.xlu0 %v1490, 109
    %v2116 = vpop.permute.xlu0 %2115
    %2117 = vrot.lane.b32.xlu0 %v1491, 109
    %v2118 = vpop.permute.xlu0 %2117
    %2119 = vrot.lane.b32.xlu0 %v1492, 109
    %v2120 = vpop.permute.xlu0 %2119
    %v2121 = vsel %vm662, %v2116, %v2118
    %v2122 = vsel %vm662, %v2118, %v2120
    %v2127 = vsel %vm43, %v2114, 0
    %2129 = vmatprep.subr.mxu0 %v2122
    %2130 = vmatpush1.msra.mxu0 %v2121
    %2131 = vmatprep.subr.mxu0 0.0
    %2132 = vmatpush1.msra.mxu0 0.0
    %2133 = vmatprep.subr.mxu0 0.0
    %2134 = vmatpush1.msra.mxu0 0.0
    %2135 = vmatprep.subr.mxu0 0.0
    %2136 = vmatpush1.msra.mxu0 0.0
    %2137 = vmatprep.subr.mxu0 0.0
    %2138 = vmatpush1.msra.mxu0 0.0
    %2139 = vmatprep.subr.mxu0 0.0
    %2140 = vmatpush1.msra.mxu0 0.0
    %2141 = vmatprep.subr.mxu0 0.0
    %2142 = vmatpush1.msra.mxu0 0.0
    %2143 = vmatprep.subr.mxu0 0.0
    %2144 = vmatpush1.msra.mxu0 0.0
    %2145 = vmatprep.subr.mxu0 0.0
    %2146 = vmatpush1.msra.mxu0 0.0
    %2147 = vmatprep.subr.mxu0 0.0
    %2148 = vmatpush1.msra.mxu0 0.0
    %2149 = vmatprep.subr.mxu0 0.0
    %2150 = vmatpush1.msra.mxu0 0.0
    %2151 = vmatprep.subr.mxu0 0.0
    %2152 = vmatpush1.msra.mxu0 0.0
    %2153 = vmatprep.subr.mxu0 0.0
    %2154 = vmatpush1.msra.mxu0 0.0
    %2155 = vmatprep.subr.mxu0 0.0
    %2156 = vmatpush1.msra.mxu0 0.0
    %2157 = vmatprep.subr.mxu0 0.0
    %2158 = vmatpush1.msra.mxu0 0.0
    %2159 = vmatprep.subr.mxu0 0.0
    %2160 = vmatpush1.msra.mxu0 0.0
    %2161 = vmatprep.subr.mxu0 0.0
    %2162 = vmatpush1.msra.mxu0 0.0
    %2163 = vmatprep.subr.mxu0 0.0
    %2164 = vmatpush1.msra.mxu0 0.0
    %2165 = vmatprep.subr.mxu0 0.0
    %2166 = vmatpush1.msra.mxu0 0.0
    %2167 = vmatprep.subr.mxu0 0.0
    %2168 = vmatpush1.msra.mxu0 0.0
    %2169 = vmatprep.subr.mxu0 0.0
    %2170 = vmatpush1.msra.mxu0 0.0
    %2171 = vmatprep.subr.mxu0 0.0
    %2172 = vmatpush1.msra.mxu0 0.0
    %2173 = vmatprep.subr.mxu0 0.0
    %2174 = vmatpush1.msra.mxu0 0.0
    %2175 = vmatprep.subr.mxu0 0.0
    %2176 = vmatpush1.msra.mxu0 0.0
    %2177 = vmatprep.subr.mxu0 0.0
    %2178 = vmatpush1.msra.mxu0 0.0
    %2179 = vmatprep.subr.mxu0 0.0
    %2180 = vmatpush1.msra.mxu0 0.0
    %2181 = vmatprep.subr.mxu0 0.0
    %2182 = vmatpush1.msra.mxu0 0.0
    %2183 = vmatprep.subr.mxu0 0.0
    %2184 = vmatpush1.msra.mxu0 0.0
    %2185 = vmatprep.subr.mxu0 0.0
    %2186 = vmatpush1.msra.mxu0 0.0
    %2187 = vmatprep.subr.mxu0 0.0
    %2188 = vmatpush1.msra.mxu0 0.0
    %2189 = vmatprep.subr.mxu0 0.0
    %2190 = vmatpush1.msra.mxu0 0.0
    %2191 = vmatprep.subr.mxu0 0.0
    %2192 = vmatpush1.msra.mxu0 0.0
    %2193 = vmatprep.mubr.f32.mxu0 0.0
    %2194 = vmatmul.mubr.f32.gmra.mrb[0].mxu0 %v2127
    %v2195 = vpop.f32.mrb[0].mxu0
    %v2196 = vadd.f32 0.0, %v2195
    %v2197 = vpop.f32.mrb[0].mxu0
    %v2198 = vadd.f32 0.0, %v2197
    %2199 = vdwg.mxu0
    %2200 = vmatprep.subr.mxu0 0.0
    %2201 = vmatpush1.msra.mxu0 %v2120
    %2202 = vmatprep.subr.mxu0 0.0
    %2203 = vmatpush1.msra.mxu0 0.0
    %2204 = vmatprep.subr.mxu0 0.0
    %2205 = vmatpush1.msra.mxu0 0.0
    %2206 = vmatprep.subr.mxu0 0.0
    %2207 = vmatpush1.msra.mxu0 0.0
    %2208 = vmatprep.subr.mxu0 0.0
    %2209 = vmatpush1.msra.mxu0 0.0
    %2210 = vmatprep.subr.mxu0 0.0
    %2211 = vmatpush1.msra.mxu0 0.0
    %2212 = vmatprep.subr.mxu0 0.0
    %2213 = vmatpush1.msra.mxu0 0.0
    %2214 = vmatprep.subr.mxu0 0.0
    %2215 = vmatpush1.msra.mxu0 0.0
    %2216 = vmatprep.subr.mxu0 0.0
    %2217 = vmatpush1.msra.mxu0 0.0
    %2218 = vmatprep.subr.mxu0 0.0
    %2219 = vmatpush1.msra.mxu0 0.0
    %2220 = vmatprep.subr.mxu0 0.0
    %2221 = vmatpush1.msra.mxu0 0.0
    %2222 = vmatprep.subr.mxu0 0.0
    %2223 = vmatpush1.msra.mxu0 0.0
    %2224 = vmatprep.subr.mxu0 0.0
    %2225 = vmatpush1.msra.mxu0 0.0
    %2226 = vmatprep.subr.mxu0 0.0
    %2227 = vmatpush1.msra.mxu0 0.0
    %2228 = vmatprep.subr.mxu0 0.0
    %2229 = vmatpush1.msra.mxu0 0.0
    %2230 = vmatprep.subr.mxu0 0.0
    %2231 = vmatpush1.msra.mxu0 0.0
    %2232 = vmatprep.subr.mxu0 0.0
    %2233 = vmatpush1.msra.mxu0 0.0
    %2234 = vmatprep.subr.mxu0 0.0
    %2235 = vmatpush1.msra.mxu0 0.0
    %2236 = vmatprep.subr.mxu0 0.0
    %2237 = vmatpush1.msra.mxu0 0.0
    %2238 = vmatprep.subr.mxu0 0.0
    %2239 = vmatpush1.msra.mxu0 0.0
    %2240 = vmatprep.subr.mxu0 0.0
    %2241 = vmatpush1.msra.mxu0 0.0
    %2242 = vmatprep.subr.mxu0 0.0
    %2243 = vmatpush1.msra.mxu0 0.0
    %2244 = vmatprep.subr.mxu0 0.0
    %2245 = vmatpush1.msra.mxu0 0.0
    %2246 = vmatprep.subr.mxu0 0.0
    %2247 = vmatpush1.msra.mxu0 0.0
    %2248 = vmatprep.subr.mxu0 0.0
    %2249 = vmatpush1.msra.mxu0 0.0
    %2250 = vmatprep.subr.mxu0 0.0
    %2251 = vmatpush1.msra.mxu0 0.0
    %2252 = vmatprep.subr.mxu0 0.0
    %2253 = vmatpush1.msra.mxu0 0.0
    %2254 = vmatprep.subr.mxu0 0.0
    %2255 = vmatpush1.msra.mxu0 0.0
    %2256 = vmatprep.subr.mxu0 0.0
    %2257 = vmatpush1.msra.mxu0 0.0
    %2258 = vmatprep.subr.mxu0 0.0
    %2259 = vmatpush1.msra.mxu0 0.0
    %2260 = vmatprep.subr.mxu0 0.0
    %2261 = vmatpush1.msra.mxu0 0.0
    %2262 = vmatprep.subr.mxu0 0.0
    %2263 = vmatpush1.msra.mxu0 0.0
    %2264 = vmatprep.mubr.f32.mxu0 0.0
    %2265 = vmatmul.mubr.f32.gmra.mrb[0].mxu0 %v2127
    %v2266 = vpop.f32.mrb[0].mxu0
    %v2267 = vadd.f32 0.0, %v2266
    %v2268 = vpop.f32.mrb[0].mxu0
    %2269 = vdwg.mxu0
    %v2270 = vadd.f32 %v2111, %v2196
    %v2271 = vadd.f32 %v2112, %v2198
    %v2272 = vadd.f32 %v2113, %v2267
    %v2273 = vld [vmem:[%s815] sm:$0xff]
    %2274 = vrot.lane.b32.xlu0 %v1490, 108
    %v2275 = vpop.permute.xlu0 %2274
    %2276 = vrot.lane.b32.xlu0 %v1491, 108
    %v2277 = vpop.permute.xlu0 %2276
    %2278 = vrot.lane.b32.xlu0 %v1492, 108
    %v2279 = vpop.permute.xlu0 %2278
    %v2280 = vsel %vm823, %v2275, %v2277
    %v2281 = vsel %vm823, %v2277, %v2279
    %v2286 = vsel %vm43, %v2273, 0
    %2288 = vmatprep.subr.mxu0 %v2281
    %2289 = vmatpush1.msra.mxu0 %v2280
    %2290 = vmatprep.subr.mxu0 0.0
    %2291 = vmatpush1.msra.mxu0 0.0
    %2292 = vmatprep.subr.mxu0 0.0
    %2293 = vmatpush1.msra.mxu0 0.0
    %2294 = vmatprep.subr.mxu0 0.0
    %2295 = vmatpush1.msra.mxu0 0.0
    %2296 = vmatprep.subr.mxu0 0.0
    %2297 = vmatpush1.msra.mxu0 0.0
    %2298 = vmatprep.subr.mxu0 0.0
    %2299 = vmatpush1.msra.mxu0 0.0
    %2300 = vmatprep.subr.mxu0 0.0
    %2301 = vmatpush1.msra.mxu0 0.0
    %2302 = vmatprep.subr.mxu0 0.0
    %2303 = vmatpush1.msra.mxu0 0.0
    %2304 = vmatprep.subr.mxu0 0.0
    %2305 = vmatpush1.msra.mxu0 0.0
    %2306 = vmatprep.subr.mxu0 0.0
    %2307 = vmatpush1.msra.mxu0 0.0
    %2308 = vmatprep.subr.mxu0 0.0
    %2309 = vmatpush1.msra.mxu0 0.0
    %2310 = vmatprep.subr.mxu0 0.0
    %2311 = vmatpush1.msra.mxu0 0.0
    %2312 = vmatprep.subr.mxu0 0.0
    %2313 = vmatpush1.msra.mxu0 0.0
    %2314 = vmatprep.subr.mxu0 0.0
    %2315 = vmatpush1.msra.mxu0 0.0
    %2316 = vmatprep.subr.mxu0 0.0
    %2317 = vmatpush1.msra.mxu0 0.0
    %2318 = vmatprep.subr.mxu0 0.0
    %2319 = vmatpush1.msra.mxu0 0.0
    %2320 = vmatprep.subr.mxu0 0.0
    %2321 = vmatpush1.msra.mxu0 0.0
    %2322 = vmatprep.subr.mxu0 0.0
    %2323 = vmatpush1.msra.mxu0 0.0
    %2324 = vmatprep.subr.mxu0 0.0
    %2325 = vmatpush1.msra.mxu0 0.0
    %2326 = vmatprep.subr.mxu0 0.0
    %2327 = vmatpush1.msra.mxu0 0.0
    %2328 = vmatprep.subr.mxu0 0.0
    %2329 = vmatpush1.msra.mxu0 0.0
    %2330 = vmatprep.subr.mxu0 0.0
    %2331 = vmatpush1.msra.mxu0 0.0
    %2332 = vmatprep.subr.mxu0 0.0
    %2333 = vmatpush1.msra.mxu0 0.0
    %2334 = vmatprep.subr.mxu0 0.0
    %2335 = vmatpush1.msra.mxu0 0.0
    %2336 = vmatprep.subr.mxu0 0.0
    %2337 = vmatpush1.msra.mxu0 0.0
    %2338 = vmatprep.subr.mxu0 0.0
    %2339 = vmatpush1.msra.mxu0 0.0
    %2340 = vmatprep.subr.mxu0 0.0
    %2341 = vmatpush1.msra.mxu0 0.0
    %2342 = vmatprep.subr.mxu0 0.0
    %2343 = vmatpush1.msra.mxu0 0.0
    %2344 = vmatprep.subr.mxu0 0.0
    %2345 = vmatpush1.msra.mxu0 0.0
    %2346 = vmatprep.subr.mxu0 0.0
    %2347 = vmatpush1.msra.mxu0 0.0
    %2348 = vmatprep.subr.mxu0 0.0
    %2349 = vmatpush1.msra.mxu0 0.0
    %2350 = vmatprep.subr.mxu0 0.0
    %2351 = vmatpush1.msra.mxu0 0.0
    %2352 = vmatprep.mubr.f32.mxu0 0.0
    %2353 = vmatmul.mubr.f32.gmra.mrb[0].mxu0 %v2286
    %v2354 = vpop.f32.mrb[0].mxu0
    %v2355 = vadd.f32 0.0, %v2354
    %v2356 = vpop.f32.mrb[0].mxu0
    %v2357 = vadd.f32 0.0, %v2356
    %2358 = vdwg.mxu0
    %2359 = vmatprep.subr.mxu0 0.0
    %2360 = vmatpush1.msra.mxu0 %v2279
    %2361 = vmatprep.subr.mxu0 0.0
    %2362 = vmatpush1.msra.mxu0 0.0
    %2363 = vmatprep.subr.mxu0 0.0
    %2364 = vmatpush1.msra.mxu0 0.0
    %2365 = vmatprep.subr.mxu0 0.0
    %2366 = vmatpush1.msra.mxu0 0.0
    %2367 = vmatprep.subr.mxu0 0.0
    %2368 = vmatpush1.msra.mxu0 0.0
    %2369 = vmatprep.subr.mxu0 0.0
    %2370 = vmatpush1.msra.mxu0 0.0
    %2371 = vmatprep.subr.mxu0 0.0
    %2372 = vmatpush1.msra.mxu0 0.0
    %2373 = vmatprep.subr.mxu0 0.0
    %2374 = vmatpush1.msra.mxu0 0.0
    %2375 = vmatprep.subr.mxu0 0.0
    %2376 = vmatpush1.msra.mxu0 0.0
    %2377 = vmatprep.subr.mxu0 0.0
    %2378 = vmatpush1.msra.mxu0 0.0
    %2379 = vmatprep.subr.mxu0 0.0
    %2380 = vmatpush1.msra.mxu0 0.0
    %2381 = vmatprep.subr.mxu0 0.0
    %2382 = vmatpush1.msra.mxu0 0.0
    %2383 = vmatprep.subr.mxu0 0.0
    %2384 = vmatpush1.msra.mxu0 0.0
    %2385 = vmatprep.subr.mxu0 0.0
    %2386 = vmatpush1.msra.mxu0 0.0
    %2387 = vmatprep.subr.mxu0 0.0
    %2388 = vmatpush1.msra.mxu0 0.0
    %2389 = vmatprep.subr.mxu0 0.0
    %2390 = vmatpush1.msra.mxu0 0.0
    %2391 = vmatprep.subr.mxu0 0.0
    %2392 = vmatpush1.msra.mxu0 0.0
    %2393 = vmatprep.subr.mxu0 0.0
    %2394 = vmatpush1.msra.mxu0 0.0
    %2395 = vmatprep.subr.mxu0 0.0
    %2396 = vmatpush1.msra.mxu0 0.0
    %2397 = vmatprep.subr.mxu0 0.0
    %2398 = vmatpush1.msra.mxu0 0.0
    %2399 = vmatprep.subr.mxu0 0.0
    %2400 = vmatpush1.msra.mxu0 0.0
    %2401 = vmatprep.subr.mxu0 0.0
    %2402 = vmatpush1.msra.mxu0 0.0
    %2403 = vmatprep.subr.mxu0 0.0
    %2404 = vmatpush1.msra.mxu0 0.0
    %2405 = vmatprep.subr.mxu0 0.0
    %2406 = vmatpush1.msra.mxu0 0.0
    %2407 = vmatprep.subr.mxu0 0.0
    %2408 = vmatpush1.msra.mxu0 0.0
    %2409 = vmatprep.subr.mxu0 0.0
    %2410 = vmatpush1.msra.mxu0 0.0
    %2411 = vmatprep.subr.mxu0 0.0
    %2412 = vmatpush1.msra.mxu0 0.0
    %2413 = vmatprep.subr.mxu0 0.0
    %2414 = vmatpush1.msra.mxu0 0.0
    %2415 = vmatprep.subr.mxu0 0.0
    %2416 = vmatpush1.msra.mxu0 0.0
    %2417 = vmatprep.subr.mxu0 0.0
    %2418 = vmatpush1.msra.mxu0 0.0
    %2419 = vmatprep.subr.mxu0 0.0
    %2420 = vmatpush1.msra.mxu0 0.0
    %2421 = vmatprep.subr.mxu0 0.0
    %2422 = vmatpush1.msra.mxu0 0.0
    %2423 = vmatprep.mubr.f32.mxu0 0.0
    %2424 = vmatmul.mubr.f32.gmra.mrb[0].mxu0 %v2286
    %v2425 = vpop.f32.mrb[0].mxu0
    %v2426 = vadd.f32 0.0, %v2425
    %v2427 = vpop.f32.mrb[0].mxu0
    %2428 = vdwg.mxu0
    %v2429 = vadd.f32 %v2270, %v2355
    %v2430 = vadd.f32 %v2271, %v2357
    %v2431 = vadd.f32 %v2272, %v2426
    %v2432 = vld [vmem:[%s976] sm:$0xff]
    %2433 = vrot.lane.b32.xlu0 %v1490, 92
    %v2434 = vpop.permute.xlu0 %2433
    %2435 = vrot.lane.b32.xlu0 %v1491, 92
    %v2436 = vpop.permute.xlu0 %2435
    %2437 = vrot.lane.b32.xlu0 %v1492, 92
    %v2438 = vpop.permute.xlu0 %2437
    %v2439 = vsel %vm984, %v2434, %v2436
    %v2440 = vsel %vm984, %v2436, %v2438
    %v2445 = vsel %vm43, %v2432, 0
    %2447 = vmatprep.subr.mxu0 %v2440
    %2448 = vmatpush1.msra.mxu0 %v2439
    %2449 = vmatprep.subr.mxu0 0.0
    %2450 = vmatpush1.msra.mxu0 0.0
    %2451 = vmatprep.subr.mxu0 0.0
    %2452 = vmatpush1.msra.mxu0 0.0
    %2453 = vmatprep.subr.mxu0 0.0
    %2454 = vmatpush1.msra.mxu0 0.0
    %2455 = vmatprep.subr.mxu0 0.0
    %2456 = vmatpush1.msra.mxu0 0.0
    %2457 = vmatprep.subr.mxu0 0.0
    %2458 = vmatpush1.msra.mxu0 0.0
    %2459 = vmatprep.subr.mxu0 0.0
    %2460 = vmatpush1.msra.mxu0 0.0
    %2461 = vmatprep.subr.mxu0 0.0
    %2462 = vmatpush1.msra.mxu0 0.0
    %2463 = vmatprep.subr.mxu0 0.0
    %2464 = vmatpush1.msra.mxu0 0.0
    %2465 = vmatprep.subr.mxu0 0.0
    %2466 = vmatpush1.msra.mxu0 0.0
    %2467 = vmatprep.subr.mxu0 0.0
    %2468 = vmatpush1.msra.mxu0 0.0
    %2469 = vmatprep.subr.mxu0 0.0
    %2470 = vmatpush1.msra.mxu0 0.0
    %2471 = vmatprep.subr.mxu0 0.0
    %2472 = vmatpush1.msra.mxu0 0.0
    %2473 = vmatprep.subr.mxu0 0.0
    %2474 = vmatpush1.msra.mxu0 0.0
    %2475 = vmatprep.subr.mxu0 0.0
    %2476 = vmatpush1.msra.mxu0 0.0
    %2477 = vmatprep.subr.mxu0 0.0
    %2478 = vmatpush1.msra.mxu0 0.0
    %2479 = vmatprep.subr.mxu0 0.0
    %2480 = vmatpush1.msra.mxu0 0.0
    %2481 = vmatprep.subr.mxu0 0.0
    %2482 = vmatpush1.msra.mxu0 0.0
    %2483 = vmatprep.subr.mxu0 0.0
    %2484 = vmatpush1.msra.mxu0 0.0
    %2485 = vmatprep.subr.mxu0 0.0
    %2486 = vmatpush1.msra.mxu0 0.0
    %2487 = vmatprep.subr.mxu0 0.0
    %2488 = vmatpush1.msra.mxu0 0.0
    %2489 = vmatprep.subr.mxu0 0.0
    %2490 = vmatpush1.msra.mxu0 0.0
    %2491 = vmatprep.subr.mxu0 0.0
    %2492 = vmatpush1.msra.mxu0 0.0
    %2493 = vmatprep.subr.mxu0 0.0
    %2494 = vmatpush1.msra.mxu0 0.0
    %2495 = vmatprep.subr.mxu0 0.0
    %2496 = vmatpush1.msra.mxu0 0.0
    %2497 = vmatprep.subr.mxu0 0.0
    %2498 = vmatpush1.msra.mxu0 0.0
    %2499 = vmatprep.subr.mxu0 0.0
    %2500 = vmatpush1.msra.mxu0 0.0
    %2501 = vmatprep.subr.mxu0 0.0
    %2502 = vmatpush1.msra.mxu0 0.0
    %2503 = vmatprep.subr.mxu0 0.0
    %2504 = vmatpush1.msra.mxu0 0.0
    %2505 = vmatprep.subr.mxu0 0.0
    %2506 = vmatpush1.msra.mxu0 0.0
    %2507 = vmatprep.subr.mxu0 0.0
    %2508 = vmatpush1.msra.mxu0 0.0
    %2509 = vmatprep.subr.mxu0 0.0
    %2510 = vmatpush1.msra.mxu0 0.0
    %2511 = vmatprep.mubr.f32.mxu0 0.0
    %2512 = vmatmul.mubr.f32.gmra.mrb[0].mxu0 %v2445
    %v2513 = vpop.f32.mrb[0].mxu0
    %v2514 = vadd.f32 0.0, %v2513
    %v2515 = vpop.f32.mrb[0].mxu0
    %v2516 = vadd.f32 0.0, %v2515
    %2517 = vdwg.mxu0
    %2518 = vmatprep.subr.mxu0 0.0
    %2519 = vmatpush1.msra.mxu0 %v2438
    %2520 = vmatprep.subr.mxu0 0.0
    %2521 = vmatpush1.msra.mxu0 0.0
    %2522 = vmatprep.subr.mxu0 0.0
    %2523 = vmatpush1.msra.mxu0 0.0
    %2524 = vmatprep.subr.mxu0 0.0
    %2525 = vmatpush1.msra.mxu0 0.0
    %2526 = vmatprep.subr.mxu0 0.0
    %2527 = vmatpush1.msra.mxu0 0.0
    %2528 = vmatprep.subr.mxu0 0.0
    %2529 = vmatpush1.msra.mxu0 0.0
    %2530 = vmatprep.subr.mxu0 0.0
    %2531 = vmatpush1.msra.mxu0 0.0
    %2532 = vmatprep.subr.mxu0 0.0
    %2533 = vmatpush1.msra.mxu0 0.0
    %2534 = vmatprep.subr.mxu0 0.0
    %2535 = vmatpush1.msra.mxu0 0.0
    %2536 = vmatprep.subr.mxu0 0.0
    %2537 = vmatpush1.msra.mxu0 0.0
    %2538 = vmatprep.subr.mxu0 0.0
    %2539 = vmatpush1.msra.mxu0 0.0
    %2540 = vmatprep.subr.mxu0 0.0
    %2541 = vmatpush1.msra.mxu0 0.0
    %2542 = vmatprep.subr.mxu0 0.0
    %2543 = vmatpush1.msra.mxu0 0.0
    %2544 = vmatprep.subr.mxu0 0.0
    %2545 = vmatpush1.msra.mxu0 0.0
    %2546 = vmatprep.subr.mxu0 0.0
    %2547 = vmatpush1.msra.mxu0 0.0
    %2548 = vmatprep.subr.mxu0 0.0
    %2549 = vmatpush1.msra.mxu0 0.0
    %2550 = vmatprep.subr.mxu0 0.0
    %2551 = vmatpush1.msra.mxu0 0.0
    %2552 = vmatprep.subr.mxu0 0.0
    %2553 = vmatpush1.msra.mxu0 0.0
    %2554 = vmatprep.subr.mxu0 0.0
    %2555 = vmatpush1.msra.mxu0 0.0
    %2556 = vmatprep.subr.mxu0 0.0
    %2557 = vmatpush1.msra.mxu0 0.0
    %2558 = vmatprep.subr.mxu0 0.0
    %2559 = vmatpush1.msra.mxu0 0.0
    %2560 = vmatprep.subr.mxu0 0.0
    %2561 = vmatpush1.msra.mxu0 0.0
    %2562 = vmatprep.subr.mxu0 0.0
    %2563 = vmatpush1.msra.mxu0 0.0
    %2564 = vmatprep.subr.mxu0 0.0
    %2565 = vmatpush1.msra.mxu0 0.0
    %2566 = vmatprep.subr.mxu0 0.0
    %2567 = vmatpush1.msra.mxu0 0.0
    %2568 = vmatprep.subr.mxu0 0.0
    %2569 = vmatpush1.msra.mxu0 0.0
    %2570 = vmatprep.subr.mxu0 0.0
    %2571 = vmatpush1.msra.mxu0 0.0
    %2572 = vmatprep.subr.mxu0 0.0
    %2573 = vmatpush1.msra.mxu0 0.0
    %2574 = vmatprep.subr.mxu0 0.0
    %2575 = vmatpush1.msra.mxu0 0.0
    %2576 = vmatprep.subr.mxu0 0.0
    %2577 = vmatpush1.msra.mxu0 0.0
    %2578 = vmatprep.subr.mxu0 0.0
    %2579 = vmatpush1.msra.mxu0 0.0
    %2580 = vmatprep.subr.mxu0 0.0
    %2581 = vmatpush1.msra.mxu0 0.0
    %2582 = vmatprep.mubr.f32.mxu0 0.0
    %2583 = vmatmul.mubr.f32.gmra.mrb[0].mxu0 %v2445
    %v2584 = vpop.f32.mrb[0].mxu0
    %v2585 = vadd.f32 0.0, %v2584
    %v2586 = vpop.f32.mrb[0].mxu0
    %2587 = vdwg.mxu0
    %v2588 = vadd.f32 %v2429, %v2514
    %v2589 = vadd.f32 %v2430, %v2516
    %v2590 = vadd.f32 %v2431, %v2585
    %v2591 = vld [vmem:[%s1137] sm:$0xff]
    %2592 = vrot.lane.b32.xlu0 %v1490, 91
    %v2593 = vpop.permute.xlu0 %2592
    %2594 = vrot.lane.b32.xlu0 %v1491, 91
    %v2595 = vpop.permute.xlu0 %2594
    %2596 = vrot.lane.b32.xlu0 %v1492, 91
    %v2597 = vpop.permute.xlu0 %2596
    %v2598 = vsel %vm1145, %v2593, %v2595
    %v2599 = vsel %vm1145, %v2595, %v2597
    %v2604 = vsel %vm43, %v2591, 0
    %2606 = vmatprep.subr.mxu0 %v2599
    %2607 = vmatpush1.msra.mxu0 %v2598
    %2608 = vmatprep.subr.mxu0 0.0
    %2609 = vmatpush1.msra.mxu0 0.0
    %2610 = vmatprep.subr.mxu0 0.0
    %2611 = vmatpush1.msra.mxu0 0.0
    %2612 = vmatprep.subr.mxu0 0.0
    %2613 = vmatpush1.msra.mxu0 0.0
    %2614 = vmatprep.subr.mxu0 0.0
    %2615 = vmatpush1.msra.mxu0 0.0
    %2616 = vmatprep.subr.mxu0 0.0
    %2617 = vmatpush1.msra.mxu0 0.0
    %2618 = vmatprep.subr.mxu0 0.0
    %2619 = vmatpush1.msra.mxu0 0.0
    %2620 = vmatprep.subr.mxu0 0.0
    %2621 = vmatpush1.msra.mxu0 0.0
    %2622 = vmatprep.subr.mxu0 0.0
    %2623 = vmatpush1.msra.mxu0 0.0
    %2624 = vmatprep.subr.mxu0 0.0
    %2625 = vmatpush1.msra.mxu0 0.0
    %2626 = vmatprep.subr.mxu0 0.0
    %2627 = vmatpush1.msra.mxu0 0.0
    %2628 = vmatprep.subr.mxu0 0.0
    %2629 = vmatpush1.msra.mxu0 0.0
    %2630 = vmatprep.subr.mxu0 0.0
    %2631 = vmatpush1.msra.mxu0 0.0
    %2632 = vmatprep.subr.mxu0 0.0
    %2633 = vmatpush1.msra.mxu0 0.0
    %2634 = vmatprep.subr.mxu0 0.0
    %2635 = vmatpush1.msra.mxu0 0.0
    %2636 = vmatprep.subr.mxu0 0.0
    %2637 = vmatpush1.msra.mxu0 0.0
    %2638 = vmatprep.subr.mxu0 0.0
    %2639 = vmatpush1.msra.mxu0 0.0
    %2640 = vmatprep.subr.mxu0 0.0
    %2641 = vmatpush1.msra.mxu0 0.0
    %2642 = vmatprep.subr.mxu0 0.0
    %2643 = vmatpush1.msra.mxu0 0.0
    %2644 = vmatprep.subr.mxu0 0.0
    %2645 = vmatpush1.msra.mxu0 0.0
    %2646 = vmatprep.subr.mxu0 0.0
    %2647 = vmatpush1.msra.mxu0 0.0
    %2648 = vmatprep.subr.mxu0 0.0
    %2649 = vmatpush1.msra.mxu0 0.0
    %2650 = vmatprep.subr.mxu0 0.0
    %2651 = vmatpush1.msra.mxu0 0.0
    %2652 = vmatprep.subr.mxu0 0.0
    %2653 = vmatpush1.msra.mxu0 0.0
    %2654 = vmatprep.subr.mxu0 0.0
    %2655 = vmatpush1.msra.mxu0 0.0
    %2656 = vmatprep.subr.mxu0 0.0
    %2657 = vmatpush1.msra.mxu0 0.0
    %2658 = vmatprep.subr.mxu0 0.0
    %2659 = vmatpush1.msra.mxu0 0.0
    %2660 = vmatprep.subr.mxu0 0.0
    %2661 = vmatpush1.msra.mxu0 0.0
    %2662 = vmatprep.subr.mxu0 0.0
    %2663 = vmatpush1.msra.mxu0 0.0
    %2664 = vmatprep.subr.mxu0 0.0
    %2665 = vmatpush1.msra.mxu0 0.0
    %2666 = vmatprep.subr.mxu0 0.0
    %2667 = vmatpush1.msra.mxu0 0.0
    %2668 = vmatprep.subr.mxu0 0.0
    %2669 = vmatpush1.msra.mxu0 0.0
    %2670 = vmatprep.mubr.f32.mxu0 0.0
    %2671 = vmatmul.mubr.f32.gmra.mrb[0].mxu0 %v2604
    %v2672 = vpop.f32.mrb[0].mxu0
    %v2673 = vadd.f32 0.0, %v2672
    %v2674 = vpop.f32.mrb[0].mxu0
    %v2675 = vadd.f32 0.0, %v2674
    %2676 = vdwg.mxu0
    %2677 = vmatprep.subr.mxu0 0.0
    %2678 = vmatpush1.msra.mxu0 %v2597
    %2679 = vmatprep.subr.mxu0 0.0
    %2680 = vmatpush1.msra.mxu0 0.0
    %2681 = vmatprep.subr.mxu0 0.0
    %2682 = vmatpush1.msra.mxu0 0.0
    %2683 = vmatprep.subr.mxu0 0.0
    %2684 = vmatpush1.msra.mxu0 0.0
    %2685 = vmatprep.subr.mxu0 0.0
    %2686 = vmatpush1.msra.mxu0 0.0
    %2687 = vmatprep.subr.mxu0 0.0
    %2688 = vmatpush1.msra.mxu0 0.0
    %2689 = vmatprep.subr.mxu0 0.0
    %2690 = vmatpush1.msra.mxu0 0.0
    %2691 = vmatprep.subr.mxu0 0.0
    %2692 = vmatpush1.msra.mxu0 0.0
    %2693 = vmatprep.subr.mxu0 0.0
    %2694 = vmatpush1.msra.mxu0 0.0
    %2695 = vmatprep.subr.mxu0 0.0
    %2696 = vmatpush1.msra.mxu0 0.0
    %2697 = vmatprep.subr.mxu0 0.0
    %2698 = vmatpush1.msra.mxu0 0.0
    %2699 = vmatprep.subr.mxu0 0.0
    %2700 = vmatpush1.msra.mxu0 0.0
    %2701 = vmatprep.subr.mxu0 0.0
    %2702 = vmatpush1.msra.mxu0 0.0
    %2703 = vmatprep.subr.mxu0 0.0
    %2704 = vmatpush1.msra.mxu0 0.0
    %2705 = vmatprep.subr.mxu0 0.0
    %2706 = vmatpush1.msra.mxu0 0.0
    %2707 = vmatprep.subr.mxu0 0.0
    %2708 = vmatpush1.msra.mxu0 0.0
    %2709 = vmatprep.subr.mxu0 0.0
    %2710 = vmatpush1.msra.mxu0 0.0
    %2711 = vmatprep.subr.mxu0 0.0
    %2712 = vmatpush1.msra.mxu0 0.0
    %2713 = vmatprep.subr.mxu0 0.0
    %2714 = vmatpush1.msra.mxu0 0.0
    %2715 = vmatprep.subr.mxu0 0.0
    %2716 = vmatpush1.msra.mxu0 0.0
    %2717 = vmatprep.subr.mxu0 0.0
    %2718 = vmatpush1.msra.mxu0 0.0
    %2719 = vmatprep.subr.mxu0 0.0
    %2720 = vmatpush1.msra.mxu0 0.0
    %2721 = vmatprep.subr.mxu0 0.0
    %2722 = vmatpush1.msra.mxu0 0.0
    %2723 = vmatprep.subr.mxu0 0.0
    %2724 = vmatpush1.msra.mxu0 0.0
    %2725 = vmatprep.subr.mxu0 0.0
    %2726 = vmatpush1.msra.mxu0 0.0
    %2727 = vmatprep.subr.mxu0 0.0
    %2728 = vmatpush1.msra.mxu0 0.0
    %2729 = vmatprep.subr.mxu0 0.0
    %2730 = vmatpush1.msra.mxu0 0.0
    %2731 = vmatprep.subr.mxu0 0.0
    %2732 = vmatpush1.msra.mxu0 0.0
    %2733 = vmatprep.subr.mxu0 0.0
    %2734 = vmatpush1.msra.mxu0 0.0
    %2735 = vmatprep.subr.mxu0 0.0
    %2736 = vmatpush1.msra.mxu0 0.0
    %2737 = vmatprep.subr.mxu0 0.0
    %2738 = vmatpush1.msra.mxu0 0.0
    %2739 = vmatprep.subr.mxu0 0.0
    %2740 = vmatpush1.msra.mxu0 0.0
    %2741 = vmatprep.mubr.f32.mxu0 0.0
    %2742 = vmatmul.mubr.f32.gmra.mrb[0].mxu0 %v2604
    %v2743 = vpop.f32.mrb[0].mxu0
    %v2744 = vadd.f32 0.0, %v2743
    %v2745 = vpop.f32.mrb[0].mxu0
    %2746 = vdwg.mxu0
    %v2747 = vadd.f32 %v2588, %v2673
    %v2748 = vadd.f32 %v2589, %v2675
    %v2749 = vadd.f32 %v2590, %v2744
    %v2750 = vld [vmem:[%s1298] sm:$0xff]
    %2751 = vrot.lane.b32.xlu0 %v1490, 90
    %v2752 = vpop.permute.xlu0 %2751
    %2753 = vrot.lane.b32.xlu0 %v1491, 90
    %v2754 = vpop.permute.xlu0 %2753
    %2755 = vrot.lane.b32.xlu0 %v1492, 90
    %v2756 = vpop.permute.xlu0 %2755
    %v2757 = vsel %vm1306, %v2752, %v2754
    %v2758 = vsel %vm1306, %v2754, %v2756
    %v2763 = vsel %vm43, %v2750, 0
    %2765 = vmatprep.subr.mxu0 %v2758
    %2766 = vmatpush1.msra.mxu0 %v2757
    %2767 = vmatprep.subr.mxu0 0.0
    %2768 = vmatpush1.msra.mxu0 0.0
    %2769 = vmatprep.subr.mxu0 0.0
    %2770 = vmatpush1.msra.mxu0 0.0
    %2771 = vmatprep.subr.mxu0 0.0
    %2772 = vmatpush1.msra.mxu0 0.0
    %2773 = vmatprep.subr.mxu0 0.0
    %2774 = vmatpush1.msra.mxu0 0.0
    %2775 = vmatprep.subr.mxu0 0.0
    %2776 = vmatpush1.msra.mxu0 0.0
    %2777 = vmatprep.subr.mxu0 0.0
    %2778 = vmatpush1.msra.mxu0 0.0
    %2779 = vmatprep.subr.mxu0 0.0
    %2780 = vmatpush1.msra.mxu0 0.0
    %2781 = vmatprep.subr.mxu0 0.0
    %2782 = vmatpush1.msra.mxu0 0.0
    %2783 = vmatprep.subr.mxu0 0.0
    %2784 = vmatpush1.msra.mxu0 0.0
    %2785 = vmatprep.subr.mxu0 0.0
    %2786 = vmatpush1.msra.mxu0 0.0
    %2787 = vmatprep.subr.mxu0 0.0
    %2788 = vmatpush1.msra.mxu0 0.0
    %2789 = vmatprep.subr.mxu0 0.0
    %2790 = vmatpush1.msra.mxu0 0.0
    %2791 = vmatprep.subr.mxu0 0.0
    %2792 = vmatpush1.msra.mxu0 0.0
    %2793 = vmatprep.subr.mxu0 0.0
    %2794 = vmatpush1.msra.mxu0 0.0
    %2795 = vmatprep.subr.mxu0 0.0
    %2796 = vmatpush1.msra.mxu0 0.0
    %2797 = vmatprep.subr.mxu0 0.0
    %2798 = vmatpush1.msra.mxu0 0.0
    %2799 = vmatprep.subr.mxu0 0.0
    %2800 = vmatpush1.msra.mxu0 0.0
    %2801 = vmatprep.subr.mxu0 0.0
    %2802 = vmatpush1.msra.mxu0 0.0
    %2803 = vmatprep.subr.mxu0 0.0
    %2804 = vmatpush1.msra.mxu0 0.0
    %2805 = vmatprep.subr.mxu0 0.0
    %2806 = vmatpush1.msra.mxu0 0.0
    %2807 = vmatprep.subr.mxu0 0.0
    %2808 = vmatpush1.msra.mxu0 0.0
    %2809 = vmatprep.subr.mxu0 0.0
    %2810 = vmatpush1.msra.mxu0 0.0
    %2811 = vmatprep.subr.mxu0 0.0
    %2812 = vmatpush1.msra.mxu0 0.0
    %2813 = vmatprep.subr.mxu0 0.0
    %2814 = vmatpush1.msra.mxu0 0.0
    %2815 = vmatprep.subr.mxu0 0.0
    %2816 = vmatpush1.msra.mxu0 0.0
    %2817 = vmatprep.subr.mxu0 0.0
    %2818 = vmatpush1.msra.mxu0 0.0
    %2819 = vmatprep.subr.mxu0 0.0
    %2820 = vmatpush1.msra.mxu0 0.0
    %2821 = vmatprep.subr.mxu0 0.0
    %2822 = vmatpush1.msra.mxu0 0.0
    %2823 = vmatprep.subr.mxu0 0.0
    %2824 = vmatpush1.msra.mxu0 0.0
    %2825 = vmatprep.subr.mxu0 0.0
    %2826 = vmatpush1.msra.mxu0 0.0
    %2827 = vmatprep.subr.mxu0 0.0
    %2828 = vmatpush1.msra.mxu0 0.0
    %2829 = vmatprep.mubr.f32.mxu0 0.0
    %2830 = vmatmul.mubr.f32.gmra.mrb[0].mxu0 %v2763
    %v2831 = vpop.f32.mrb[0].mxu0
    %v2832 = vadd.f32 0.0, %v2831
    %v2833 = vpop.f32.mrb[0].mxu0
    %v2834 = vadd.f32 0.0, %v2833
    %2835 = vdwg.mxu0
    %2836 = vmatprep.subr.mxu0 0.0
    %2837 = vmatpush1.msra.mxu0 %v2756
    %2838 = vmatprep.subr.mxu0 0.0
    %2839 = vmatpush1.msra.mxu0 0.0
    %2840 = vmatprep.subr.mxu0 0.0
    %2841 = vmatpush1.msra.mxu0 0.0
    %2842 = vmatprep.subr.mxu0 0.0
    %2843 = vmatpush1.msra.mxu0 0.0
    %2844 = vmatprep.subr.mxu0 0.0
    %2845 = vmatpush1.msra.mxu0 0.0
    %2846 = vmatprep.subr.mxu0 0.0
    %2847 = vmatpush1.msra.mxu0 0.0
    %2848 = vmatprep.subr.mxu0 0.0
    %2849 = vmatpush1.msra.mxu0 0.0
    %2850 = vmatprep.subr.mxu0 0.0
    %2851 = vmatpush1.msra.mxu0 0.0
    %2852 = vmatprep.subr.mxu0 0.0
    %2853 = vmatpush1.msra.mxu0 0.0
    %2854 = vmatprep.subr.mxu0 0.0
    %2855 = vmatpush1.msra.mxu0 0.0
    %2856 = vmatprep.subr.mxu0 0.0
    %2857 = vmatpush1.msra.mxu0 0.0
    %2858 = vmatprep.subr.mxu0 0.0
    %2859 = vmatpush1.msra.mxu0 0.0
    %2860 = vmatprep.subr.mxu0 0.0
    %2861 = vmatpush1.msra.mxu0 0.0
    %2862 = vmatprep.subr.mxu0 0.0
    %2863 = vmatpush1.msra.mxu0 0.0
    %2864 = vmatprep.subr.mxu0 0.0
    %2865 = vmatpush1.msra.mxu0 0.0
    %2866 = vmatprep.subr.mxu0 0.0
    %2867 = vmatpush1.msra.mxu0 0.0
    %2868 = vmatprep.subr.mxu0 0.0
    %2869 = vmatpush1.msra.mxu0 0.0
    %2870 = vmatprep.subr.mxu0 0.0
    %2871 = vmatpush1.msra.mxu0 0.0
    %2872 = vmatprep.subr.mxu0 0.0
    %2873 = vmatpush1.msra.mxu0 0.0
    %2874 = vmatprep.subr.mxu0 0.0
    %2875 = vmatpush1.msra.mxu0 0.0
    %2876 = vmatprep.subr.mxu0 0.0
    %2877 = vmatpush1.msra.mxu0 0.0
    %2878 = vmatprep.subr.mxu0 0.0
    %2879 = vmatpush1.msra.mxu0 0.0
    %2880 = vmatprep.subr.mxu0 0.0
    %2881 = vmatpush1.msra.mxu0 0.0
    %2882 = vmatprep.subr.mxu0 0.0
    %2883 = vmatpush1.msra.mxu0 0.0
    %2884 = vmatprep.subr.mxu0 0.0
    %2885 = vmatpush1.msra.mxu0 0.0
    %2886 = vmatprep.subr.mxu0 0.0
    %2887 = vmatpush1.msra.mxu0 0.0
    %2888 = vmatprep.subr.mxu0 0.0
    %2889 = vmatpush1.msra.mxu0 0.0
    %2890 = vmatprep.subr.mxu0 0.0
    %2891 = vmatpush1.msra.mxu0 0.0
    %2892 = vmatprep.subr.mxu0 0.0
    %2893 = vmatpush1.msra.mxu0 0.0
    %2894 = vmatprep.subr.mxu0 0.0
    %2895 = vmatpush1.msra.mxu0 0.0
    %2896 = vmatprep.subr.mxu0 0.0
    %2897 = vmatpush1.msra.mxu0 0.0
    %2898 = vmatprep.subr.mxu0 0.0
    %2899 = vmatpush1.msra.mxu0 0.0
    %2900 = vmatprep.mubr.f32.mxu0 0.0
    %2901 = vmatmul.mubr.f32.gmra.mrb[0].mxu0 %v2763
    %v2902 = vpop.f32.mrb[0].mxu0
    %v2903 = vadd.f32 0.0, %v2902
    %v2904 = vpop.f32.mrb[0].mxu0
    %2905 = vdwg.mxu0
    %v2906 = vadd.f32 %v2747, %v2832
    %v2907 = vadd.f32 %v2748, %v2834
    %v2908 = vadd.f32 %v2749, %v2903
    %s2909 = scalar_lea.vmem [#allocation2], 24
    %2910 = vst [vmem:[%s2909] sm:$0xff] %v2906
    %2911 = vst [vmem:[%s2909 + $0x8] sm:$0xff] %v2907
    %2912 = vst.msk [vmem:[%s2909 + $0x10] sm:$0xff] %vm1461, %v2908
    %v2913 = vmul.f32 %v2906, %v1467
    %v2914 = vmul.f32 %v2907, %v1471
    %v2915 = vmul.f32 %v2908, %v1475
    %v2916 = vadd.f32 %v2913, %v2914
    %v2917 = vsel %vm1461, %v2915, 0.0
    %v2918 = vadd.f32 %v2916, %v2917
    %2919 = vadd.xlane.f32.xlu0 %v2918
    %v2920 = vpop.xlane.xlu0 %2919
    %v2921 = vadd.f32 %v1487, %v2920
    %v2922 = vmul.f32 %v2921, 0.001953125
    %v2923 = vld [vmem:[#allocation2] sm:$0xff]
    %v2924 = vld [vmem:[#allocation2 + $0x8] sm:$0xff]
    %v2925 = vld [vmem:[#allocation2 + $0x10] sm:$0xff]
    %v2926 = vsub.f32 %v2923, %v2922
    %v2927 = vsub.f32 %v2924, %v2922
    %v2928 = vsub.f32 %v2925, %v2922
    %v2929 = vmul.f32 %v2926, %v1467
    %v2930 = vmul.f32 %v2927, %v1471
    %v2931 = vmul.f32 %v2928, %v1475
    %v2932 = vmul.f32 %v2929, %v2929
    %v2933 = vmul.f32 %v2930, %v2930
    %v2934 = vmul.f32 %v2931, %v2931
    %v2935 = vadd.f32 %v2932, %v2933
    %v2936 = vsel %vm1461, %v2934, 0.0
    %v2937 = vadd.f32 %v2935, %v2936
    %2938 = vadd.xlane.f32.xlu0 %v2937
    %v2939 = vpop.xlane.xlu0 %2938
    %v2940 = vadd.f32 %v2939, 0.0
    %v2941 = vld [vmem:[%s2909] sm:$0xff]
    %v2942 = vld [vmem:[%s2909 + $0x8] sm:$0xff]
    %v2943 = vld [vmem:[%s2909 + $0x10] sm:$0xff]
    %v2944 = vsub.f32 %v2941, %v2922
    %v2945 = vsub.f32 %v2942, %v2922
    %v2946 = vsub.f32 %v2943, %v2922
    %v2947 = vmul.f32 %v2944, %v1467
    %v2948 = vmul.f32 %v2945, %v1471
    %v2949 = vmul.f32 %v2946, %v1475
    %v2950 = vmul.f32 %v2947, %v2947
    %v2951 = vmul.f32 %v2948, %v2948
    %v2952 = vmul.f32 %v2949, %v2949
    %v2953 = vadd.f32 %v2950, %v2951
    %v2954 = vsel %vm1461, %v2952, 0.0
    %v2955 = vadd.f32 %v2953, %v2954
    %2956 = vadd.xlane.f32.xlu0 %v2955
    %v2957 = vpop.xlane.xlu0 %2956
    %v2958 = vadd.f32 %v2940, %v2957
    %v2959 = vmul.f32 %v2958, 0.001953125
    %v2960 = vadd.f32 %v2959, 1e-05
    %v2961 = vrsqrt.pop %v2960
    %v2962 = vld [vmem:[%s2] sm:$0xff]
    %v2963 = vmul.f32 %v2962, %v2961
    %v2964 = vld [vmem:[%s3] sm:$0xff]
    %v2965 = vmul.f32 %v2922, %v2963
    %v2966 = vsub.f32 %v2964, %v2965
    %2968 = vset.pattern.permute.xlu0 0
    %2969 = vperm.xlu0 %2968, %v2963
    %v2970 = vpop.permute.xlu0 %2969
    %v2972 = vmul.f32 %v2923, %v2970
    %v2973 = vmul.f32 %v2924, %v2970
    %v2974 = vmul.f32 %v2925, %v2970
    %2976 = vset.pattern.permute.xlu0 0
    %2977 = vperm.xlu0 %2976, %v2966
    %v2978 = vpop.permute.xlu0 %2977
    %v2980 = vadd.f32 %v2972, %v2978
    %v2981 = vadd.f32 %v2973, %v2978
    %v2982 = vadd.f32 %v2974, %v2978
    %v2983 = vmax.f32 %v2980, 0.0
    %v2984 = vmax.f32 %v2981, 0.0
    %v2985 = vmax.f32 %v2982, 0.0
    %2986 = vst [vmem:[#allocation2] sm:$0xff] %v2983
    %2987 = vst [vmem:[#allocation2 + $0x8] sm:$0xff] %v2984
    %2988 = vst.msk [vmem:[#allocation2 + $0x10] sm:$0xff] %vm1461, %v2985
    %v2989 = vld [vmem:[%s2909] sm:$0xff]
    %v2990 = vld [vmem:[%s2909 + $0x8] sm:$0xff]
    %v2991 = vld [vmem:[%s2909 + $0x10] sm:$0xff]
    %v2992 = vmul.f32 %v2989, %v2970
    %v2993 = vmul.f32 %v2990, %v2970
    %v2994 = vmul.f32 %v2991, %v2970
    %v2995 = vadd.f32 %v2992, %v2978
    %v2996 = vadd.f32 %v2993, %v2978
    %v2997 = vadd.f32 %v2994, %v2978
    %v2998 = vmax.f32 %v2995, 0.0
    %v2999 = vmax.f32 %v2996, 0.0
    %v3000 = vmax.f32 %v2997, 0.0
    %3001 = vst [vmem:[%s2909] sm:$0xff] %v2998
    %3002 = vst [vmem:[%s2909 + $0x8] sm:$0xff] %v2999
    %3003 = vst.msk [vmem:[%s2909 + $0x10] sm:$0xff] %vm1461, %v3000
    // Predicated region
    $region22: #{tpu_custom_call.1} parent=1 // pred_check
      _
    $region23: #{tpu_custom_call.1} parent=1 // pred_check_branch
      %3005 = sbr.rel (0) target = $region25
    $region24: #{tpu_custom_call.1} parent=1 // pred_region
      %s3007 = ssub.s32 768, 768
      %3008 = vsyncadd [#allocation3], %s3007
      %s3009 = sshll.u32 [#allocation2], 4
      %s3010 = int_to_ptr.vmem [resolvable:$true] %s3009
      %3015 = dma.vmem_to_hbm [thread:$0]  %s3010, 768, %s5, [#allocation3], 384, 384, 24
    $region25: #{tpu_custom_call.1} parent=1 // pred_fallthru
      _
    // Predicated region
    $region26: #{tpu_custom_call.1} parent=1 // pred_check
      _
    $region27: #{tpu_custom_call.1} parent=1 // pred_check_branch
      %3017 = sbr.rel (0) target = $region29
    $region28: #{tpu_custom_call.1} parent=1 // pred_region
      %3018 = dma.done [#allocation3], 768
    $region29: #{tpu_custom_call.1} parent=1 // pred_fallthru
      _
    %3019 = vsyncpa [#allocation3], 1

</llo_original>
